<compile_context>
chip_gen: v7x
topology: tpu7x:2x2x1
jax: 0.10.0
libtpu: 0.0.40
codegen_flags: <defaults>
</compile_context>

<pallas_src>
import functools

import jax
import jax.numpy as jnp
from jax import lax
from jax.experimental import pallas as pl
from jax.experimental.pallas import tpu as pltpu


def _decoder_kernel(x_ref, wdw_ref, wpw_ref, beff_ref, o_ref, xpad_ref, accf_ref,
                    *, C, H, W, H_out, W_out, stride, padding):
    # x_ref:    (1, C, H*W)        lane-dense input block (one batch element)
    # wdw_ref:  (9, C, 1, 1)       depthwise taps, tap-major, channel on leading axis
    # wpw_ref:  (C, C, 1)          pointwise weights (co, ci, 1)
    # beff_ref: (C, 1)             fused bias  b_pw + W_pw @ b_dw
    # o_ref:    (1, C, H_out*W_out) lane-dense output block
    # xpad_ref: (C, H+2p, W+2p)    f32 VMEM scratch (in-kernel zero padding)
    # accf_ref: (C, H_out*W_out)   f32 VMEM scratch (lane-dense depthwise result)
    f32 = jnp.float32

    # ---- Stage 1: build the zero-padded input tile in VMEM (no HBM pad). ----
    xpad_ref[...] = jnp.zeros_like(xpad_ref)
    for y in range(H):  # un-fold the (C, H*W) rows into the padded (C, Hp, Wp) scratch
        xpad_ref[:, padding + y, padding:padding + W] = (
            x_ref[0, :, y * W:(y + 1) * W].astype(f32))

    # ---- Stage 2: depthwise 3x3 conv, 9 shifted windows read from the scratch ref. ----
    acc = jnp.zeros((C, H_out, W_out), f32)
    for dy in range(3):
        for dx in range(3):
            if stride == 1:
                patch = xpad_ref[:, dy:dy + H_out, dx:dx + W_out]
            else:
                # TODO(synk): for stride=2 decoders restructure to phase-split W
                # instead of strided lane slices (perf review item on strided taps).
                patch = xpad_ref[:, pl.ds(dy, H_out, stride), pl.ds(dx, W_out, stride)]
            # (C,1,1) tap weight -> minor-dim splat over (H_out, W_out).
            acc = acc + patch * wdw_ref[dy * 3 + dx]

    # ---- Stage 3: fold (C, H_out, W_out) -> (C, H_out*W_out) so the pointwise conv
    # and the output store run on dense 128-lane rows. ----
    for y in range(H_out):
        accf_ref[:, y * W_out:(y + 1) * W_out] = acc[:, y, :]
    a = accf_ref[...]                                   # (C, HW) f32, lane-dense

    # ---- Stage 4: pointwise 1x1 conv + fused bias + ReLU. ----
    if C <= 32:
        # Small C: VPU path -- full lane utilization, no MXU/MRF latency on the
        # critical path (the MXU would run at <1% utilization for K=N=C=8).
        out = jnp.sum(wpw_ref[...] * a[None, :, :], axis=1)          # (C, HW)
    else:
        # Large C: MXU matmul with the spatial (HW) axis as the wide N dimension.
        out = jnp.dot(wpw_ref[:, :, 0], a, preferred_element_type=f32)
    out = jnp.maximum(out + beff_ref[...], 0.0)
    o_ref[0] = out.astype(o_ref.dtype)                               # dense 128-lane store


def depthwise_decoder(x, w_dw, b_dw, w_pw, b_pw, *, stride, padding):
    """x: (N, C, H, W); w_dw: (C,1,3,3); b_dw: (C,); w_pw: (C,C,1,1); b_pw: (C,)."""
    N, C, H, W = x.shape
    assert w_dw.shape == (C, 1, 3, 3) and w_pw.shape[:2] == (C, C), (
        "kernel assumes in_channels == out_channels (standard depthwise usage)")
    H_out = (H + 2 * padding - 3) // stride + 1
    W_out = (W + 2 * padding - 3) // stride + 1
    Hp, Wp = H + 2 * padding, W + 2 * padding
    HW_in, HW_out = H * W, H_out * W_out

    # --- weight prep (tiny tensors; the big activations are never re-laid-out in HBM) ---
    wdw = jnp.transpose(w_dw[:, 0], (1, 2, 0)).reshape(9, C)          # [dy*3+dx, c]
    wdw = wdw[:, :, None, None].astype(jnp.float32)                   # (9, C, 1, 1)
    wpw = w_pw[:, :, 0, 0].astype(jnp.float32)                        # (co, ci)
    b_eff = b_pw.astype(jnp.float32) + wpw @ b_dw.astype(jnp.float32)  # fold DW bias into PW bias
    wpw3 = wpw[:, :, None]                                            # (C, C, 1)
    beff = b_eff[:, None]                                             # (C, 1)

    x_flat = x.reshape(N, C, HW_in)                                   # free contiguous reshape

    kernel = functools.partial(_decoder_kernel, C=C, H=H, W=W,
                               H_out=H_out, W_out=W_out,
                               stride=stride, padding=padding)

    out_flat = pl.pallas_call(
        kernel,
        out_shape=jax.ShapeDtypeStruct((N, C, HW_out), x.dtype),
        grid=(N,),
        in_specs=[
            pl.BlockSpec((1, C, HW_in), lambda n: (n, 0, 0)),
            pl.BlockSpec((9, C, 1, 1), lambda n: (0, 0, 0, 0)),
            pl.BlockSpec((C, C, 1), lambda n: (0, 0, 0)),
            pl.BlockSpec((C, 1), lambda n: (0, 0)),
        ],
        out_specs=pl.BlockSpec((1, C, HW_out), lambda n: (n, 0, 0)),
        scratch_shapes=[
            pltpu.VMEM((C, Hp, Wp), jnp.float32),
            pltpu.VMEM((C, HW_out), jnp.float32),
        ],
        compiler_params=pltpu.CompilerParams(
            dimension_semantics=("parallel",)),
    )(x_flat, wdw, wpw3, beff)

    # TODO(synk): for large images add an H_out-tiled grid axis with a halo'd
    # (pl.Element) input block so per-step VMEM stays bounded on v7x (64 MiB) and
    # the megacore scheduler has spatial parallelism when N == 1.
    return out_flat.reshape(N, C, H_out, W_out)                       # free reshape back to NCHW


def _reference(x, w_dw, b_dw, w_pw, b_pw, *, stride, padding):
    C = x.shape[1]
    dn = ("NCHW", "OIHW", "NCHW")
    y = lax.conv_general_dilated(x, w_dw, (stride, stride),
                                 [(padding, padding), (padding, padding)],
                                 feature_group_count=C, dimension_numbers=dn)
    y = y + b_dw[None, :, None, None]
    y = lax.conv_general_dilated(y, w_pw, (1, 1), [(0, 0), (0, 0)],
                                 dimension_numbers=dn)
    y = y + b_pw[None, :, None, None]
    return jnp.maximum(y, 0.0)


if __name__ == "__main__":
    # Small deterministic problem: in_channels = out_channels = 8, stride=1, padding=1.
    N, C, H, W = 2, 8, 16, 16
    stride, padding = 1, 1

    key = jax.random.PRNGKey(0)
    kx, k1, k2, k3, k4 = jax.random.split(key, 5)
    x = jax.random.normal(kx, (N, C, H, W), jnp.float32)
    w_dw = jax.random.normal(k1, (C, 1, 3, 3), jnp.float32) * 0.2   # depthwise 3x3
    b_dw = jax.random.normal(k2, (C,), jnp.float32) * 0.1
    w_pw = jax.random.normal(k3, (C, C, 1, 1), jnp.float32) * 0.2   # pointwise 1x1
    b_pw = jax.random.normal(k4, (C,), jnp.float32) * 0.1

    out = depthwise_decoder(x, w_dw, b_dw, w_pw, b_pw,
                            stride=stride, padding=padding)
    out = jax.block_until_ready(out)

    ref = _reference(x, w_dw, b_dw, w_pw, b_pw, stride=stride, padding=padding)
    assert out.shape == ref.shape, (out.shape, ref.shape)
    assert jnp.allclose(out, ref, rtol=1e-4, atol=1e-4), "mismatch vs reference conv"

    print("KERNEL_OK")
</pallas_src>

<mosaic_0001>
module attributes {stable_mosaic.version = 11 : i64} {
  func.func @_decoder_kernel(%arg0: i32, %arg1: memref<1x8x256xf32, #tpu.memory_space<vmem>>, %arg2: memref<9x8x1x1xf32, #tpu.memory_space<vmem>>, %arg3: memref<8x8x1xf32, #tpu.memory_space<vmem>>, %arg4: memref<8x1xf32, #tpu.memory_space<vmem>>, %arg5: memref<1x8x256xf32, #tpu.memory_space<vmem>>, %arg6: memref<8x18x18xf32, #tpu.memory_space<vmem>>, %arg7: memref<8x256xf32, #tpu.memory_space<vmem>>) attributes {dimension_semantics = [#tpu.dimension_semantics<parallel>], iteration_bounds = array<i64: 2>, scalar_prefetch = 0 : i64, scratch_operands = 2 : i64, tpu.core_type = #tpu.core_type<tc>, window_params = [{transform_indices = @transform_0, window_bounds = array<i64: 1, 8, 256>}, {pipeline_mode = #tpu.pipeline_mode<synchronous>, transform_indices = @transform_1, window_bounds = array<i64: 9, 8, 1, 1>}, {pipeline_mode = #tpu.pipeline_mode<synchronous>, transform_indices = @transform_2, window_bounds = array<i64: 8, 8, 1>}, {pipeline_mode = #tpu.pipeline_mode<synchronous>, transform_indices = @transform_3, window_bounds = array<i64: 8, 1>}, {transform_indices = @transform_4, window_bounds = array<i64: 1, 8, 256>}]} {
    %cst = arith.constant 0.000000e+00 : f32
    %0 = vector.broadcast %cst : f32 to vector<8x18x18xf32>
    %c0 = arith.constant 0 : index
    %c0_0 = arith.constant 0 : index
    %c0_1 = arith.constant 0 : index
    %1 = vector.load %arg6[%c0, %c0_0, %c0_1] : memref<8x18x18xf32, #tpu.memory_space<vmem>>, vector<8x18x18xf32>
    tpu.vector_store %arg6[%c0, %c0_0, %c0_1], %0 {strides = array<i32>} : memref<8x18x18xf32, #tpu.memory_space<vmem>>, vector<8x18x18xf32>,
    %c0_2 = arith.constant 0 : index
    %c0_3 = arith.constant 0 : index
    %c0_4 = arith.constant 0 : index
    %2 = vector.load %arg1[%c0_2, %c0_3, %c0_4] : memref<1x8x256xf32, #tpu.memory_space<vmem>>, vector<1x8x16xf32>
    %3 = vector.shape_cast %2 : vector<1x8x16xf32> to vector<8x16xf32>
    %c0_5 = arith.constant 0 : index
    %c1 = arith.constant 1 : index
    %c1_6 = arith.constant 1 : index
    %4 = vector.load %arg6[%c0_5, %c1, %c1_6] : memref<8x18x18xf32, #tpu.memory_space<vmem>>, vector<8x1x16xf32>
    %5 = vector.shape_cast %4 : vector<8x1x16xf32> to vector<8x16xf32>
    %6 = vector.shape_cast %3 : vector<8x16xf32> to vector<8x1x16xf32>
    tpu.vector_store %arg6[%c0_5, %c1, %c1_6], %6 {strides = array<i32>} : memref<8x18x18xf32, #tpu.memory_space<vmem>>, vector<8x1x16xf32>,
    %c0_7 = arith.constant 0 : index
    %c0_8 = arith.constant 0 : index
    %c16 = arith.constant 16 : index
    %7 = vector.load %arg1[%c0_7, %c0_8, %c16] : memref<1x8x256xf32, #tpu.memory_space<vmem>>, vector<1x8x16xf32>
    %8 = vector.shape_cast %7 : vector<1x8x16xf32> to vector<8x16xf32>
    %c0_9 = arith.constant 0 : index
    %c2 = arith.constant 2 : index
    %c1_10 = arith.constant 1 : index
    %9 = vector.load %arg6[%c0_9, %c2, %c1_10] : memref<8x18x18xf32, #tpu.memory_space<vmem>>, vector<8x1x16xf32>
    %10 = vector.shape_cast %9 : vector<8x1x16xf32> to vector<8x16xf32>
    %11 = vector.shape_cast %8 : vector<8x16xf32> to vector<8x1x16xf32>
    tpu.vector_store %arg6[%c0_9, %c2, %c1_10], %11 {strides = array<i32>} : memref<8x18x18xf32, #tpu.memory_space<vmem>>, vector<8x1x16xf32>,
    %c0_11 = arith.constant 0 : index
    %c0_12 = arith.constant 0 : index
    %c32 = arith.constant 32 : index
    %12 = vector.load %arg1[%c0_11, %c0_12, %c32] : memref<1x8x256xf32, #tpu.memory_space<vmem>>, vector<1x8x16xf32>
    %13 = vector.shape_cast %12 : vector<1x8x16xf32> to vector<8x16xf32>
    %c0_13 = arith.constant 0 : index
    %c3 = arith.constant 3 : index
    %c1_14 = arith.constant 1 : index
    %14 = vector.load %arg6[%c0_13, %c3, %c1_14] : memref<8x18x18xf32, #tpu.memory_space<vmem>>, vector<8x1x16xf32>
    %15 = vector.shape_cast %14 : vector<8x1x16xf32> to vector<8x16xf32>
    %16 = vector.shape_cast %13 : vector<8x16xf32> to vector<8x1x16xf32>
    tpu.vector_store %arg6[%c0_13, %c3, %c1_14], %16 {strides = array<i32>} : memref<8x18x18xf32, #tpu.memory_space<vmem>>, vector<8x1x16xf32>,
    %c0_15 = arith.constant 0 : index
    %c0_16 = arith.constant 0 : index
    %c48 = arith.constant 48 : index
    %17 = vector.load %arg1[%c0_15, %c0_16, %c48] : memref<1x8x256xf32, #tpu.memory_space<vmem>>, vector<1x8x16xf32>
    %18 = vector.shape_cast %17 : vector<1x8x16xf32> to vector<8x16xf32>
    %c0_17 = arith.constant 0 : index
    %c4 = arith.constant 4 : index
    %c1_18 = arith.constant 1 : index
    %19 = vector.load %arg6[%c0_17, %c4, %c1_18] : memref<8x18x18xf32, #tpu.memory_space<vmem>>, vector<8x1x16xf32>
    %20 = vector.shape_cast %19 : vector<8x1x16xf32> to vector<8x16xf32>
    %21 = vector.shape_cast %18 : vector<8x16xf32> to vector<8x1x16xf32>
    tpu.vector_store %arg6[%c0_17, %c4, %c1_18], %21 {strides = array<i32>} : memref<8x18x18xf32, #tpu.memory_space<vmem>>, vector<8x1x16xf32>,
    %c0_19 = arith.constant 0 : index
    %c0_20 = arith.constant 0 : index
    %c64 = arith.constant 64 : index
    %22 = vector.load %arg1[%c0_19, %c0_20, %c64] : memref<1x8x256xf32, #tpu.memory_space<vmem>>, vector<1x8x16xf32>
    %23 = vector.shape_cast %22 : vector<1x8x16xf32> to vector<8x16xf32>
    %c0_21 = arith.constant 0 : index
    %c5 = arith.constant 5 : index
    %c1_22 = arith.constant 1 : index
    %24 = vector.load %arg6[%c0_21, %c5, %c1_22] : memref<8x18x18xf32, #tpu.memory_space<vmem>>, vector<8x1x16xf32>
    %25 = vector.shape_cast %24 : vector<8x1x16xf32> to vector<8x16xf32>
    %26 = vector.shape_cast %23 : vector<8x16xf32> to vector<8x1x16xf32>
    tpu.vector_store %arg6[%c0_21, %c5, %c1_22], %26 {strides = array<i32>} : memref<8x18x18xf32, #tpu.memory_space<vmem>>, vector<8x1x16xf32>,
    %c0_23 = arith.constant 0 : index
    %c0_24 = arith.constant 0 : index
    %c80 = arith.constant 80 : index
    %27 = vector.load %arg1[%c0_23, %c0_24, %c80] : memref<1x8x256xf32, #tpu.memory_space<vmem>>, vector<1x8x16xf32>
    %28 = vector.shape_cast %27 : vector<1x8x16xf32> to vector<8x16xf32>
    %c0_25 = arith.constant 0 : index
    %c6 = arith.constant 6 : index
    %c1_26 = arith.constant 1 : index
    %29 = vector.load %arg6[%c0_25, %c6, %c1_26] : memref<8x18x18xf32, #tpu.memory_space<vmem>>, vector<8x1x16xf32>
    %30 = vector.shape_cast %29 : vector<8x1x16xf32> to vector<8x16xf32>
    %31 = vector.shape_cast %28 : vector<8x16xf32> to vector<8x1x16xf32>
    tpu.vector_store %arg6[%c0_25, %c6, %c1_26], %31 {strides = array<i32>} : memref<8x18x18xf32, #tpu.memory_space<vmem>>, vector<8x1x16xf32>,
    %c0_27 = arith.constant 0 : index
    %c0_28 = arith.constant 0 : index
    %c96 = arith.constant 96 : index
    %32 = vector.load %arg1[%c0_27, %c0_28, %c96] : memref<1x8x256xf32, #tpu.memory_space<vmem>>, vector<1x8x16xf32>
    %33 = vector.shape_cast %32 : vector<1x8x16xf32> to vector<8x16xf32>
    %c0_29 = arith.constant 0 : index
    %c7 = arith.constant 7 : index
    %c1_30 = arith.constant 1 : index
    %34 = vector.load %arg6[%c0_29, %c7, %c1_30] : memref<8x18x18xf32, #tpu.memory_space<vmem>>, vector<8x1x16xf32>
    %35 = vector.shape_cast %34 : vector<8x1x16xf32> to vector<8x16xf32>
    %36 = vector.shape_cast %33 : vector<8x16xf32> to vector<8x1x16xf32>
    tpu.vector_store %arg6[%c0_29, %c7, %c1_30], %36 {strides = array<i32>} : memref<8x18x18xf32, #tpu.memory_space<vmem>>, vector<8x1x16xf32>,
    %c0_31 = arith.constant 0 : index
    %c0_32 = arith.constant 0 : index
    %c112 = arith.constant 112 : index
    %37 = vector.load %arg1[%c0_31, %c0_32, %c112] : memref<1x8x256xf32, #tpu.memory_space<vmem>>, vector<1x8x16xf32>
    %38 = vector.shape_cast %37 : vector<1x8x16xf32> to vector<8x16xf32>
    %c0_33 = arith.constant 0 : index
    %c8 = arith.constant 8 : index
    %c1_34 = arith.constant 1 : index
    %39 = vector.load %arg6[%c0_33, %c8, %c1_34] : memref<8x18x18xf32, #tpu.memory_space<vmem>>, vector<8x1x16xf32>
    %40 = vector.shape_cast %39 : vector<8x1x16xf32> to vector<8x16xf32>
    %41 = vector.shape_cast %38 : vector<8x16xf32> to vector<8x1x16xf32>
    tpu.vector_store %arg6[%c0_33, %c8, %c1_34], %41 {strides = array<i32>} : memref<8x18x18xf32, #tpu.memory_space<vmem>>, vector<8x1x16xf32>,
    %c0_35 = arith.constant 0 : index
    %c0_36 = arith.constant 0 : index
    %c128 = arith.constant 128 : index
    %42 = vector.load %arg1[%c0_35, %c0_36, %c128] : memref<1x8x256xf32, #tpu.memory_space<vmem>>, vector<1x8x16xf32>
    %43 = vector.shape_cast %42 : vector<1x8x16xf32> to vector<8x16xf32>
    %c0_37 = arith.constant 0 : index
    %c9 = arith.constant 9 : index
    %c1_38 = arith.constant 1 : index
    %44 = vector.load %arg6[%c0_37, %c9, %c1_38] : memref<8x18x18xf32, #tpu.memory_space<vmem>>, vector<8x1x16xf32>
    %45 = vector.shape_cast %44 : vector<8x1x16xf32> to vector<8x16xf32>
    %46 = vector.shape_cast %43 : vector<8x16xf32> to vector<8x1x16xf32>
    tpu.vector_store %arg6[%c0_37, %c9, %c1_38], %46 {strides = array<i32>} : memref<8x18x18xf32, #tpu.memory_space<vmem>>, vector<8x1x16xf32>,
    %c0_39 = arith.constant 0 : index
    %c0_40 = arith.constant 0 : index
    %c144 = arith.constant 144 : index
    %47 = vector.load %arg1[%c0_39, %c0_40, %c144] : memref<1x8x256xf32, #tpu.memory_space<vmem>>, vector<1x8x16xf32>
    %48 = vector.shape_cast %47 : vector<1x8x16xf32> to vector<8x16xf32>
    %c0_41 = arith.constant 0 : index
    %c10 = arith.constant 10 : index
    %c1_42 = arith.constant 1 : index
    %49 = vector.load %arg6[%c0_41, %c10, %c1_42] : memref<8x18x18xf32, #tpu.memory_space<vmem>>, vector<8x1x16xf32>
    %50 = vector.shape_cast %49 : vector<8x1x16xf32> to vector<8x16xf32>
    %51 = vector.shape_cast %48 : vector<8x16xf32> to vector<8x1x16xf32>
    tpu.vector_store %arg6[%c0_41, %c10, %c1_42], %51 {strides = array<i32>} : memref<8x18x18xf32, #tpu.memory_space<vmem>>, vector<8x1x16xf32>,
    %c0_43 = arith.constant 0 : index
    %c0_44 = arith.constant 0 : index
    %c160 = arith.constant 160 : index
    %52 = vector.load %arg1[%c0_43, %c0_44, %c160] : memref<1x8x256xf32, #tpu.memory_space<vmem>>, vector<1x8x16xf32>
    %53 = vector.shape_cast %52 : vector<1x8x16xf32> to vector<8x16xf32>
    %c0_45 = arith.constant 0 : index
    %c11 = arith.constant 11 : index
    %c1_46 = arith.constant 1 : index
    %54 = vector.load %arg6[%c0_45, %c11, %c1_46] : memref<8x18x18xf32, #tpu.memory_space<vmem>>, vector<8x1x16xf32>
    %55 = vector.shape_cast %54 : vector<8x1x16xf32> to vector<8x16xf32>
    %56 = vector.shape_cast %53 : vector<8x16xf32> to vector<8x1x16xf32>
    tpu.vector_store %arg6[%c0_45, %c11, %c1_46], %56 {strides = array<i32>} : memref<8x18x18xf32, #tpu.memory_space<vmem>>, vector<8x1x16xf32>,
    %c0_47 = arith.constant 0 : index
    %c0_48 = arith.constant 0 : index
    %c176 = arith.constant 176 : index
    %57 = vector.load %arg1[%c0_47, %c0_48, %c176] : memref<1x8x256xf32, #tpu.memory_space<vmem>>, vector<1x8x16xf32>
    %58 = vector.shape_cast %57 : vector<1x8x16xf32> to vector<8x16xf32>
    %c0_49 = arith.constant 0 : index
    %c12 = arith.constant 12 : index
    %c1_50 = arith.constant 1 : index
    %59 = vector.load %arg6[%c0_49, %c12, %c1_50] : memref<8x18x18xf32, #tpu.memory_space<vmem>>, vector<8x1x16xf32>
    %60 = vector.shape_cast %59 : vector<8x1x16xf32> to vector<8x16xf32>
    %61 = vector.shape_cast %58 : vector<8x16xf32> to vector<8x1x16xf32>
    tpu.vector_store %arg6[%c0_49, %c12, %c1_50], %61 {strides = array<i32>} : memref<8x18x18xf32, #tpu.memory_space<vmem>>, vector<8x1x16xf32>,
    %c0_51 = arith.constant 0 : index
    %c0_52 = arith.constant 0 : index
    %c192 = arith.constant 192 : index
    %62 = vector.load %arg1[%c0_51, %c0_52, %c192] : memref<1x8x256xf32, #tpu.memory_space<vmem>>, vector<1x8x16xf32>
    %63 = vector.shape_cast %62 : vector<1x8x16xf32> to vector<8x16xf32>
    %c0_53 = arith.constant 0 : index
    %c13 = arith.constant 13 : index
    %c1_54 = arith.constant 1 : index
    %64 = vector.load %arg6[%c0_53, %c13, %c1_54] : memref<8x18x18xf32, #tpu.memory_space<vmem>>, vector<8x1x16xf32>
    %65 = vector.shape_cast %64 : vector<8x1x16xf32> to vector<8x16xf32>
    %66 = vector.shape_cast %63 : vector<8x16xf32> to vector<8x1x16xf32>
    tpu.vector_store %arg6[%c0_53, %c13, %c1_54], %66 {strides = array<i32>} : memref<8x18x18xf32, #tpu.memory_space<vmem>>, vector<8x1x16xf32>,
    %c0_55 = arith.constant 0 : index
    %c0_56 = arith.constant 0 : index
    %c208 = arith.constant 208 : index
    %67 = vector.load %arg1[%c0_55, %c0_56, %c208] : memref<1x8x256xf32, #tpu.memory_space<vmem>>, vector<1x8x16xf32>
    %68 = vector.shape_cast %67 : vector<1x8x16xf32> to vector<8x16xf32>
    %c0_57 = arith.constant 0 : index
    %c14 = arith.constant 14 : index
    %c1_58 = arith.constant 1 : index
    %69 = vector.load %arg6[%c0_57, %c14, %c1_58] : memref<8x18x18xf32, #tpu.memory_space<vmem>>, vector<8x1x16xf32>
    %70 = vector.shape_cast %69 : vector<8x1x16xf32> to vector<8x16xf32>
    %71 = vector.shape_cast %68 : vector<8x16xf32> to vector<8x1x16xf32>
    tpu.vector_store %arg6[%c0_57, %c14, %c1_58], %71 {strides = array<i32>} : memref<8x18x18xf32, #tpu.memory_space<vmem>>, vector<8x1x16xf32>,
    %c0_59 = arith.constant 0 : index
    %c0_60 = arith.constant 0 : index
    %c224 = arith.constant 224 : index
    %72 = vector.load %arg1[%c0_59, %c0_60, %c224] : memref<1x8x256xf32, #tpu.memory_space<vmem>>, vector<1x8x16xf32>
    %73 = vector.shape_cast %72 : vector<1x8x16xf32> to vector<8x16xf32>
    %c0_61 = arith.constant 0 : index
    %c15 = arith.constant 15 : index
    %c1_62 = arith.constant 1 : index
    %74 = vector.load %arg6[%c0_61, %c15, %c1_62] : memref<8x18x18xf32, #tpu.memory_space<vmem>>, vector<8x1x16xf32>
    %75 = vector.shape_cast %74 : vector<8x1x16xf32> to vector<8x16xf32>
    %76 = vector.shape_cast %73 : vector<8x16xf32> to vector<8x1x16xf32>
    tpu.vector_store %arg6[%c0_61, %c15, %c1_62], %76 {strides = array<i32>} : memref<8x18x18xf32, #tpu.memory_space<vmem>>, vector<8x1x16xf32>,
    %c0_63 = arith.constant 0 : index
    %c0_64 = arith.constant 0 : index
    %c240 = arith.constant 240 : index
    %77 = vector.load %arg1[%c0_63, %c0_64, %c240] : memref<1x8x256xf32, #tpu.memory_space<vmem>>, vector<1x8x16xf32>
    %78 = vector.shape_cast %77 : vector<1x8x16xf32> to vector<8x16xf32>
    %c0_65 = arith.constant 0 : index
    %c16_66 = arith.constant 16 : index
    %c1_67 = arith.constant 1 : index
    %79 = vector.load %arg6[%c0_65, %c16_66, %c1_67] : memref<8x18x18xf32, #tpu.memory_space<vmem>>, vector<8x1x16xf32>
    %80 = vector.shape_cast %79 : vector<8x1x16xf32> to vector<8x16xf32>
    %81 = vector.shape_cast %78 : vector<8x16xf32> to vector<8x1x16xf32>
    tpu.vector_store %arg6[%c0_65, %c16_66, %c1_67], %81 {strides = array<i32>} : memref<8x18x18xf32, #tpu.memory_space<vmem>>, vector<8x1x16xf32>,
    %cst_68 = arith.constant 0.000000e+00 : f32
    %82 = vector.broadcast %cst_68 : f32 to vector<8x16x16xf32>
    %c0_69 = arith.constant 0 : index
    %c0_70 = arith.constant 0 : index
    %c0_71 = arith.constant 0 : index
    %83 = vector.load %arg6[%c0_69, %c0_70, %c0_71] : memref<8x18x18xf32, #tpu.memory_space<vmem>>, vector<8x16x16xf32>
    %c0_72 = arith.constant 0 : index
    %c0_73 = arith.constant 0 : index
    %c0_74 = arith.constant 0 : index
    %c0_75 = arith.constant 0 : index
    %84 = vector.load %arg2[%c0_72, %c0_73, %c0_74, %c0_75] : memref<9x8x1x1xf32, #tpu.memory_space<vmem>>, vector<1x8x1x1xf32>
    %85 = vector.shape_cast %84 : vector<1x8x1x1xf32> to vector<8x1x1xf32>
    %86 = vector.broadcast %85 : vector<8x1x1xf32> to vector<8x16x16xf32>
    %87 = arith.mulf %83, %86 : vector<8x16x16xf32>
    %88 = arith.addf %82, %87 : vector<8x16x16xf32>
    %c0_76 = arith.constant 0 : index
    %c0_77 = arith.constant 0 : index
    %c1_78 = arith.constant 1 : index
    %89 = vector.load %arg6[%c0_76, %c0_77, %c1_78] : memref<8x18x18xf32, #tpu.memory_space<vmem>>, vector<8x16x16xf32>
    %c1_79 = arith.constant 1 : index
    %c0_80 = arith.constant 0 : index
    %c0_81 = arith.constant 0 : index
    %c0_82 = arith.constant 0 : index
    %90 = vector.load %arg2[%c1_79, %c0_80, %c0_81, %c0_82] : memref<9x8x1x1xf32, #tpu.memory_space<vmem>>, vector<1x8x1x1xf32>
    %91 = vector.shape_cast %90 : vector<1x8x1x1xf32> to vector<8x1x1xf32>
    %92 = vector.broadcast %91 : vector<8x1x1xf32> to vector<8x16x16xf32>
    %93 = arith.mulf %89, %92 : vector<8x16x16xf32>
    %94 = arith.addf %88, %93 : vector<8x16x16xf32>
    %c0_83 = arith.constant 0 : index
    %c0_84 = arith.constant 0 : index
    %c2_85 = arith.constant 2 : index
    %95 = vector.load %arg6[%c0_83, %c0_84, %c2_85] : memref<8x18x18xf32, #tpu.memory_space<vmem>>, vector<8x16x16xf32>
    %c2_86 = arith.constant 2 : index
    %c0_87 = arith.constant 0 : index
    %c0_88 = arith.constant 0 : index
    %c0_89 = arith.constant 0 : index
    %96 = vector.load %arg2[%c2_86, %c0_87, %c0_88, %c0_89] : memref<9x8x1x1xf32, #tpu.memory_space<vmem>>, vector<1x8x1x1xf32>
    %97 = vector.shape_cast %96 : vector<1x8x1x1xf32> to vector<8x1x1xf32>
    %98 = vector.broadcast %97 : vector<8x1x1xf32> to vector<8x16x16xf32>
    %99 = arith.mulf %95, %98 : vector<8x16x16xf32>
    %100 = arith.addf %94, %99 : vector<8x16x16xf32>
    %c0_90 = arith.constant 0 : index
    %c1_91 = arith.constant 1 : index
    %c0_92 = arith.constant 0 : index
    %101 = vector.load %arg6[%c0_90, %c1_91, %c0_92] : memref<8x18x18xf32, #tpu.memory_space<vmem>>, vector<8x16x16xf32>
    %c3_93 = arith.constant 3 : index
    %c0_94 = arith.constant 0 : index
    %c0_95 = arith.constant 0 : index
    %c0_96 = arith.constant 0 : index
    %102 = vector.load %arg2[%c3_93, %c0_94, %c0_95, %c0_96] : memref<9x8x1x1xf32, #tpu.memory_space<vmem>>, vector<1x8x1x1xf32>
    %103 = vector.shape_cast %102 : vector<1x8x1x1xf32> to vector<8x1x1xf32>
    %104 = vector.broadcast %103 : vector<8x1x1xf32> to vector<8x16x16xf32>
    %105 = arith.mulf %101, %104 : vector<8x16x16xf32>
    %106 = arith.addf %100, %105 : vector<8x16x16xf32>
    %c0_97 = arith.constant 0 : index
    %c1_98 = arith.constant 1 : index
    %c1_99 = arith.constant 1 : index
    %107 = vector.load %arg6[%c0_97, %c1_98, %c1_99] : memref<8x18x18xf32, #tpu.memory_space<vmem>>, vector<8x16x16xf32>
    %c4_100 = arith.constant 4 : index
    %c0_101 = arith.constant 0 : index
    %c0_102 = arith.constant 0 : index
    %c0_103 = arith.constant 0 : index
    %108 = vector.load %arg2[%c4_100, %c0_101, %c0_102, %c0_103] : memref<9x8x1x1xf32, #tpu.memory_space<vmem>>, vector<1x8x1x1xf32>
    %109 = vector.shape_cast %108 : vector<1x8x1x1xf32> to vector<8x1x1xf32>
    %110 = vector.broadcast %109 : vector<8x1x1xf32> to vector<8x16x16xf32>
    %111 = arith.mulf %107, %110 : vector<8x16x16xf32>
    %112 = arith.addf %106, %111 : vector<8x16x16xf32>
    %c0_104 = arith.constant 0 : index
    %c1_105 = arith.constant 1 : index
    %c2_106 = arith.constant 2 : index
    %113 = vector.load %arg6[%c0_104, %c1_105, %c2_106] : memref<8x18x18xf32, #tpu.memory_space<vmem>>, vector<8x16x16xf32>
    %c5_107 = arith.constant 5 : index
    %c0_108 = arith.constant 0 : index
    %c0_109 = arith.constant 0 : index
    %c0_110 = arith.constant 0 : index
    %114 = vector.load %arg2[%c5_107, %c0_108, %c0_109, %c0_110] : memref<9x8x1x1xf32, #tpu.memory_space<vmem>>, vector<1x8x1x1xf32>
    %115 = vector.shape_cast %114 : vector<1x8x1x1xf32> to vector<8x1x1xf32>
    %116 = vector.broadcast %115 : vector<8x1x1xf32> to vector<8x16x16xf32>
    %117 = arith.mulf %113, %116 : vector<8x16x16xf32>
    %118 = arith.addf %112, %117 : vector<8x16x16xf32>
    %c0_111 = arith.constant 0 : index
    %c2_112 = arith.constant 2 : index
    %c0_113 = arith.constant 0 : index
    %119 = vector.load %arg6[%c0_111, %c2_112, %c0_113] : memref<8x18x18xf32, #tpu.memory_space<vmem>>, vector<8x16x16xf32>
    %c6_114 = arith.constant 6 : index
    %c0_115 = arith.constant 0 : index
    %c0_116 = arith.constant 0 : index
    %c0_117 = arith.constant 0 : index
    %120 = vector.load %arg2[%c6_114, %c0_115, %c0_116, %c0_117] : memref<9x8x1x1xf32, #tpu.memory_space<vmem>>, vector<1x8x1x1xf32>
    %121 = vector.shape_cast %120 : vector<1x8x1x1xf32> to vector<8x1x1xf32>
    %122 = vector.broadcast %121 : vector<8x1x1xf32> to vector<8x16x16xf32>
    %123 = arith.mulf %119, %122 : vector<8x16x16xf32>
    %124 = arith.addf %118, %123 : vector<8x16x16xf32>
    %c0_118 = arith.constant 0 : index
    %c2_119 = arith.constant 2 : index
    %c1_120 = arith.constant 1 : index
    %125 = vector.load %arg6[%c0_118, %c2_119, %c1_120] : memref<8x18x18xf32, #tpu.memory_space<vmem>>, vector<8x16x16xf32>
    %c7_121 = arith.constant 7 : index
    %c0_122 = arith.constant 0 : index
    %c0_123 = arith.constant 0 : index
    %c0_124 = arith.constant 0 : index
    %126 = vector.load %arg2[%c7_121, %c0_122, %c0_123, %c0_124] : memref<9x8x1x1xf32, #tpu.memory_space<vmem>>, vector<1x8x1x1xf32>
    %127 = vector.shape_cast %126 : vector<1x8x1x1xf32> to vector<8x1x1xf32>
    %128 = vector.broadcast %127 : vector<8x1x1xf32> to vector<8x16x16xf32>
    %129 = arith.mulf %125, %128 : vector<8x16x16xf32>
    %130 = arith.addf %124, %129 : vector<8x16x16xf32>
    %c0_125 = arith.constant 0 : index
    %c2_126 = arith.constant 2 : index
    %c2_127 = arith.constant 2 : index
    %131 = vector.load %arg6[%c0_125, %c2_126, %c2_127] : memref<8x18x18xf32, #tpu.memory_space<vmem>>, vector<8x16x16xf32>
    %c8_128 = arith.constant 8 : index
    %c0_129 = arith.constant 0 : index
    %c0_130 = arith.constant 0 : index
    %c0_131 = arith.constant 0 : index
    %132 = vector.load %arg2[%c8_128, %c0_129, %c0_130, %c0_131] : memref<9x8x1x1xf32, #tpu.memory_space<vmem>>, vector<1x8x1x1xf32>
    %133 = vector.shape_cast %132 : vector<1x8x1x1xf32> to vector<8x1x1xf32>
    %134 = vector.broadcast %133 : vector<8x1x1xf32> to vector<8x16x16xf32>
    %135 = arith.mulf %131, %134 : vector<8x16x16xf32>
    %136 = arith.addf %130, %135 : vector<8x16x16xf32>
    %137 = vector.extract_strided_slice %136 {offsets = [0, 0, 0], sizes = [8, 1, 16], strides = [1, 1, 1]} : vector<8x16x16xf32> to vector<8x1x16xf32>
    %138 = vector.shape_cast %137 : vector<8x1x16xf32> to vector<8x16xf32>
    %c0_132 = arith.constant 0 : index
    %c0_133 = arith.constant 0 : index
    %139 = vector.load %arg7[%c0_132, %c0_133] : memref<8x256xf32, #tpu.memory_space<vmem>>, vector<8x16xf32>
    tpu.vector_store %arg7[%c0_132, %c0_133], %138 {strides = array<i32>} : memref<8x256xf32, #tpu.memory_space<vmem>>, vector<8x16xf32>,
    %140 = vector.extract_strided_slice %136 {offsets = [0, 1, 0], sizes = [8, 1, 16], strides = [1, 1, 1]} : vector<8x16x16xf32> to vector<8x1x16xf32>
    %141 = vector.shape_cast %140 : vector<8x1x16xf32> to vector<8x16xf32>
    %c0_134 = arith.constant 0 : index
    %c16_135 = arith.constant 16 : index
    %142 = vector.load %arg7[%c0_134, %c16_135] : memref<8x256xf32, #tpu.memory_space<vmem>>, vector<8x16xf32>
    tpu.vector_store %arg7[%c0_134, %c16_135], %141 {strides = array<i32>} : memref<8x256xf32, #tpu.memory_space<vmem>>, vector<8x16xf32>,
    %143 = vector.extract_strided_slice %136 {offsets = [0, 2, 0], sizes = [8, 1, 16], strides = [1, 1, 1]} : vector<8x16x16xf32> to vector<8x1x16xf32>
    %144 = vector.shape_cast %143 : vector<8x1x16xf32> to vector<8x16xf32>
    %c0_136 = arith.constant 0 : index
    %c32_137 = arith.constant 32 : index
    %145 = vector.load %arg7[%c0_136, %c32_137] : memref<8x256xf32, #tpu.memory_space<vmem>>, vector<8x16xf32>
    tpu.vector_store %arg7[%c0_136, %c32_137], %144 {strides = array<i32>} : memref<8x256xf32, #tpu.memory_space<vmem>>, vector<8x16xf32>,
    %146 = vector.extract_strided_slice %136 {offsets = [0, 3, 0], sizes = [8, 1, 16], strides = [1, 1, 1]} : vector<8x16x16xf32> to vector<8x1x16xf32>
    %147 = vector.shape_cast %146 : vector<8x1x16xf32> to vector<8x16xf32>
    %c0_138 = arith.constant 0 : index
    %c48_139 = arith.constant 48 : index
    %148 = vector.load %arg7[%c0_138, %c48_139] : memref<8x256xf32, #tpu.memory_space<vmem>>, vector<8x16xf32>
    tpu.vector_store %arg7[%c0_138, %c48_139], %147 {strides = array<i32>} : memref<8x256xf32, #tpu.memory_space<vmem>>, vector<8x16xf32>,
    %149 = vector.extract_strided_slice %136 {offsets = [0, 4, 0], sizes = [8, 1, 16], strides = [1, 1, 1]} : vector<8x16x16xf32> to vector<8x1x16xf32>
    %150 = vector.shape_cast %149 : vector<8x1x16xf32> to vector<8x16xf32>
    %c0_140 = arith.constant 0 : index
    %c64_141 = arith.constant 64 : index
    %151 = vector.load %arg7[%c0_140, %c64_141] : memref<8x256xf32, #tpu.memory_space<vmem>>, vector<8x16xf32>
    tpu.vector_store %arg7[%c0_140, %c64_141], %150 {strides = array<i32>} : memref<8x256xf32, #tpu.memory_space<vmem>>, vector<8x16xf32>,
    %152 = vector.extract_strided_slice %136 {offsets = [0, 5, 0], sizes = [8, 1, 16], strides = [1, 1, 1]} : vector<8x16x16xf32> to vector<8x1x16xf32>
    %153 = vector.shape_cast %152 : vector<8x1x16xf32> to vector<8x16xf32>
    %c0_142 = arith.constant 0 : index
    %c80_143 = arith.constant 80 : index
    %154 = vector.load %arg7[%c0_142, %c80_143] : memref<8x256xf32, #tpu.memory_space<vmem>>, vector<8x16xf32>
    tpu.vector_store %arg7[%c0_142, %c80_143], %153 {strides = array<i32>} : memref<8x256xf32, #tpu.memory_space<vmem>>, vector<8x16xf32>,
    %155 = vector.extract_strided_slice %136 {offsets = [0, 6, 0], sizes = [8, 1, 16], strides = [1, 1, 1]} : vector<8x16x16xf32> to vector<8x1x16xf32>
    %156 = vector.shape_cast %155 : vector<8x1x16xf32> to vector<8x16xf32>
    %c0_144 = arith.constant 0 : index
    %c96_145 = arith.constant 96 : index
    %157 = vector.load %arg7[%c0_144, %c96_145] : memref<8x256xf32, #tpu.memory_space<vmem>>, vector<8x16xf32>
    tpu.vector_store %arg7[%c0_144, %c96_145], %156 {strides = array<i32>} : memref<8x256xf32, #tpu.memory_space<vmem>>, vector<8x16xf32>,
    %158 = vector.extract_strided_slice %136 {offsets = [0, 7, 0], sizes = [8, 1, 16], strides = [1, 1, 1]} : vector<8x16x16xf32> to vector<8x1x16xf32>
    %159 = vector.shape_cast %158 : vector<8x1x16xf32> to vector<8x16xf32>
    %c0_146 = arith.constant 0 : index
    %c112_147 = arith.constant 112 : index
    %160 = vector.load %arg7[%c0_146, %c112_147] : memref<8x256xf32, #tpu.memory_space<vmem>>, vector<8x16xf32>
    tpu.vector_store %arg7[%c0_146, %c112_147], %159 {strides = array<i32>} : memref<8x256xf32, #tpu.memory_space<vmem>>, vector<8x16xf32>,
    %161 = vector.extract_strided_slice %136 {offsets = [0, 8, 0], sizes = [8, 1, 16], strides = [1, 1, 1]} : vector<8x16x16xf32> to vector<8x1x16xf32>
    %162 = vector.shape_cast %161 : vector<8x1x16xf32> to vector<8x16xf32>
    %c0_148 = arith.constant 0 : index
    %c128_149 = arith.constant 128 : index
    %163 = vector.load %arg7[%c0_148, %c128_149] : memref<8x256xf32, #tpu.memory_space<vmem>>, vector<8x16xf32>
    tpu.vector_store %arg7[%c0_148, %c128_149], %162 {strides = array<i32>} : memref<8x256xf32, #tpu.memory_space<vmem>>, vector<8x16xf32>,
    %164 = vector.extract_strided_slice %136 {offsets = [0, 9, 0], sizes = [8, 1, 16], strides = [1, 1, 1]} : vector<8x16x16xf32> to vector<8x1x16xf32>
    %165 = vector.shape_cast %164 : vector<8x1x16xf32> to vector<8x16xf32>
    %c0_150 = arith.constant 0 : index
    %c144_151 = arith.constant 144 : index
    %166 = vector.load %arg7[%c0_150, %c144_151] : memref<8x256xf32, #tpu.memory_space<vmem>>, vector<8x16xf32>
    tpu.vector_store %arg7[%c0_150, %c144_151], %165 {strides = array<i32>} : memref<8x256xf32, #tpu.memory_space<vmem>>, vector<8x16xf32>,
    %167 = vector.extract_strided_slice %136 {offsets = [0, 10, 0], sizes = [8, 1, 16], strides = [1, 1, 1]} : vector<8x16x16xf32> to vector<8x1x16xf32>
    %168 = vector.shape_cast %167 : vector<8x1x16xf32> to vector<8x16xf32>
    %c0_152 = arith.constant 0 : index
    %c160_153 = arith.constant 160 : index
    %169 = vector.load %arg7[%c0_152, %c160_153] : memref<8x256xf32, #tpu.memory_space<vmem>>, vector<8x16xf32>
    tpu.vector_store %arg7[%c0_152, %c160_153], %168 {strides = array<i32>} : memref<8x256xf32, #tpu.memory_space<vmem>>, vector<8x16xf32>,
    %170 = vector.extract_strided_slice %136 {offsets = [0, 11, 0], sizes = [8, 1, 16], strides = [1, 1, 1]} : vector<8x16x16xf32> to vector<8x1x16xf32>
    %171 = vector.shape_cast %170 : vector<8x1x16xf32> to vector<8x16xf32>
    %c0_154 = arith.constant 0 : index
    %c176_155 = arith.constant 176 : index
    %172 = vector.load %arg7[%c0_154, %c176_155] : memref<8x256xf32, #tpu.memory_space<vmem>>, vector<8x16xf32>
    tpu.vector_store %arg7[%c0_154, %c176_155], %171 {strides = array<i32>} : memref<8x256xf32, #tpu.memory_space<vmem>>, vector<8x16xf32>,
    %173 = vector.extract_strided_slice %136 {offsets = [0, 12, 0], sizes = [8, 1, 16], strides = [1, 1, 1]} : vector<8x16x16xf32> to vector<8x1x16xf32>
    %174 = vector.shape_cast %173 : vector<8x1x16xf32> to vector<8x16xf32>
    %c0_156 = arith.constant 0 : index
    %c192_157 = arith.constant 192 : index
    %175 = vector.load %arg7[%c0_156, %c192_157] : memref<8x256xf32, #tpu.memory_space<vmem>>, vector<8x16xf32>
    tpu.vector_store %arg7[%c0_156, %c192_157], %174 {strides = array<i32>} : memref<8x256xf32, #tpu.memory_space<vmem>>, vector<8x16xf32>,
    %176 = vector.extract_strided_slice %136 {offsets = [0, 13, 0], sizes = [8, 1, 16], strides = [1, 1, 1]} : vector<8x16x16xf32> to vector<8x1x16xf32>
    %177 = vector.shape_cast %176 : vector<8x1x16xf32> to vector<8x16xf32>
    %c0_158 = arith.constant 0 : index
    %c208_159 = arith.constant 208 : index
    %178 = vector.load %arg7[%c0_158, %c208_159] : memref<8x256xf32, #tpu.memory_space<vmem>>, vector<8x16xf32>
    tpu.vector_store %arg7[%c0_158, %c208_159], %177 {strides = array<i32>} : memref<8x256xf32, #tpu.memory_space<vmem>>, vector<8x16xf32>,
    %179 = vector.extract_strided_slice %136 {offsets = [0, 14, 0], sizes = [8, 1, 16], strides = [1, 1, 1]} : vector<8x16x16xf32> to vector<8x1x16xf32>
    %180 = vector.shape_cast %179 : vector<8x1x16xf32> to vector<8x16xf32>
    %c0_160 = arith.constant 0 : index
    %c224_161 = arith.constant 224 : index
    %181 = vector.load %arg7[%c0_160, %c224_161] : memref<8x256xf32, #tpu.memory_space<vmem>>, vector<8x16xf32>
    tpu.vector_store %arg7[%c0_160, %c224_161], %180 {strides = array<i32>} : memref<8x256xf32, #tpu.memory_space<vmem>>, vector<8x16xf32>,
    %182 = vector.extract_strided_slice %136 {offsets = [0, 15, 0], sizes = [8, 1, 16], strides = [1, 1, 1]} : vector<8x16x16xf32> to vector<8x1x16xf32>
    %183 = vector.shape_cast %182 : vector<8x1x16xf32> to vector<8x16xf32>
    %c0_162 = arith.constant 0 : index
    %c240_163 = arith.constant 240 : index
    %184 = vector.load %arg7[%c0_162, %c240_163] : memref<8x256xf32, #tpu.memory_space<vmem>>, vector<8x16xf32>
    tpu.vector_store %arg7[%c0_162, %c240_163], %183 {strides = array<i32>} : memref<8x256xf32, #tpu.memory_space<vmem>>, vector<8x16xf32>,
    %c0_164 = arith.constant 0 : index
    %c0_165 = arith.constant 0 : index
    %185 = vector.load %arg7[%c0_164, %c0_165] : memref<8x256xf32, #tpu.memory_space<vmem>>, vector<8x256xf32>
    %c0_166 = arith.constant 0 : index
    %c0_167 = arith.constant 0 : index
    %c0_168 = arith.constant 0 : index
    %186 = vector.load %arg3[%c0_166, %c0_167, %c0_168] : memref<8x8x1xf32, #tpu.memory_space<vmem>>, vector<8x8x1xf32>
    %187 = vector.shape_cast %185 : vector<8x256xf32> to vector<1x8x256xf32>
    %188 = vector.broadcast %186 : vector<8x8x1xf32> to vector<8x8x256xf32>
    %189 = vector.broadcast %187 : vector<1x8x256xf32> to vector<8x8x256xf32>
    %190 = arith.mulf %188, %189 : vector<8x8x256xf32>
    %cst_169 = arith.constant dense<0.000000e+00> : vector<8x256xf32>
    %191 = vector.multi_reduction <add>, %190, %cst_169 [1] : vector<8x8x256xf32> to vector<8x256xf32>
    %c0_170 = arith.constant 0 : index
    %c0_171 = arith.constant 0 : index
    %192 = vector.load %arg4[%c0_170, %c0_171] : memref<8x1xf32, #tpu.memory_space<vmem>>, vector<8x1xf32>
    %193 = vector.broadcast %192 : vector<8x1xf32> to vector<8x256xf32>
    %194 = arith.addf %191, %193 : vector<8x256xf32>
    %cst_172 = arith.constant 0.000000e+00 : f32
    %195 = vector.broadcast %cst_172 : f32 to vector<8x256xf32>
    %196 = arith.maximumf %194, %195 : vector<8x256xf32>
    %c0_173 = arith.constant 0 : index
    %c0_174 = arith.constant 0 : index
    %c0_175 = arith.constant 0 : index
    %197 = vector.load %arg5[%c0_173, %c0_174, %c0_175] : memref<1x8x256xf32, #tpu.memory_space<vmem>>, vector<1x8x256xf32>
    %198 = vector.shape_cast %197 : vector<1x8x256xf32> to vector<8x256xf32>
    %199 = vector.shape_cast %196 : vector<8x256xf32> to vector<1x8x256xf32>
    tpu.vector_store %arg5[%c0_173, %c0_174, %c0_175], %199 {strides = array<i32>} : memref<1x8x256xf32, #tpu.memory_space<vmem>>, vector<1x8x256xf32>,
    return
  }
  func.func @transform_0(%arg0: i32) -> (i32, i32, i32) {
    %c0_i32 = arith.constant 0 : i32
    %c0_i32_0 = arith.constant 0 : i32
    %c0_i32_1 = arith.constant 0 : i32
    return %arg0, %c0_i32, %c0_i32_0 : i32, i32, i32
  }
  func.func @transform_1(%arg0: i32) -> (i32, i32, i32, i32) {
    %c0_i32 = arith.constant 0 : i32
    %c0_i32_0 = arith.constant 0 : i32
    %c0_i32_1 = arith.constant 0 : i32
    %c0_i32_2 = arith.constant 0 : i32
    %c0_i32_3 = arith.constant 0 : i32
    return %c0_i32, %c0_i32_0, %c0_i32_1, %c0_i32_2 : i32, i32, i32, i32
  }
  func.func @transform_2(%arg0: i32) -> (i32, i32, i32) {
    %c0_i32 = arith.constant 0 : i32
    %c0_i32_0 = arith.constant 0 : i32
    %c0_i32_1 = arith.constant 0 : i32
    %c0_i32_2 = arith.constant 0 : i32
    return %c0_i32, %c0_i32_0, %c0_i32_1 : i32, i32, i32
  }
  func.func @transform_3(%arg0: i32) -> (i32, i32) {
    %c0_i32 = arith.constant 0 : i32
    %c0_i32_0 = arith.constant 0 : i32
    %c0_i32_1 = arith.constant 0 : i32
    return %c0_i32, %c0_i32_0 : i32, i32
  }
  func.func @transform_4(%arg0: i32) -> (i32, i32, i32) {
    %c0_i32 = arith.constant 0 : i32
    %c0_i32_0 = arith.constant 0 : i32
    %c0_i32_1 = arith.constant 0 : i32
    return %arg0, %c0_i32, %c0_i32_0 : i32, i32, i32
  }
}

</mosaic_0001>

<llo_original>
// kernel: tpu_custom_call.1
$region0: #{tpu_custom_call.1}
  #allocation0 [shape = 'u32[]', space=smem, size = 0x4, offset = 0x4, fixed_abs, tag = 'smem constant byte address 0x4 - core index']
  #allocation1 [shape = 'u32[144,128]{1,0:T(1,128)}', space=vmem, size = 0x12000, scoped, tag = 'internal scratch']
  #allocation2 [shape = 'f32[8,18,18]{2,1,0:T(8,128)}', space=vmem, size = 0x18000, scoped, tag = 'scratch operand']
  #allocation3 [shape = 'f32[8,256]{1,0:T(8,128)}', space=vmem, size = 0x2000, scoped, tag = 'scratch operand']
  %s0 = inlined_call_operand.vmem [shape: f32[2,8,256], index: 0, kind: input, shape index: {}]
  %s1 = inlined_call_operand.vmem [shape: f32[9,8,1,1], index: 1, kind: input, shape index: {}]
  %s2 = inlined_call_operand.vmem [shape: f32[8,8,1], index: 2, kind: input, shape index: {}]
  %s3 = inlined_call_operand.vmem [shape: f32[8,1], index: 3, kind: input, shape index: {}]
  %s4 = inlined_call_operand.hbm [shape: f32[2,8,256], index: 4, kind: output, shape index: {}]
  %s5 = sld [smem:[#allocation0]]
  $region49: #{tpu_custom_call.1} parent=0
    _
  %s7 = ssub.s32 1, %s5
  %s8 = scalar_select 0, %s7, %s5
  $region1: #{tpu_custom_call.1} parent=0
    #allocation4 [shape = 'u8[16384]{0}', space=vmem, size = 0x4000, scoped, tag = 'output window, operand 0']
    #allocation5 [shape = 's32[2]{0}', space=sflag, size = 0x8, scoped, tag = 'scoped memory for tpu_custom_call.1']
    %9 = vsyncpa [#allocation5], 0
    %s10 = scalar_lea.sflag [#allocation5], 1
    %11 = vsyncpa %s10, 0
    loop: start=0, step=1, limit=4
    $region2: #{tpu_custom_call.1} parent=1 // loop_pre_header
      _
    $region3: #{tpu_custom_call.1} parent=1 // loop_header
      %s13 = sphi 0, %s17
      %p14 = scmp.ge.s32.totalorder %s13, 4
      %s23 = sphi 0, %s25
      %s26 = sphi 0, %s23
      %s27 = sphi 0, %s26
      %s43 = sphi 0, %s27
      %s47 = sphi 0, %s47
      %s49 = sphi 0, %s47
      %s50 = sphi 0, %s49
      %s64 = sphi 0, %s50
      %s68 = sphi 0, %s68
      %s70 = sphi 0, %s68
      %s71 = sphi 0, %s70
      %s85 = sphi 0, %s71
      %s89 = sphi 0, %s89
      %s91 = sphi 0, %s89
      %s92 = sphi 0, %s91
      %s106 = sphi 0, %s92
      %s112 = sphi 0, %s114
      %s115 = sphi 0, %s112
      %s116 = sphi 0, %s115
      %s132 = sphi 0, %s116
    $region4: #{tpu_custom_call.1} parent=1 // loop_header_branch
      %16 = sbr.rel (%p14) target = $region8
    $region5: #{tpu_custom_call.1} parent=1 // loop_body
      %s18 = ssub.s32 %s13, 1
      %s19 = ssub.s32 %s13, 2
      %s20 = sadd.s32 %s13, 1
      %s21 = ssub.s32 %s13, %s20
      %p22 = scmp.eq.s32.totalorder %s21, 0
      %s24 = sadd.s32 %s23, 1
      %s25 = scalar_select %p22, %s23, %s24
      %p28 = pneg %p22
      %p29 = scmp.eq.s32.totalorder %s13, 1
      %p30 = por %p28, %p29
      %p31 = scmp.ne.s32.totalorder %s23, %s26
      %p32 = scmp.eq.s32.totalorder %s13, 0
      %p33 = por %p31, %p32
      %p34 = scmp.ne.s32.totalorder %s23, %s26
      %p35 = scmp.eq.s32.totalorder %s18, 1
      %p36 = por %p34, %p35
      %p37 = scmp.ne.s32.totalorder %s26, %s27
      %p38 = scmp.eq.s32.totalorder %s18, 0
      %p39 = por %p37, %p38
      %p40 = scmp.ne.s32.totalorder %s26, %s27
      %p41 = scmp.eq.s32.totalorder %s19, 1
      %p42 = por %p40, %p41
      %p44 = scmp.ne.s32.totalorder %s27, %s43
      %p45 = scmp.eq.s32.totalorder %s19, 0
      %p46 = por %p44, %p45
      %s48 = sadd.s32 %s47, 1
      %p51 = scmp.eq.s32.totalorder %s13, 1
      %p52 = scmp.ne.s32.totalorder %s47, %s49
      %p53 = scmp.eq.s32.totalorder %s13, 0
      %p54 = por %p52, %p53
      %p55 = scmp.ne.s32.totalorder %s47, %s49
      %p56 = scmp.eq.s32.totalorder %s18, 1
      %p57 = por %p55, %p56
      %p58 = scmp.ne.s32.totalorder %s49, %s50
      %p59 = scmp.eq.s32.totalorder %s18, 0
      %p60 = por %p58, %p59
      %p61 = scmp.ne.s32.totalorder %s49, %s50
      %p62 = scmp.eq.s32.totalorder %s19, 1
      %p63 = por %p61, %p62
      %p65 = scmp.ne.s32.totalorder %s50, %s64
      %p66 = scmp.eq.s32.totalorder %s19, 0
      %p67 = por %p65, %p66
      %s69 = sadd.s32 %s68, 1
      %p72 = scmp.eq.s32.totalorder %s13, 1
      %p73 = scmp.ne.s32.totalorder %s68, %s70
      %p74 = scmp.eq.s32.totalorder %s13, 0
      %p75 = por %p73, %p74
      %p76 = scmp.ne.s32.totalorder %s68, %s70
      %p77 = scmp.eq.s32.totalorder %s18, 1
      %p78 = por %p76, %p77
      %p79 = scmp.ne.s32.totalorder %s70, %s71
      %p80 = scmp.eq.s32.totalorder %s18, 0
      %p81 = por %p79, %p80
      %p82 = scmp.ne.s32.totalorder %s70, %s71
      %p83 = scmp.eq.s32.totalorder %s19, 1
      %p84 = por %p82, %p83
      %p86 = scmp.ne.s32.totalorder %s71, %s85
      %p87 = scmp.eq.s32.totalorder %s19, 0
      %p88 = por %p86, %p87
      %s90 = sadd.s32 %s89, 1
      %p93 = scmp.eq.s32.totalorder %s13, 1
      %p94 = scmp.ne.s32.totalorder %s89, %s91
      %p95 = scmp.eq.s32.totalorder %s13, 0
      %p96 = por %p94, %p95
      %p97 = scmp.ne.s32.totalorder %s89, %s91
      %p98 = scmp.eq.s32.totalorder %s18, 1
      %p99 = por %p97, %p98
      %p100 = scmp.ne.s32.totalorder %s91, %s92
      %p101 = scmp.eq.s32.totalorder %s18, 0
      %p102 = por %p100, %p101
      %p103 = scmp.ne.s32.totalorder %s91, %s92
      %p104 = scmp.eq.s32.totalorder %s19, 1
      %p105 = por %p103, %p104
      %p107 = scmp.ne.s32.totalorder %s92, %s106
      %p108 = scmp.eq.s32.totalorder %s19, 0
      %p109 = por %p107, %p108
      %s110 = ssub.s32 %s13, %s20
      %p111 = scmp.eq.s32.totalorder %s110, 0
      %s113 = sadd.s32 %s112, 1
      %s114 = scalar_select %p111, %s112, %s113
      %p117 = pneg %p111
      %p118 = scmp.eq.s32.totalorder %s13, 1
      %p119 = por %p117, %p118
      %p120 = scmp.ne.s32.totalorder %s112, %s115
      %p121 = scmp.eq.s32.totalorder %s13, 0
      %p122 = por %p120, %p121
      %p123 = scmp.ne.s32.totalorder %s112, %s115
      %p124 = scmp.eq.s32.totalorder %s18, 1
      %p125 = por %p123, %p124
      %p126 = scmp.ne.s32.totalorder %s115, %s116
      %p127 = scmp.eq.s32.totalorder %s18, 0
      %p128 = por %p126, %p127
      %p129 = scmp.ne.s32.totalorder %s115, %s116
      %p130 = scmp.eq.s32.totalorder %s19, 1
      %p131 = por %p129, %p130
      %p133 = scmp.ne.s32.totalorder %s116, %s132
      %p134 = scmp.eq.s32.totalorder %s19, 0
      %p135 = por %p133, %p134
      %p136 = scmp.le.s32.totalorder 1, %s13
      %p137 = scmp.lt.s32.totalorder %s13, 3
      %p138 = pnand %p136, %p137
      %p139 = pneg %p138
      // Predicated region
      $region9: #{tpu_custom_call.1} parent=5 // pred_check
        _
      $region10: #{tpu_custom_call.1} parent=5 // pred_check_branch
        %141 = sbr.rel (%p138) target = $region12
      $region11: #{tpu_custom_call.1} parent=5 // pred_region
        %s142 = ssub.s32 %s13, 1
        // Predicated region
        $region13: #{tpu_custom_call.1} parent=11 // pred_check
          %p143 = pneg %p60
        $region14: #{tpu_custom_call.1} parent=11 // pred_check_branch
          %145 = sbr.rel (%p143) target = $region16
        $region15: #{tpu_custom_call.1} parent=11 // pred_region
          _
        $region16: #{tpu_custom_call.1} parent=11 // pred_fallthru
          _
        // Predicated region
        $region17: #{tpu_custom_call.1} parent=11 // pred_check
          %p146 = pneg %p81
        $region18: #{tpu_custom_call.1} parent=11 // pred_check_branch
          %148 = sbr.rel (%p146) target = $region20
        $region19: #{tpu_custom_call.1} parent=11 // pred_region
          _
        $region20: #{tpu_custom_call.1} parent=11 // pred_fallthru
          _
        // Predicated region
        $region21: #{tpu_custom_call.1} parent=11 // pred_check
          %p149 = pneg %p102
        $region22: #{tpu_custom_call.1} parent=11 // pred_check_branch
          %151 = sbr.rel (%p149) target = $region24
        $region23: #{tpu_custom_call.1} parent=11 // pred_region
          _
        $region24: #{tpu_custom_call.1} parent=11 // pred_fallthru
          _
      $region12: #{tpu_custom_call.1} parent=5 // pred_fallthru
        _
      %p152 = scmp.lt.s32.totalorder %s13, 2
      // Predicated region
      $region25: #{tpu_custom_call.1} parent=5 // pred_check
        %p153 = pneg %p152
      $region26: #{tpu_custom_call.1} parent=5 // pred_check_branch
        %155 = sbr.rel (%p153) target = $region28
      $region27: #{tpu_custom_call.1} parent=5 // pred_region
        // Predicated region
        $region29: #{tpu_custom_call.1} parent=27 // pred_check
          %p156 = pneg %p33
        $region30: #{tpu_custom_call.1} parent=27 // pred_check_branch
          %158 = sbr.rel (%p156) target = $region32
        $region31: #{tpu_custom_call.1} parent=27 // pred_region
          %p159 = scmp.lt.s32.totalorder %s13, 1
          %s160 = scalar_select %p159, %s13, 1
          %s161 = smul.addr %s160, 2
          %s162 = smul.addr %s161, 8
          %s163 = scalar_lea.vmem %s0, %s162
        $region32: #{tpu_custom_call.1} parent=27 // pred_fallthru
          _
      $region28: #{tpu_custom_call.1} parent=5 // pred_fallthru
        _
      %p164 = scmp.le.s32.totalorder 1, %s13
      %p165 = scmp.lt.s32.totalorder %s13, 3
      %p166 = pnand %p164, %p165
      %p167 = pneg %p166
      // Predicated region
      $region33: #{tpu_custom_call.1} parent=5 // pred_check
        _
      $region34: #{tpu_custom_call.1} parent=5 // pred_check_branch
        %169 = sbr.rel (%p166) target = $region36
      $region35: #{tpu_custom_call.1} parent=5 // pred_region
        %s170 = ssub.s32 %s13, 1
        %p171 = scmp.lt.s32.totalorder %s18, 1
        %s172 = scalar_select %p171, %s18, 1
        %s173 = smul.addr %s172, 2
        %s174 = smul.addr %s173, 8
        %s175 = scalar_lea.vmem %s0, %s174
        %p176 = pneg %p39
        %p177 = pneg %p36
        %p178 = pneg %p60
        %p179 = pneg %p57
        %p180 = pneg %p81
        %p181 = pneg %p78
        %p182 = pneg %p102
        %p183 = pneg %p99
        %p184 = pneg %p128
        %p185 = pneg %p125
        %s186 = sand.u32 %s115, 1
        %s187 = scalar_lea.sflag [#allocation5], %s186
        %s188 = sand.u32 %s115, 1
        %s189 = smul.addr %s188, 16
        %s190 = scalar_lea.vmem [#allocation4], %s189
        %p191 = scmp.lt.s32.totalorder %s18, 1
        %s192 = scalar_select %p191, %s18, 1
        %s193 = smul.addr %s192, 2
        %s194 = smul.addr %s193, 8
        %s195 = scalar_lea.vmem %s0, %s194
        %vm196 = vcmask 146432
        %197 = vst.msk [vmem:[#allocation2] sm:$0xff] %vm196, 0.0
        %198 = vst.msk [vmem:[#allocation2 + $0x8] sm:$0xff] %vm196, 0.0
        %vm199 = vcmask 140288
        %200 = vst.msk [vmem:[#allocation2 + $0x10] sm:$0x3] %vm199, 0.0
        %201 = vst.msk [vmem:[#allocation2 + $0x18] sm:$0xff] %vm196, 0.0
        %202 = vst.msk [vmem:[#allocation2 + $0x20] sm:$0xff] %vm196, 0.0
        %203 = vst.msk [vmem:[#allocation2 + $0x28] sm:$0x3] %vm199, 0.0
        %204 = vst.msk [vmem:[#allocation2 + $0x30] sm:$0xff] %vm196, 0.0
        %205 = vst.msk [vmem:[#allocation2 + $0x38] sm:$0xff] %vm196, 0.0
        %206 = vst.msk [vmem:[#allocation2 + $0x40] sm:$0x3] %vm199, 0.0
        %207 = vst.msk [vmem:[#allocation2 + $0x48] sm:$0xff] %vm196, 0.0
        %208 = vst.msk [vmem:[#allocation2 + $0x50] sm:$0xff] %vm196, 0.0
        %209 = vst.msk [vmem:[#allocation2 + $0x58] sm:$0x3] %vm199, 0.0
        %210 = vst.msk [vmem:[#allocation2 + $0x60] sm:$0xff] %vm196, 0.0
        %211 = vst.msk [vmem:[#allocation2 + $0x68] sm:$0xff] %vm196, 0.0
        %212 = vst.msk [vmem:[#allocation2 + $0x70] sm:$0x3] %vm199, 0.0
        %213 = vst.msk [vmem:[#allocation2 + $0x78] sm:$0xff] %vm196, 0.0
        %214 = vst.msk [vmem:[#allocation2 + $0x80] sm:$0xff] %vm196, 0.0
        %215 = vst.msk [vmem:[#allocation2 + $0x88] sm:$0x3] %vm199, 0.0
        %216 = vst.msk [vmem:[#allocation2 + $0x90] sm:$0xff] %vm196, 0.0
        %217 = vst.msk [vmem:[#allocation2 + $0x98] sm:$0xff] %vm196, 0.0
        %218 = vst.msk [vmem:[#allocation2 + $0xa0] sm:$0x3] %vm199, 0.0
        %219 = vst.msk [vmem:[#allocation2 + $0xa8] sm:$0xff] %vm196, 0.0
        %220 = vst.msk [vmem:[#allocation2 + $0xb0] sm:$0xff] %vm196, 0.0
        %221 = vst.msk [vmem:[#allocation2 + $0xb8] sm:$0x3] %vm199, 0.0
        %v222 = vld [vmem:[%s195] sm:$0xff]
        %v224 = vcombine.high %v222, %v222
        %v226 = vunpack.c.l.s4 1966171168
        %v227 = vunpack.c.0.s8 %v226
        %v228 = vlaneseq
        %v229 = vshrl.u32 %v228, 7
        %v230 = vsub.s32 %v227, %v229
        %v231 = vrot.slane %v222, %v230
        %v233 = vunpack.c.l.s4 1966171168
        %v234 = vunpack.c.0.s8 %v233
        %v235 = vlaneseq
        %v236 = vshrl.u32 %v235, 7
        %v237 = vsub.s32 %v234, %v236
        %v238 = vrot.slane %v224, %v237
        %v239 = vcombine.high %v231, %v231
        %v240 = vcombine.high %v238, %v238
        %v242 = vunpack.c.l.s4 1966171168
        %v243 = vunpack.c.0.s8 %v242
        %v244 = vlaneseq
        %v245 = vshrl.u32 %v244, 7
        %v246 = vsub.s32 %v243, %v245
        %v247 = vrot.slane %v231, %v246
        %v249 = vunpack.c.l.s4 1966171168
        %v250 = vunpack.c.0.s8 %v249
        %v251 = vlaneseq
        %v252 = vshrl.u32 %v251, 7
        %v253 = vsub.s32 %v250, %v252
        %v254 = vrot.slane %v238, %v253
        %v256 = vunpack.c.l.s4 1966171168
        %v257 = vunpack.c.0.s8 %v256
        %v258 = vlaneseq
        %v259 = vshrl.u32 %v258, 7
        %v260 = vsub.s32 %v257, %v259
        %v261 = vrot.slane %v239, %v260
        %v263 = vunpack.c.l.s4 1966171168
        %v264 = vunpack.c.0.s8 %v263
        %v265 = vlaneseq
        %v266 = vshrl.u32 %v265, 7
        %v267 = vsub.s32 %v264, %v266
        %v268 = vrot.slane %v240, %v267
        %v269 = vcombine.high %v247, %v247
        %v270 = vcombine.high %v254, %v254
        %v271 = vcombine.high %v261, %v261
        %v272 = vcombine.high %v268, %v268
        %v273 = vlaneseq
        %v274 = vshrl.u32 %v273, 7
        %v275 = vsub.s32 0, %v274
        %v276 = vrot.slane %v247, %v275
        %v277 = vlaneseq
        %v278 = vshrl.u32 %v277, 7
        %v279 = vsub.s32 0, %v278
        %v280 = vrot.slane %v261, %v279
        %v281 = vlaneseq
        %v282 = vshrl.u32 %v281, 7
        %v283 = vsub.s32 0, %v282
        %v284 = vrot.slane %v269, %v283
        %v285 = vlaneseq
        %v286 = vshrl.u32 %v285, 7
        %v287 = vsub.s32 0, %v286
        %v288 = vrot.slane %v271, %v287
        %v289 = vlaneseq
        %v290 = vshrl.u32 %v289, 7
        %v291 = vsub.s32 0, %v290
        %v292 = vrot.slane %v254, %v291
        %v293 = vlaneseq
        %v294 = vshrl.u32 %v293, 7
        %v295 = vsub.s32 0, %v294
        %v296 = vrot.slane %v268, %v295
        %v297 = vlaneseq
        %v298 = vshrl.u32 %v297, 7
        %v299 = vsub.s32 0, %v298
        %v300 = vrot.slane %v270, %v299
        %v301 = vlaneseq
        %v302 = vshrl.u32 %v301, 7
        %v303 = vsub.s32 0, %v302
        %v304 = vrot.slane %v272, %v303
        %305 = vrot.lane.b32.xlu0 %v276, 1
        %v306 = vpop.permute.xlu0 %305
        %307 = vrot.lane.b32.xlu0 %v280, 1
        %v308 = vpop.permute.xlu0 %307
        %309 = vrot.lane.b32.xlu0 %v284, 1
        %v310 = vpop.permute.xlu0 %309
        %311 = vrot.lane.b32.xlu0 %v288, 1
        %v312 = vpop.permute.xlu0 %311
        %313 = vrot.lane.b32.xlu0 %v292, 1
        %v314 = vpop.permute.xlu0 %313
        %315 = vrot.lane.b32.xlu0 %v296, 1
        %v316 = vpop.permute.xlu0 %315
        %317 = vrot.lane.b32.xlu0 %v300, 1
        %v318 = vpop.permute.xlu0 %317
        %319 = vrot.lane.b32.xlu0 %v304, 1
        %v320 = vpop.permute.xlu0 %319
        %vm329 = vcmask 131080
        %330 = vst.msk [vmem:[#allocation2 + $0x1] sm:$0x1] %vm329, %v306
        %331 = vst.msk [vmem:[#allocation2 + $0x19] sm:$0x1] %vm329, %v308
        %332 = vst.msk [vmem:[#allocation2 + $0x31] sm:$0x1] %vm329, %v310
        %333 = vst.msk [vmem:[#allocation2 + $0x49] sm:$0x1] %vm329, %v312
        %334 = vst.msk [vmem:[#allocation2 + $0x61] sm:$0x1] %vm329, %v314
        %335 = vst.msk [vmem:[#allocation2 + $0x79] sm:$0x1] %vm329, %v316
        %336 = vst.msk [vmem:[#allocation2 + $0x91] sm:$0x1] %vm329, %v318
        %337 = vst.msk [vmem:[#allocation2 + $0xa9] sm:$0x1] %vm329, %v320
        %v338 = vld [vmem:[%s195] sm:$0xff]
        %v340 = vcombine.high %v338, %v338
        %v342 = vunpack.c.l.s4 1966171168
        %v343 = vunpack.c.0.s8 %v342
        %v344 = vlaneseq
        %v345 = vshrl.u32 %v344, 7
        %v346 = vsub.s32 %v343, %v345
        %v347 = vrot.slane %v338, %v346
        %v349 = vunpack.c.l.s4 1966171168
        %v350 = vunpack.c.0.s8 %v349
        %v351 = vlaneseq
        %v352 = vshrl.u32 %v351, 7
        %v353 = vsub.s32 %v350, %v352
        %v354 = vrot.slane %v340, %v353
        %v355 = vcombine.high %v347, %v347
        %v356 = vcombine.high %v354, %v354
        %v358 = vunpack.c.l.s4 1966171168
        %v359 = vunpack.c.0.s8 %v358
        %v360 = vlaneseq
        %v361 = vshrl.u32 %v360, 7
        %v362 = vsub.s32 %v359, %v361
        %v363 = vrot.slane %v347, %v362
        %v365 = vunpack.c.l.s4 1966171168
        %v366 = vunpack.c.0.s8 %v365
        %v367 = vlaneseq
        %v368 = vshrl.u32 %v367, 7
        %v369 = vsub.s32 %v366, %v368
        %v370 = vrot.slane %v354, %v369
        %v372 = vunpack.c.l.s4 1966171168
        %v373 = vunpack.c.0.s8 %v372
        %v374 = vlaneseq
        %v375 = vshrl.u32 %v374, 7
        %v376 = vsub.s32 %v373, %v375
        %v377 = vrot.slane %v355, %v376
        %v379 = vunpack.c.l.s4 1966171168
        %v380 = vunpack.c.0.s8 %v379
        %v381 = vlaneseq
        %v382 = vshrl.u32 %v381, 7
        %v383 = vsub.s32 %v380, %v382
        %v384 = vrot.slane %v356, %v383
        %v385 = vcombine.high %v363, %v363
        %v386 = vcombine.high %v370, %v370
        %v387 = vcombine.high %v377, %v377
        %v388 = vcombine.high %v384, %v384
        %v389 = vlaneseq
        %v390 = vshrl.u32 %v389, 7
        %v391 = vsub.s32 0, %v390
        %v392 = vrot.slane %v363, %v391
        %v393 = vlaneseq
        %v394 = vshrl.u32 %v393, 7
        %v395 = vsub.s32 0, %v394
        %v396 = vrot.slane %v377, %v395
        %v397 = vlaneseq
        %v398 = vshrl.u32 %v397, 7
        %v399 = vsub.s32 0, %v398
        %v400 = vrot.slane %v385, %v399
        %v401 = vlaneseq
        %v402 = vshrl.u32 %v401, 7
        %v403 = vsub.s32 0, %v402
        %v404 = vrot.slane %v387, %v403
        %v405 = vlaneseq
        %v406 = vshrl.u32 %v405, 7
        %v407 = vsub.s32 0, %v406
        %v408 = vrot.slane %v370, %v407
        %v409 = vlaneseq
        %v410 = vshrl.u32 %v409, 7
        %v411 = vsub.s32 0, %v410
        %v412 = vrot.slane %v384, %v411
        %v413 = vlaneseq
        %v414 = vshrl.u32 %v413, 7
        %v415 = vsub.s32 0, %v414
        %v416 = vrot.slane %v386, %v415
        %v417 = vlaneseq
        %v418 = vshrl.u32 %v417, 7
        %v419 = vsub.s32 0, %v418
        %v420 = vrot.slane %v388, %v419
        %421 = vrot.lane.b32.xlu0 %v392, 113
        %v422 = vpop.permute.xlu0 %421
        %423 = vrot.lane.b32.xlu0 %v396, 113
        %v424 = vpop.permute.xlu0 %423
        %425 = vrot.lane.b32.xlu0 %v400, 113
        %v426 = vpop.permute.xlu0 %425
        %427 = vrot.lane.b32.xlu0 %v404, 113
        %v428 = vpop.permute.xlu0 %427
        %429 = vrot.lane.b32.xlu0 %v408, 113
        %v430 = vpop.permute.xlu0 %429
        %431 = vrot.lane.b32.xlu0 %v412, 113
        %v432 = vpop.permute.xlu0 %431
        %433 = vrot.lane.b32.xlu0 %v416, 113
        %v434 = vpop.permute.xlu0 %433
        %435 = vrot.lane.b32.xlu0 %v420, 113
        %v436 = vpop.permute.xlu0 %435
        %445 = vst.msk [vmem:[#allocation2 + $0x2] sm:$0x1] %vm329, %v422
        %446 = vst.msk [vmem:[#allocation2 + $0x1a] sm:$0x1] %vm329, %v424
        %447 = vst.msk [vmem:[#allocation2 + $0x32] sm:$0x1] %vm329, %v426
        %448 = vst.msk [vmem:[#allocation2 + $0x4a] sm:$0x1] %vm329, %v428
        %449 = vst.msk [vmem:[#allocation2 + $0x62] sm:$0x1] %vm329, %v430
        %450 = vst.msk [vmem:[#allocation2 + $0x7a] sm:$0x1] %vm329, %v432
        %451 = vst.msk [vmem:[#allocation2 + $0x92] sm:$0x1] %vm329, %v434
        %452 = vst.msk [vmem:[#allocation2 + $0xaa] sm:$0x1] %vm329, %v436
        %v453 = vld [vmem:[%s195] sm:$0xff]
        %v455 = vcombine.high %v453, %v453
        %v457 = vunpack.c.l.s4 1966171168
        %v458 = vunpack.c.0.s8 %v457
        %v459 = vlaneseq
        %v460 = vshrl.u32 %v459, 7
        %v461 = vsub.s32 %v458, %v460
        %v462 = vrot.slane %v453, %v461
        %v464 = vunpack.c.l.s4 1966171168
        %v465 = vunpack.c.0.s8 %v464
        %v466 = vlaneseq
        %v467 = vshrl.u32 %v466, 7
        %v468 = vsub.s32 %v465, %v467
        %v469 = vrot.slane %v455, %v468
        %v470 = vcombine.high %v462, %v462
        %v471 = vcombine.high %v469, %v469
        %v473 = vunpack.c.l.s4 1966171168
        %v474 = vunpack.c.0.s8 %v473
        %v475 = vlaneseq
        %v476 = vshrl.u32 %v475, 7
        %v477 = vsub.s32 %v474, %v476
        %v478 = vrot.slane %v462, %v477
        %v480 = vunpack.c.l.s4 1966171168
        %v481 = vunpack.c.0.s8 %v480
        %v482 = vlaneseq
        %v483 = vshrl.u32 %v482, 7
        %v484 = vsub.s32 %v481, %v483
        %v485 = vrot.slane %v469, %v484
        %v487 = vunpack.c.l.s4 1966171168
        %v488 = vunpack.c.0.s8 %v487
        %v489 = vlaneseq
        %v490 = vshrl.u32 %v489, 7
        %v491 = vsub.s32 %v488, %v490
        %v492 = vrot.slane %v470, %v491
        %v494 = vunpack.c.l.s4 1966171168
        %v495 = vunpack.c.0.s8 %v494
        %v496 = vlaneseq
        %v497 = vshrl.u32 %v496, 7
        %v498 = vsub.s32 %v495, %v497
        %v499 = vrot.slane %v471, %v498
        %v500 = vcombine.high %v478, %v478
        %v501 = vcombine.high %v485, %v485
        %v502 = vcombine.high %v492, %v492
        %v503 = vcombine.high %v499, %v499
        %v504 = vlaneseq
        %v505 = vshrl.u32 %v504, 7
        %v506 = vsub.s32 0, %v505
        %v507 = vrot.slane %v478, %v506
        %v508 = vlaneseq
        %v509 = vshrl.u32 %v508, 7
        %v510 = vsub.s32 0, %v509
        %v511 = vrot.slane %v492, %v510
        %v512 = vlaneseq
        %v513 = vshrl.u32 %v512, 7
        %v514 = vsub.s32 0, %v513
        %v515 = vrot.slane %v500, %v514
        %v516 = vlaneseq
        %v517 = vshrl.u32 %v516, 7
        %v518 = vsub.s32 0, %v517
        %v519 = vrot.slane %v502, %v518
        %v520 = vlaneseq
        %v521 = vshrl.u32 %v520, 7
        %v522 = vsub.s32 0, %v521
        %v523 = vrot.slane %v485, %v522
        %v524 = vlaneseq
        %v525 = vshrl.u32 %v524, 7
        %v526 = vsub.s32 0, %v525
        %v527 = vrot.slane %v499, %v526
        %v528 = vlaneseq
        %v529 = vshrl.u32 %v528, 7
        %v530 = vsub.s32 0, %v529
        %v531 = vrot.slane %v501, %v530
        %v532 = vlaneseq
        %v533 = vshrl.u32 %v532, 7
        %v534 = vsub.s32 0, %v533
        %v535 = vrot.slane %v503, %v534
        %536 = vrot.lane.b32.xlu0 %v507, 97
        %v537 = vpop.permute.xlu0 %536
        %538 = vrot.lane.b32.xlu0 %v511, 97
        %v539 = vpop.permute.xlu0 %538
        %540 = vrot.lane.b32.xlu0 %v515, 97
        %v541 = vpop.permute.xlu0 %540
        %542 = vrot.lane.b32.xlu0 %v519, 97
        %v543 = vpop.permute.xlu0 %542
        %544 = vrot.lane.b32.xlu0 %v523, 97
        %v545 = vpop.permute.xlu0 %544
        %546 = vrot.lane.b32.xlu0 %v527, 97
        %v547 = vpop.permute.xlu0 %546
        %548 = vrot.lane.b32.xlu0 %v531, 97
        %v549 = vpop.permute.xlu0 %548
        %550 = vrot.lane.b32.xlu0 %v535, 97
        %v551 = vpop.permute.xlu0 %550
        %560 = vst.msk [vmem:[#allocation2 + $0x3] sm:$0x1] %vm329, %v537
        %561 = vst.msk [vmem:[#allocation2 + $0x1b] sm:$0x1] %vm329, %v539
        %562 = vst.msk [vmem:[#allocation2 + $0x33] sm:$0x1] %vm329, %v541
        %563 = vst.msk [vmem:[#allocation2 + $0x4b] sm:$0x1] %vm329, %v543
        %564 = vst.msk [vmem:[#allocation2 + $0x63] sm:$0x1] %vm329, %v545
        %565 = vst.msk [vmem:[#allocation2 + $0x7b] sm:$0x1] %vm329, %v547
        %566 = vst.msk [vmem:[#allocation2 + $0x93] sm:$0x1] %vm329, %v549
        %567 = vst.msk [vmem:[#allocation2 + $0xab] sm:$0x1] %vm329, %v551
        %v568 = vld [vmem:[%s195] sm:$0xff]
        %v570 = vcombine.high %v568, %v568
        %v572 = vunpack.c.l.s4 1966171168
        %v573 = vunpack.c.0.s8 %v572
        %v574 = vlaneseq
        %v575 = vshrl.u32 %v574, 7
        %v576 = vsub.s32 %v573, %v575
        %v577 = vrot.slane %v568, %v576
        %v579 = vunpack.c.l.s4 1966171168
        %v580 = vunpack.c.0.s8 %v579
        %v581 = vlaneseq
        %v582 = vshrl.u32 %v581, 7
        %v583 = vsub.s32 %v580, %v582
        %v584 = vrot.slane %v570, %v583
        %v585 = vcombine.high %v577, %v577
        %v586 = vcombine.high %v584, %v584
        %v588 = vunpack.c.l.s4 1966171168
        %v589 = vunpack.c.0.s8 %v588
        %v590 = vlaneseq
        %v591 = vshrl.u32 %v590, 7
        %v592 = vsub.s32 %v589, %v591
        %v593 = vrot.slane %v577, %v592
        %v595 = vunpack.c.l.s4 1966171168
        %v596 = vunpack.c.0.s8 %v595
        %v597 = vlaneseq
        %v598 = vshrl.u32 %v597, 7
        %v599 = vsub.s32 %v596, %v598
        %v600 = vrot.slane %v584, %v599
        %v602 = vunpack.c.l.s4 1966171168
        %v603 = vunpack.c.0.s8 %v602
        %v604 = vlaneseq
        %v605 = vshrl.u32 %v604, 7
        %v606 = vsub.s32 %v603, %v605
        %v607 = vrot.slane %v585, %v606
        %v609 = vunpack.c.l.s4 1966171168
        %v610 = vunpack.c.0.s8 %v609
        %v611 = vlaneseq
        %v612 = vshrl.u32 %v611, 7
        %v613 = vsub.s32 %v610, %v612
        %v614 = vrot.slane %v586, %v613
        %v615 = vcombine.high %v593, %v593
        %v616 = vcombine.high %v600, %v600
        %v617 = vcombine.high %v607, %v607
        %v618 = vcombine.high %v614, %v614
        %v619 = vlaneseq
        %v620 = vshrl.u32 %v619, 7
        %v621 = vsub.s32 0, %v620
        %v622 = vrot.slane %v593, %v621
        %v623 = vlaneseq
        %v624 = vshrl.u32 %v623, 7
        %v625 = vsub.s32 0, %v624
        %v626 = vrot.slane %v607, %v625
        %v627 = vlaneseq
        %v628 = vshrl.u32 %v627, 7
        %v629 = vsub.s32 0, %v628
        %v630 = vrot.slane %v615, %v629
        %v631 = vlaneseq
        %v632 = vshrl.u32 %v631, 7
        %v633 = vsub.s32 0, %v632
        %v634 = vrot.slane %v617, %v633
        %v635 = vlaneseq
        %v636 = vshrl.u32 %v635, 7
        %v637 = vsub.s32 0, %v636
        %v638 = vrot.slane %v600, %v637
        %v639 = vlaneseq
        %v640 = vshrl.u32 %v639, 7
        %v641 = vsub.s32 0, %v640
        %v642 = vrot.slane %v614, %v641
        %v643 = vlaneseq
        %v644 = vshrl.u32 %v643, 7
        %v645 = vsub.s32 0, %v644
        %v646 = vrot.slane %v616, %v645
        %v647 = vlaneseq
        %v648 = vshrl.u32 %v647, 7
        %v649 = vsub.s32 0, %v648
        %v650 = vrot.slane %v618, %v649
        %651 = vrot.lane.b32.xlu0 %v622, 81
        %v652 = vpop.permute.xlu0 %651
        %653 = vrot.lane.b32.xlu0 %v626, 81
        %v654 = vpop.permute.xlu0 %653
        %655 = vrot.lane.b32.xlu0 %v630, 81
        %v656 = vpop.permute.xlu0 %655
        %657 = vrot.lane.b32.xlu0 %v634, 81
        %v658 = vpop.permute.xlu0 %657
        %659 = vrot.lane.b32.xlu0 %v638, 81
        %v660 = vpop.permute.xlu0 %659
        %661 = vrot.lane.b32.xlu0 %v642, 81
        %v662 = vpop.permute.xlu0 %661
        %663 = vrot.lane.b32.xlu0 %v646, 81
        %v664 = vpop.permute.xlu0 %663
        %665 = vrot.lane.b32.xlu0 %v650, 81
        %v666 = vpop.permute.xlu0 %665
        %675 = vst.msk [vmem:[#allocation2 + $0x4] sm:$0x1] %vm329, %v652
        %676 = vst.msk [vmem:[#allocation2 + $0x1c] sm:$0x1] %vm329, %v654
        %677 = vst.msk [vmem:[#allocation2 + $0x34] sm:$0x1] %vm329, %v656
        %678 = vst.msk [vmem:[#allocation2 + $0x4c] sm:$0x1] %vm329, %v658
        %679 = vst.msk [vmem:[#allocation2 + $0x64] sm:$0x1] %vm329, %v660
        %680 = vst.msk [vmem:[#allocation2 + $0x7c] sm:$0x1] %vm329, %v662
        %681 = vst.msk [vmem:[#allocation2 + $0x94] sm:$0x1] %vm329, %v664
        %682 = vst.msk [vmem:[#allocation2 + $0xac] sm:$0x1] %vm329, %v666
        %v683 = vld [vmem:[%s195] sm:$0xff]
        %v685 = vcombine.high %v683, %v683
        %v687 = vunpack.c.l.s4 1966171168
        %v688 = vunpack.c.0.s8 %v687
        %v689 = vlaneseq
        %v690 = vshrl.u32 %v689, 7
        %v691 = vsub.s32 %v688, %v690
        %v692 = vrot.slane %v683, %v691
        %v694 = vunpack.c.l.s4 1966171168
        %v695 = vunpack.c.0.s8 %v694
        %v696 = vlaneseq
        %v697 = vshrl.u32 %v696, 7
        %v698 = vsub.s32 %v695, %v697
        %v699 = vrot.slane %v685, %v698
        %v700 = vcombine.high %v692, %v692
        %v701 = vcombine.high %v699, %v699
        %v703 = vunpack.c.l.s4 1966171168
        %v704 = vunpack.c.0.s8 %v703
        %v705 = vlaneseq
        %v706 = vshrl.u32 %v705, 7
        %v707 = vsub.s32 %v704, %v706
        %v708 = vrot.slane %v692, %v707
        %v710 = vunpack.c.l.s4 1966171168
        %v711 = vunpack.c.0.s8 %v710
        %v712 = vlaneseq
        %v713 = vshrl.u32 %v712, 7
        %v714 = vsub.s32 %v711, %v713
        %v715 = vrot.slane %v699, %v714
        %v717 = vunpack.c.l.s4 1966171168
        %v718 = vunpack.c.0.s8 %v717
        %v719 = vlaneseq
        %v720 = vshrl.u32 %v719, 7
        %v721 = vsub.s32 %v718, %v720
        %v722 = vrot.slane %v700, %v721
        %v724 = vunpack.c.l.s4 1966171168
        %v725 = vunpack.c.0.s8 %v724
        %v726 = vlaneseq
        %v727 = vshrl.u32 %v726, 7
        %v728 = vsub.s32 %v725, %v727
        %v729 = vrot.slane %v701, %v728
        %v730 = vcombine.high %v708, %v708
        %v731 = vcombine.high %v715, %v715
        %v732 = vcombine.high %v722, %v722
        %v733 = vcombine.high %v729, %v729
        %v734 = vlaneseq
        %v735 = vshrl.u32 %v734, 7
        %v736 = vsub.s32 0, %v735
        %v737 = vrot.slane %v708, %v736
        %v738 = vlaneseq
        %v739 = vshrl.u32 %v738, 7
        %v740 = vsub.s32 0, %v739
        %v741 = vrot.slane %v722, %v740
        %v742 = vlaneseq
        %v743 = vshrl.u32 %v742, 7
        %v744 = vsub.s32 0, %v743
        %v745 = vrot.slane %v730, %v744
        %v746 = vlaneseq
        %v747 = vshrl.u32 %v746, 7
        %v748 = vsub.s32 0, %v747
        %v749 = vrot.slane %v732, %v748
        %v750 = vlaneseq
        %v751 = vshrl.u32 %v750, 7
        %v752 = vsub.s32 0, %v751
        %v753 = vrot.slane %v715, %v752
        %v754 = vlaneseq
        %v755 = vshrl.u32 %v754, 7
        %v756 = vsub.s32 0, %v755
        %v757 = vrot.slane %v729, %v756
        %v758 = vlaneseq
        %v759 = vshrl.u32 %v758, 7
        %v760 = vsub.s32 0, %v759
        %v761 = vrot.slane %v731, %v760
        %v762 = vlaneseq
        %v763 = vshrl.u32 %v762, 7
        %v764 = vsub.s32 0, %v763
        %v765 = vrot.slane %v733, %v764
        %766 = vrot.lane.b32.xlu0 %v737, 65
        %v767 = vpop.permute.xlu0 %766
        %768 = vrot.lane.b32.xlu0 %v741, 65
        %v769 = vpop.permute.xlu0 %768
        %770 = vrot.lane.b32.xlu0 %v745, 65
        %v771 = vpop.permute.xlu0 %770
        %772 = vrot.lane.b32.xlu0 %v749, 65
        %v773 = vpop.permute.xlu0 %772
        %774 = vrot.lane.b32.xlu0 %v753, 65
        %v775 = vpop.permute.xlu0 %774
        %776 = vrot.lane.b32.xlu0 %v757, 65
        %v777 = vpop.permute.xlu0 %776
        %778 = vrot.lane.b32.xlu0 %v761, 65
        %v779 = vpop.permute.xlu0 %778
        %780 = vrot.lane.b32.xlu0 %v765, 65
        %v781 = vpop.permute.xlu0 %780
        %790 = vst.msk [vmem:[#allocation2 + $0x5] sm:$0x1] %vm329, %v767
        %791 = vst.msk [vmem:[#allocation2 + $0x1d] sm:$0x1] %vm329, %v769
        %792 = vst.msk [vmem:[#allocation2 + $0x35] sm:$0x1] %vm329, %v771
        %793 = vst.msk [vmem:[#allocation2 + $0x4d] sm:$0x1] %vm329, %v773
        %794 = vst.msk [vmem:[#allocation2 + $0x65] sm:$0x1] %vm329, %v775
        %795 = vst.msk [vmem:[#allocation2 + $0x7d] sm:$0x1] %vm329, %v777
        %796 = vst.msk [vmem:[#allocation2 + $0x95] sm:$0x1] %vm329, %v779
        %797 = vst.msk [vmem:[#allocation2 + $0xad] sm:$0x1] %vm329, %v781
        %v798 = vld [vmem:[%s195] sm:$0xff]
        %v800 = vcombine.high %v798, %v798
        %v802 = vunpack.c.l.s4 1966171168
        %v803 = vunpack.c.0.s8 %v802
        %v804 = vlaneseq
        %v805 = vshrl.u32 %v804, 7
        %v806 = vsub.s32 %v803, %v805
        %v807 = vrot.slane %v798, %v806
        %v809 = vunpack.c.l.s4 1966171168
        %v810 = vunpack.c.0.s8 %v809
        %v811 = vlaneseq
        %v812 = vshrl.u32 %v811, 7
        %v813 = vsub.s32 %v810, %v812
        %v814 = vrot.slane %v800, %v813
        %v815 = vcombine.high %v807, %v807
        %v816 = vcombine.high %v814, %v814
        %v818 = vunpack.c.l.s4 1966171168
        %v819 = vunpack.c.0.s8 %v818
        %v820 = vlaneseq
        %v821 = vshrl.u32 %v820, 7
        %v822 = vsub.s32 %v819, %v821
        %v823 = vrot.slane %v807, %v822
        %v825 = vunpack.c.l.s4 1966171168
        %v826 = vunpack.c.0.s8 %v825
        %v827 = vlaneseq
        %v828 = vshrl.u32 %v827, 7
        %v829 = vsub.s32 %v826, %v828
        %v830 = vrot.slane %v814, %v829
        %v832 = vunpack.c.l.s4 1966171168
        %v833 = vunpack.c.0.s8 %v832
        %v834 = vlaneseq
        %v835 = vshrl.u32 %v834, 7
        %v836 = vsub.s32 %v833, %v835
        %v837 = vrot.slane %v815, %v836
        %v839 = vunpack.c.l.s4 1966171168
        %v840 = vunpack.c.0.s8 %v839
        %v841 = vlaneseq
        %v842 = vshrl.u32 %v841, 7
        %v843 = vsub.s32 %v840, %v842
        %v844 = vrot.slane %v816, %v843
        %v845 = vcombine.high %v823, %v823
        %v846 = vcombine.high %v830, %v830
        %v847 = vcombine.high %v837, %v837
        %v848 = vcombine.high %v844, %v844
        %v849 = vlaneseq
        %v850 = vshrl.u32 %v849, 7
        %v851 = vsub.s32 0, %v850
        %v852 = vrot.slane %v823, %v851
        %v853 = vlaneseq
        %v854 = vshrl.u32 %v853, 7
        %v855 = vsub.s32 0, %v854
        %v856 = vrot.slane %v837, %v855
        %v857 = vlaneseq
        %v858 = vshrl.u32 %v857, 7
        %v859 = vsub.s32 0, %v858
        %v860 = vrot.slane %v845, %v859
        %v861 = vlaneseq
        %v862 = vshrl.u32 %v861, 7
        %v863 = vsub.s32 0, %v862
        %v864 = vrot.slane %v847, %v863
        %v865 = vlaneseq
        %v866 = vshrl.u32 %v865, 7
        %v867 = vsub.s32 0, %v866
        %v868 = vrot.slane %v830, %v867
        %v869 = vlaneseq
        %v870 = vshrl.u32 %v869, 7
        %v871 = vsub.s32 0, %v870
        %v872 = vrot.slane %v844, %v871
        %v873 = vlaneseq
        %v874 = vshrl.u32 %v873, 7
        %v875 = vsub.s32 0, %v874
        %v876 = vrot.slane %v846, %v875
        %v877 = vlaneseq
        %v878 = vshrl.u32 %v877, 7
        %v879 = vsub.s32 0, %v878
        %v880 = vrot.slane %v848, %v879
        %881 = vrot.lane.b32.xlu0 %v852, 49
        %v882 = vpop.permute.xlu0 %881
        %883 = vrot.lane.b32.xlu0 %v856, 49
        %v884 = vpop.permute.xlu0 %883
        %885 = vrot.lane.b32.xlu0 %v860, 49
        %v886 = vpop.permute.xlu0 %885
        %887 = vrot.lane.b32.xlu0 %v864, 49
        %v888 = vpop.permute.xlu0 %887
        %889 = vrot.lane.b32.xlu0 %v868, 49
        %v890 = vpop.permute.xlu0 %889
        %891 = vrot.lane.b32.xlu0 %v872, 49
        %v892 = vpop.permute.xlu0 %891
        %893 = vrot.lane.b32.xlu0 %v876, 49
        %v894 = vpop.permute.xlu0 %893
        %895 = vrot.lane.b32.xlu0 %v880, 49
        %v896 = vpop.permute.xlu0 %895
        %905 = vst.msk [vmem:[#allocation2 + $0x6] sm:$0x1] %vm329, %v882
        %906 = vst.msk [vmem:[#allocation2 + $0x1e] sm:$0x1] %vm329, %v884
        %907 = vst.msk [vmem:[#allocation2 + $0x36] sm:$0x1] %vm329, %v886
        %908 = vst.msk [vmem:[#allocation2 + $0x4e] sm:$0x1] %vm329, %v888
        %909 = vst.msk [vmem:[#allocation2 + $0x66] sm:$0x1] %vm329, %v890
        %910 = vst.msk [vmem:[#allocation2 + $0x7e] sm:$0x1] %vm329, %v892
        %911 = vst.msk [vmem:[#allocation2 + $0x96] sm:$0x1] %vm329, %v894
        %912 = vst.msk [vmem:[#allocation2 + $0xae] sm:$0x1] %vm329, %v896
        %v913 = vld [vmem:[%s195] sm:$0xff]
        %v915 = vcombine.high %v913, %v913
        %v917 = vunpack.c.l.s4 1966171168
        %v918 = vunpack.c.0.s8 %v917
        %v919 = vlaneseq
        %v920 = vshrl.u32 %v919, 7
        %v921 = vsub.s32 %v918, %v920
        %v922 = vrot.slane %v913, %v921
        %v924 = vunpack.c.l.s4 1966171168
        %v925 = vunpack.c.0.s8 %v924
        %v926 = vlaneseq
        %v927 = vshrl.u32 %v926, 7
        %v928 = vsub.s32 %v925, %v927
        %v929 = vrot.slane %v915, %v928
        %v930 = vcombine.high %v922, %v922
        %v931 = vcombine.high %v929, %v929
        %v933 = vunpack.c.l.s4 1966171168
        %v934 = vunpack.c.0.s8 %v933
        %v935 = vlaneseq
        %v936 = vshrl.u32 %v935, 7
        %v937 = vsub.s32 %v934, %v936
        %v938 = vrot.slane %v922, %v937
        %v940 = vunpack.c.l.s4 1966171168
        %v941 = vunpack.c.0.s8 %v940
        %v942 = vlaneseq
        %v943 = vshrl.u32 %v942, 7
        %v944 = vsub.s32 %v941, %v943
        %v945 = vrot.slane %v929, %v944
        %v947 = vunpack.c.l.s4 1966171168
        %v948 = vunpack.c.0.s8 %v947
        %v949 = vlaneseq
        %v950 = vshrl.u32 %v949, 7
        %v951 = vsub.s32 %v948, %v950
        %v952 = vrot.slane %v930, %v951
        %v954 = vunpack.c.l.s4 1966171168
        %v955 = vunpack.c.0.s8 %v954
        %v956 = vlaneseq
        %v957 = vshrl.u32 %v956, 7
        %v958 = vsub.s32 %v955, %v957
        %v959 = vrot.slane %v931, %v958
        %v960 = vcombine.high %v938, %v938
        %v961 = vcombine.high %v945, %v945
        %v962 = vcombine.high %v952, %v952
        %v963 = vcombine.high %v959, %v959
        %v964 = vlaneseq
        %v965 = vshrl.u32 %v964, 7
        %v966 = vsub.s32 0, %v965
        %v967 = vrot.slane %v938, %v966
        %v968 = vlaneseq
        %v969 = vshrl.u32 %v968, 7
        %v970 = vsub.s32 0, %v969
        %v971 = vrot.slane %v952, %v970
        %v972 = vlaneseq
        %v973 = vshrl.u32 %v972, 7
        %v974 = vsub.s32 0, %v973
        %v975 = vrot.slane %v960, %v974
        %v976 = vlaneseq
        %v977 = vshrl.u32 %v976, 7
        %v978 = vsub.s32 0, %v977
        %v979 = vrot.slane %v962, %v978
        %v980 = vlaneseq
        %v981 = vshrl.u32 %v980, 7
        %v982 = vsub.s32 0, %v981
        %v983 = vrot.slane %v945, %v982
        %v984 = vlaneseq
        %v985 = vshrl.u32 %v984, 7
        %v986 = vsub.s32 0, %v985
        %v987 = vrot.slane %v959, %v986
        %v988 = vlaneseq
        %v989 = vshrl.u32 %v988, 7
        %v990 = vsub.s32 0, %v989
        %v991 = vrot.slane %v961, %v990
        %v992 = vlaneseq
        %v993 = vshrl.u32 %v992, 7
        %v994 = vsub.s32 0, %v993
        %v995 = vrot.slane %v963, %v994
        %996 = vrot.lane.b32.xlu0 %v967, 33
        %v997 = vpop.permute.xlu0 %996
        %998 = vrot.lane.b32.xlu0 %v971, 33
        %v999 = vpop.permute.xlu0 %998
        %1000 = vrot.lane.b32.xlu0 %v975, 33
        %v1001 = vpop.permute.xlu0 %1000
        %1002 = vrot.lane.b32.xlu0 %v979, 33
        %v1003 = vpop.permute.xlu0 %1002
        %1004 = vrot.lane.b32.xlu0 %v983, 33
        %v1005 = vpop.permute.xlu0 %1004
        %1006 = vrot.lane.b32.xlu0 %v987, 33
        %v1007 = vpop.permute.xlu0 %1006
        %1008 = vrot.lane.b32.xlu0 %v991, 33
        %v1009 = vpop.permute.xlu0 %1008
        %1010 = vrot.lane.b32.xlu0 %v995, 33
        %v1011 = vpop.permute.xlu0 %1010
        %1020 = vst.msk [vmem:[#allocation2 + $0x7] sm:$0x1] %vm329, %v997
        %1021 = vst.msk [vmem:[#allocation2 + $0x1f] sm:$0x1] %vm329, %v999
        %1022 = vst.msk [vmem:[#allocation2 + $0x37] sm:$0x1] %vm329, %v1001
        %1023 = vst.msk [vmem:[#allocation2 + $0x4f] sm:$0x1] %vm329, %v1003
        %1024 = vst.msk [vmem:[#allocation2 + $0x67] sm:$0x1] %vm329, %v1005
        %1025 = vst.msk [vmem:[#allocation2 + $0x7f] sm:$0x1] %vm329, %v1007
        %1026 = vst.msk [vmem:[#allocation2 + $0x97] sm:$0x1] %vm329, %v1009
        %1027 = vst.msk [vmem:[#allocation2 + $0xaf] sm:$0x1] %vm329, %v1011
        %v1028 = vld [vmem:[%s195] sm:$0xff]
        %v1030 = vcombine.high %v1028, %v1028
        %v1032 = vunpack.c.l.s4 1966171168
        %v1033 = vunpack.c.0.s8 %v1032
        %v1034 = vlaneseq
        %v1035 = vshrl.u32 %v1034, 7
        %v1036 = vsub.s32 %v1033, %v1035
        %v1037 = vrot.slane %v1028, %v1036
        %v1039 = vunpack.c.l.s4 1966171168
        %v1040 = vunpack.c.0.s8 %v1039
        %v1041 = vlaneseq
        %v1042 = vshrl.u32 %v1041, 7
        %v1043 = vsub.s32 %v1040, %v1042
        %v1044 = vrot.slane %v1030, %v1043
        %v1045 = vcombine.high %v1037, %v1037
        %v1046 = vcombine.high %v1044, %v1044
        %v1048 = vunpack.c.l.s4 1966171168
        %v1049 = vunpack.c.0.s8 %v1048
        %v1050 = vlaneseq
        %v1051 = vshrl.u32 %v1050, 7
        %v1052 = vsub.s32 %v1049, %v1051
        %v1053 = vrot.slane %v1037, %v1052
        %v1055 = vunpack.c.l.s4 1966171168
        %v1056 = vunpack.c.0.s8 %v1055
        %v1057 = vlaneseq
        %v1058 = vshrl.u32 %v1057, 7
        %v1059 = vsub.s32 %v1056, %v1058
        %v1060 = vrot.slane %v1044, %v1059
        %v1062 = vunpack.c.l.s4 1966171168
        %v1063 = vunpack.c.0.s8 %v1062
        %v1064 = vlaneseq
        %v1065 = vshrl.u32 %v1064, 7
        %v1066 = vsub.s32 %v1063, %v1065
        %v1067 = vrot.slane %v1045, %v1066
        %v1069 = vunpack.c.l.s4 1966171168
        %v1070 = vunpack.c.0.s8 %v1069
        %v1071 = vlaneseq
        %v1072 = vshrl.u32 %v1071, 7
        %v1073 = vsub.s32 %v1070, %v1072
        %v1074 = vrot.slane %v1046, %v1073
        %v1075 = vcombine.high %v1053, %v1053
        %v1076 = vcombine.high %v1060, %v1060
        %v1077 = vcombine.high %v1067, %v1067
        %v1078 = vcombine.high %v1074, %v1074
        %v1079 = vlaneseq
        %v1080 = vshrl.u32 %v1079, 7
        %v1081 = vsub.s32 0, %v1080
        %v1082 = vrot.slane %v1053, %v1081
        %v1083 = vlaneseq
        %v1084 = vshrl.u32 %v1083, 7
        %v1085 = vsub.s32 0, %v1084
        %v1086 = vrot.slane %v1067, %v1085
        %v1087 = vlaneseq
        %v1088 = vshrl.u32 %v1087, 7
        %v1089 = vsub.s32 0, %v1088
        %v1090 = vrot.slane %v1075, %v1089
        %v1091 = vlaneseq
        %v1092 = vshrl.u32 %v1091, 7
        %v1093 = vsub.s32 0, %v1092
        %v1094 = vrot.slane %v1077, %v1093
        %v1095 = vlaneseq
        %v1096 = vshrl.u32 %v1095, 7
        %v1097 = vsub.s32 0, %v1096
        %v1098 = vrot.slane %v1060, %v1097
        %v1099 = vlaneseq
        %v1100 = vshrl.u32 %v1099, 7
        %v1101 = vsub.s32 0, %v1100
        %v1102 = vrot.slane %v1074, %v1101
        %v1103 = vlaneseq
        %v1104 = vshrl.u32 %v1103, 7
        %v1105 = vsub.s32 0, %v1104
        %v1106 = vrot.slane %v1076, %v1105
        %v1107 = vlaneseq
        %v1108 = vshrl.u32 %v1107, 7
        %v1109 = vsub.s32 0, %v1108
        %v1110 = vrot.slane %v1078, %v1109
        %1111 = vrot.lane.b32.xlu0 %v1082, 17
        %v1112 = vpop.permute.xlu0 %1111
        %1113 = vrot.lane.b32.xlu0 %v1086, 17
        %v1114 = vpop.permute.xlu0 %1113
        %1115 = vrot.lane.b32.xlu0 %v1090, 17
        %v1116 = vpop.permute.xlu0 %1115
        %1117 = vrot.lane.b32.xlu0 %v1094, 17
        %v1118 = vpop.permute.xlu0 %1117
        %1119 = vrot.lane.b32.xlu0 %v1098, 17
        %v1120 = vpop.permute.xlu0 %1119
        %1121 = vrot.lane.b32.xlu0 %v1102, 17
        %v1122 = vpop.permute.xlu0 %1121
        %1123 = vrot.lane.b32.xlu0 %v1106, 17
        %v1124 = vpop.permute.xlu0 %1123
        %1125 = vrot.lane.b32.xlu0 %v1110, 17
        %v1126 = vpop.permute.xlu0 %1125
        %1135 = vst.msk [vmem:[#allocation2 + $0x8] sm:$0x1] %vm329, %v1112
        %1136 = vst.msk [vmem:[#allocation2 + $0x20] sm:$0x1] %vm329, %v1114
        %1137 = vst.msk [vmem:[#allocation2 + $0x38] sm:$0x1] %vm329, %v1116
        %1138 = vst.msk [vmem:[#allocation2 + $0x50] sm:$0x1] %vm329, %v1118
        %1139 = vst.msk [vmem:[#allocation2 + $0x68] sm:$0x1] %vm329, %v1120
        %1140 = vst.msk [vmem:[#allocation2 + $0x80] sm:$0x1] %vm329, %v1122
        %1141 = vst.msk [vmem:[#allocation2 + $0x98] sm:$0x1] %vm329, %v1124
        %1142 = vst.msk [vmem:[#allocation2 + $0xb0] sm:$0x1] %vm329, %v1126
        %v1143 = vld [vmem:[%s195 + $0x8] sm:$0xff]
        %v1145 = vcombine.high %v1143, %v1143
        %v1147 = vunpack.c.l.s4 1966171168
        %v1148 = vunpack.c.0.s8 %v1147
        %v1149 = vlaneseq
        %v1150 = vshrl.u32 %v1149, 7
        %v1151 = vsub.s32 %v1148, %v1150
        %v1152 = vrot.slane %v1143, %v1151
        %v1154 = vunpack.c.l.s4 1966171168
        %v1155 = vunpack.c.0.s8 %v1154
        %v1156 = vlaneseq
        %v1157 = vshrl.u32 %v1156, 7
        %v1158 = vsub.s32 %v1155, %v1157
        %v1159 = vrot.slane %v1145, %v1158
        %v1160 = vcombine.high %v1152, %v1152
        %v1161 = vcombine.high %v1159, %v1159
        %v1163 = vunpack.c.l.s4 1966171168
        %v1164 = vunpack.c.0.s8 %v1163
        %v1165 = vlaneseq
        %v1166 = vshrl.u32 %v1165, 7
        %v1167 = vsub.s32 %v1164, %v1166
        %v1168 = vrot.slane %v1152, %v1167
        %v1170 = vunpack.c.l.s4 1966171168
        %v1171 = vunpack.c.0.s8 %v1170
        %v1172 = vlaneseq
        %v1173 = vshrl.u32 %v1172, 7
        %v1174 = vsub.s32 %v1171, %v1173
        %v1175 = vrot.slane %v1159, %v1174
        %v1177 = vunpack.c.l.s4 1966171168
        %v1178 = vunpack.c.0.s8 %v1177
        %v1179 = vlaneseq
        %v1180 = vshrl.u32 %v1179, 7
        %v1181 = vsub.s32 %v1178, %v1180
        %v1182 = vrot.slane %v1160, %v1181
        %v1184 = vunpack.c.l.s4 1966171168
        %v1185 = vunpack.c.0.s8 %v1184
        %v1186 = vlaneseq
        %v1187 = vshrl.u32 %v1186, 7
        %v1188 = vsub.s32 %v1185, %v1187
        %v1189 = vrot.slane %v1161, %v1188
        %v1190 = vcombine.high %v1168, %v1168
        %v1191 = vcombine.high %v1175, %v1175
        %v1192 = vcombine.high %v1182, %v1182
        %v1193 = vcombine.high %v1189, %v1189
        %v1194 = vlaneseq
        %v1195 = vshrl.u32 %v1194, 7
        %v1196 = vsub.s32 0, %v1195
        %v1197 = vrot.slane %v1168, %v1196
        %v1198 = vlaneseq
        %v1199 = vshrl.u32 %v1198, 7
        %v1200 = vsub.s32 0, %v1199
        %v1201 = vrot.slane %v1182, %v1200
        %v1202 = vlaneseq
        %v1203 = vshrl.u32 %v1202, 7
        %v1204 = vsub.s32 0, %v1203
        %v1205 = vrot.slane %v1190, %v1204
        %v1206 = vlaneseq
        %v1207 = vshrl.u32 %v1206, 7
        %v1208 = vsub.s32 0, %v1207
        %v1209 = vrot.slane %v1192, %v1208
        %v1210 = vlaneseq
        %v1211 = vshrl.u32 %v1210, 7
        %v1212 = vsub.s32 0, %v1211
        %v1213 = vrot.slane %v1175, %v1212
        %v1214 = vlaneseq
        %v1215 = vshrl.u32 %v1214, 7
        %v1216 = vsub.s32 0, %v1215
        %v1217 = vrot.slane %v1189, %v1216
        %v1218 = vlaneseq
        %v1219 = vshrl.u32 %v1218, 7
        %v1220 = vsub.s32 0, %v1219
        %v1221 = vrot.slane %v1191, %v1220
        %v1222 = vlaneseq
        %v1223 = vshrl.u32 %v1222, 7
        %v1224 = vsub.s32 0, %v1223
        %v1225 = vrot.slane %v1193, %v1224
        %1226 = vrot.lane.b32.xlu0 %v1197, 1
        %v1227 = vpop.permute.xlu0 %1226
        %1228 = vrot.lane.b32.xlu0 %v1201, 1
        %v1229 = vpop.permute.xlu0 %1228
        %1230 = vrot.lane.b32.xlu0 %v1205, 1
        %v1231 = vpop.permute.xlu0 %1230
        %1232 = vrot.lane.b32.xlu0 %v1209, 1
        %v1233 = vpop.permute.xlu0 %1232
        %1234 = vrot.lane.b32.xlu0 %v1213, 1
        %v1235 = vpop.permute.xlu0 %1234
        %1236 = vrot.lane.b32.xlu0 %v1217, 1
        %v1237 = vpop.permute.xlu0 %1236
        %1238 = vrot.lane.b32.xlu0 %v1221, 1
        %v1239 = vpop.permute.xlu0 %1238
        %1240 = vrot.lane.b32.xlu0 %v1225, 1
        %v1241 = vpop.permute.xlu0 %1240
        %1250 = vst.msk [vmem:[#allocation2 + $0x9] sm:$0x1] %vm329, %v1227
        %1251 = vst.msk [vmem:[#allocation2 + $0x21] sm:$0x1] %vm329, %v1229
        %1252 = vst.msk [vmem:[#allocation2 + $0x39] sm:$0x1] %vm329, %v1231
        %1253 = vst.msk [vmem:[#allocation2 + $0x51] sm:$0x1] %vm329, %v1233
        %1254 = vst.msk [vmem:[#allocation2 + $0x69] sm:$0x1] %vm329, %v1235
        %1255 = vst.msk [vmem:[#allocation2 + $0x81] sm:$0x1] %vm329, %v1237
        %1256 = vst.msk [vmem:[#allocation2 + $0x99] sm:$0x1] %vm329, %v1239
        %1257 = vst.msk [vmem:[#allocation2 + $0xb1] sm:$0x1] %vm329, %v1241
        %v1258 = vld [vmem:[%s195 + $0x8] sm:$0xff]
        %v1260 = vcombine.high %v1258, %v1258
        %v1262 = vunpack.c.l.s4 1966171168
        %v1263 = vunpack.c.0.s8 %v1262
        %v1264 = vlaneseq
        %v1265 = vshrl.u32 %v1264, 7
        %v1266 = vsub.s32 %v1263, %v1265
        %v1267 = vrot.slane %v1258, %v1266
        %v1269 = vunpack.c.l.s4 1966171168
        %v1270 = vunpack.c.0.s8 %v1269
        %v1271 = vlaneseq
        %v1272 = vshrl.u32 %v1271, 7
        %v1273 = vsub.s32 %v1270, %v1272
        %v1274 = vrot.slane %v1260, %v1273
        %v1275 = vcombine.high %v1267, %v1267
        %v1276 = vcombine.high %v1274, %v1274
        %v1278 = vunpack.c.l.s4 1966171168
        %v1279 = vunpack.c.0.s8 %v1278
        %v1280 = vlaneseq
        %v1281 = vshrl.u32 %v1280, 7
        %v1282 = vsub.s32 %v1279, %v1281
        %v1283 = vrot.slane %v1267, %v1282
        %v1285 = vunpack.c.l.s4 1966171168
        %v1286 = vunpack.c.0.s8 %v1285
        %v1287 = vlaneseq
        %v1288 = vshrl.u32 %v1287, 7
        %v1289 = vsub.s32 %v1286, %v1288
        %v1290 = vrot.slane %v1274, %v1289
        %v1292 = vunpack.c.l.s4 1966171168
        %v1293 = vunpack.c.0.s8 %v1292
        %v1294 = vlaneseq
        %v1295 = vshrl.u32 %v1294, 7
        %v1296 = vsub.s32 %v1293, %v1295
        %v1297 = vrot.slane %v1275, %v1296
        %v1299 = vunpack.c.l.s4 1966171168
        %v1300 = vunpack.c.0.s8 %v1299
        %v1301 = vlaneseq
        %v1302 = vshrl.u32 %v1301, 7
        %v1303 = vsub.s32 %v1300, %v1302
        %v1304 = vrot.slane %v1276, %v1303
        %v1305 = vcombine.high %v1283, %v1283
        %v1306 = vcombine.high %v1290, %v1290
        %v1307 = vcombine.high %v1297, %v1297
        %v1308 = vcombine.high %v1304, %v1304
        %v1309 = vlaneseq
        %v1310 = vshrl.u32 %v1309, 7
        %v1311 = vsub.s32 0, %v1310
        %v1312 = vrot.slane %v1283, %v1311
        %v1313 = vlaneseq
        %v1314 = vshrl.u32 %v1313, 7
        %v1315 = vsub.s32 0, %v1314
        %v1316 = vrot.slane %v1297, %v1315
        %v1317 = vlaneseq
        %v1318 = vshrl.u32 %v1317, 7
        %v1319 = vsub.s32 0, %v1318
        %v1320 = vrot.slane %v1305, %v1319
        %v1321 = vlaneseq
        %v1322 = vshrl.u32 %v1321, 7
        %v1323 = vsub.s32 0, %v1322
        %v1324 = vrot.slane %v1307, %v1323
        %v1325 = vlaneseq
        %v1326 = vshrl.u32 %v1325, 7
        %v1327 = vsub.s32 0, %v1326
        %v1328 = vrot.slane %v1290, %v1327
        %v1329 = vlaneseq
        %v1330 = vshrl.u32 %v1329, 7
        %v1331 = vsub.s32 0, %v1330
        %v1332 = vrot.slane %v1304, %v1331
        %v1333 = vlaneseq
        %v1334 = vshrl.u32 %v1333, 7
        %v1335 = vsub.s32 0, %v1334
        %v1336 = vrot.slane %v1306, %v1335
        %v1337 = vlaneseq
        %v1338 = vshrl.u32 %v1337, 7
        %v1339 = vsub.s32 0, %v1338
        %v1340 = vrot.slane %v1308, %v1339
        %1341 = vrot.lane.b32.xlu0 %v1312, 113
        %v1342 = vpop.permute.xlu0 %1341
        %1343 = vrot.lane.b32.xlu0 %v1316, 113
        %v1344 = vpop.permute.xlu0 %1343
        %1345 = vrot.lane.b32.xlu0 %v1320, 113
        %v1346 = vpop.permute.xlu0 %1345
        %1347 = vrot.lane.b32.xlu0 %v1324, 113
        %v1348 = vpop.permute.xlu0 %1347
        %1349 = vrot.lane.b32.xlu0 %v1328, 113
        %v1350 = vpop.permute.xlu0 %1349
        %1351 = vrot.lane.b32.xlu0 %v1332, 113
        %v1352 = vpop.permute.xlu0 %1351
        %1353 = vrot.lane.b32.xlu0 %v1336, 113
        %v1354 = vpop.permute.xlu0 %1353
        %1355 = vrot.lane.b32.xlu0 %v1340, 113
        %v1356 = vpop.permute.xlu0 %1355
        %1365 = vst.msk [vmem:[#allocation2 + $0xa] sm:$0x1] %vm329, %v1342
        %1366 = vst.msk [vmem:[#allocation2 + $0x22] sm:$0x1] %vm329, %v1344
        %1367 = vst.msk [vmem:[#allocation2 + $0x3a] sm:$0x1] %vm329, %v1346
        %1368 = vst.msk [vmem:[#allocation2 + $0x52] sm:$0x1] %vm329, %v1348
        %1369 = vst.msk [vmem:[#allocation2 + $0x6a] sm:$0x1] %vm329, %v1350
        %1370 = vst.msk [vmem:[#allocation2 + $0x82] sm:$0x1] %vm329, %v1352
        %1371 = vst.msk [vmem:[#allocation2 + $0x9a] sm:$0x1] %vm329, %v1354
        %1372 = vst.msk [vmem:[#allocation2 + $0xb2] sm:$0x1] %vm329, %v1356
        %v1373 = vld [vmem:[%s195 + $0x8] sm:$0xff]
        %v1375 = vcombine.high %v1373, %v1373
        %v1377 = vunpack.c.l.s4 1966171168
        %v1378 = vunpack.c.0.s8 %v1377
        %v1379 = vlaneseq
        %v1380 = vshrl.u32 %v1379, 7
        %v1381 = vsub.s32 %v1378, %v1380
        %v1382 = vrot.slane %v1373, %v1381
        %v1384 = vunpack.c.l.s4 1966171168
        %v1385 = vunpack.c.0.s8 %v1384
        %v1386 = vlaneseq
        %v1387 = vshrl.u32 %v1386, 7
        %v1388 = vsub.s32 %v1385, %v1387
        %v1389 = vrot.slane %v1375, %v1388
        %v1390 = vcombine.high %v1382, %v1382
        %v1391 = vcombine.high %v1389, %v1389
        %v1393 = vunpack.c.l.s4 1966171168
        %v1394 = vunpack.c.0.s8 %v1393
        %v1395 = vlaneseq
        %v1396 = vshrl.u32 %v1395, 7
        %v1397 = vsub.s32 %v1394, %v1396
        %v1398 = vrot.slane %v1382, %v1397
        %v1400 = vunpack.c.l.s4 1966171168
        %v1401 = vunpack.c.0.s8 %v1400
        %v1402 = vlaneseq
        %v1403 = vshrl.u32 %v1402, 7
        %v1404 = vsub.s32 %v1401, %v1403
        %v1405 = vrot.slane %v1389, %v1404
        %v1407 = vunpack.c.l.s4 1966171168
        %v1408 = vunpack.c.0.s8 %v1407
        %v1409 = vlaneseq
        %v1410 = vshrl.u32 %v1409, 7
        %v1411 = vsub.s32 %v1408, %v1410
        %v1412 = vrot.slane %v1390, %v1411
        %v1414 = vunpack.c.l.s4 1966171168
        %v1415 = vunpack.c.0.s8 %v1414
        %v1416 = vlaneseq
        %v1417 = vshrl.u32 %v1416, 7
        %v1418 = vsub.s32 %v1415, %v1417
        %v1419 = vrot.slane %v1391, %v1418
        %v1420 = vcombine.high %v1398, %v1398
        %v1421 = vcombine.high %v1405, %v1405
        %v1422 = vcombine.high %v1412, %v1412
        %v1423 = vcombine.high %v1419, %v1419
        %v1424 = vlaneseq
        %v1425 = vshrl.u32 %v1424, 7
        %v1426 = vsub.s32 0, %v1425
        %v1427 = vrot.slane %v1398, %v1426
        %v1428 = vlaneseq
        %v1429 = vshrl.u32 %v1428, 7
        %v1430 = vsub.s32 0, %v1429
        %v1431 = vrot.slane %v1412, %v1430
        %v1432 = vlaneseq
        %v1433 = vshrl.u32 %v1432, 7
        %v1434 = vsub.s32 0, %v1433
        %v1435 = vrot.slane %v1420, %v1434
        %v1436 = vlaneseq
        %v1437 = vshrl.u32 %v1436, 7
        %v1438 = vsub.s32 0, %v1437
        %v1439 = vrot.slane %v1422, %v1438
        %v1440 = vlaneseq
        %v1441 = vshrl.u32 %v1440, 7
        %v1442 = vsub.s32 0, %v1441
        %v1443 = vrot.slane %v1405, %v1442
        %v1444 = vlaneseq
        %v1445 = vshrl.u32 %v1444, 7
        %v1446 = vsub.s32 0, %v1445
        %v1447 = vrot.slane %v1419, %v1446
        %v1448 = vlaneseq
        %v1449 = vshrl.u32 %v1448, 7
        %v1450 = vsub.s32 0, %v1449
        %v1451 = vrot.slane %v1421, %v1450
        %v1452 = vlaneseq
        %v1453 = vshrl.u32 %v1452, 7
        %v1454 = vsub.s32 0, %v1453
        %v1455 = vrot.slane %v1423, %v1454
        %1456 = vrot.lane.b32.xlu0 %v1427, 97
        %v1457 = vpop.permute.xlu0 %1456
        %1458 = vrot.lane.b32.xlu0 %v1431, 97
        %v1459 = vpop.permute.xlu0 %1458
        %1460 = vrot.lane.b32.xlu0 %v1435, 97
        %v1461 = vpop.permute.xlu0 %1460
        %1462 = vrot.lane.b32.xlu0 %v1439, 97
        %v1463 = vpop.permute.xlu0 %1462
        %1464 = vrot.lane.b32.xlu0 %v1443, 97
        %v1465 = vpop.permute.xlu0 %1464
        %1466 = vrot.lane.b32.xlu0 %v1447, 97
        %v1467 = vpop.permute.xlu0 %1466
        %1468 = vrot.lane.b32.xlu0 %v1451, 97
        %v1469 = vpop.permute.xlu0 %1468
        %1470 = vrot.lane.b32.xlu0 %v1455, 97
        %v1471 = vpop.permute.xlu0 %1470
        %1480 = vst.msk [vmem:[#allocation2 + $0xb] sm:$0x1] %vm329, %v1457
        %1481 = vst.msk [vmem:[#allocation2 + $0x23] sm:$0x1] %vm329, %v1459
        %1482 = vst.msk [vmem:[#allocation2 + $0x3b] sm:$0x1] %vm329, %v1461
        %1483 = vst.msk [vmem:[#allocation2 + $0x53] sm:$0x1] %vm329, %v1463
        %1484 = vst.msk [vmem:[#allocation2 + $0x6b] sm:$0x1] %vm329, %v1465
        %1485 = vst.msk [vmem:[#allocation2 + $0x83] sm:$0x1] %vm329, %v1467
        %1486 = vst.msk [vmem:[#allocation2 + $0x9b] sm:$0x1] %vm329, %v1469
        %1487 = vst.msk [vmem:[#allocation2 + $0xb3] sm:$0x1] %vm329, %v1471
        %v1488 = vld [vmem:[%s195 + $0x8] sm:$0xff]
        %v1490 = vcombine.high %v1488, %v1488
        %v1492 = vunpack.c.l.s4 1966171168
        %v1493 = vunpack.c.0.s8 %v1492
        %v1494 = vlaneseq
        %v1495 = vshrl.u32 %v1494, 7
        %v1496 = vsub.s32 %v1493, %v1495
        %v1497 = vrot.slane %v1488, %v1496
        %v1499 = vunpack.c.l.s4 1966171168
        %v1500 = vunpack.c.0.s8 %v1499
        %v1501 = vlaneseq
        %v1502 = vshrl.u32 %v1501, 7
        %v1503 = vsub.s32 %v1500, %v1502
        %v1504 = vrot.slane %v1490, %v1503
        %v1505 = vcombine.high %v1497, %v1497
        %v1506 = vcombine.high %v1504, %v1504
        %v1508 = vunpack.c.l.s4 1966171168
        %v1509 = vunpack.c.0.s8 %v1508
        %v1510 = vlaneseq
        %v1511 = vshrl.u32 %v1510, 7
        %v1512 = vsub.s32 %v1509, %v1511
        %v1513 = vrot.slane %v1497, %v1512
        %v1515 = vunpack.c.l.s4 1966171168
        %v1516 = vunpack.c.0.s8 %v1515
        %v1517 = vlaneseq
        %v1518 = vshrl.u32 %v1517, 7
        %v1519 = vsub.s32 %v1516, %v1518
        %v1520 = vrot.slane %v1504, %v1519
        %v1522 = vunpack.c.l.s4 1966171168
        %v1523 = vunpack.c.0.s8 %v1522
        %v1524 = vlaneseq
        %v1525 = vshrl.u32 %v1524, 7
        %v1526 = vsub.s32 %v1523, %v1525
        %v1527 = vrot.slane %v1505, %v1526
        %v1529 = vunpack.c.l.s4 1966171168
        %v1530 = vunpack.c.0.s8 %v1529
        %v1531 = vlaneseq
        %v1532 = vshrl.u32 %v1531, 7
        %v1533 = vsub.s32 %v1530, %v1532
        %v1534 = vrot.slane %v1506, %v1533
        %v1535 = vcombine.high %v1513, %v1513
        %v1536 = vcombine.high %v1520, %v1520
        %v1537 = vcombine.high %v1527, %v1527
        %v1538 = vcombine.high %v1534, %v1534
        %v1539 = vlaneseq
        %v1540 = vshrl.u32 %v1539, 7
        %v1541 = vsub.s32 0, %v1540
        %v1542 = vrot.slane %v1513, %v1541
        %v1543 = vlaneseq
        %v1544 = vshrl.u32 %v1543, 7
        %v1545 = vsub.s32 0, %v1544
        %v1546 = vrot.slane %v1527, %v1545
        %v1547 = vlaneseq
        %v1548 = vshrl.u32 %v1547, 7
        %v1549 = vsub.s32 0, %v1548
        %v1550 = vrot.slane %v1535, %v1549
        %v1551 = vlaneseq
        %v1552 = vshrl.u32 %v1551, 7
        %v1553 = vsub.s32 0, %v1552
        %v1554 = vrot.slane %v1537, %v1553
        %v1555 = vlaneseq
        %v1556 = vshrl.u32 %v1555, 7
        %v1557 = vsub.s32 0, %v1556
        %v1558 = vrot.slane %v1520, %v1557
        %v1559 = vlaneseq
        %v1560 = vshrl.u32 %v1559, 7
        %v1561 = vsub.s32 0, %v1560
        %v1562 = vrot.slane %v1534, %v1561
        %v1563 = vlaneseq
        %v1564 = vshrl.u32 %v1563, 7
        %v1565 = vsub.s32 0, %v1564
        %v1566 = vrot.slane %v1536, %v1565
        %v1567 = vlaneseq
        %v1568 = vshrl.u32 %v1567, 7
        %v1569 = vsub.s32 0, %v1568
        %v1570 = vrot.slane %v1538, %v1569
        %1571 = vrot.lane.b32.xlu0 %v1542, 81
        %v1572 = vpop.permute.xlu0 %1571
        %1573 = vrot.lane.b32.xlu0 %v1546, 81
        %v1574 = vpop.permute.xlu0 %1573
        %1575 = vrot.lane.b32.xlu0 %v1550, 81
        %v1576 = vpop.permute.xlu0 %1575
        %1577 = vrot.lane.b32.xlu0 %v1554, 81
        %v1578 = vpop.permute.xlu0 %1577
        %1579 = vrot.lane.b32.xlu0 %v1558, 81
        %v1580 = vpop.permute.xlu0 %1579
        %1581 = vrot.lane.b32.xlu0 %v1562, 81
        %v1582 = vpop.permute.xlu0 %1581
        %1583 = vrot.lane.b32.xlu0 %v1566, 81
        %v1584 = vpop.permute.xlu0 %1583
        %1585 = vrot.lane.b32.xlu0 %v1570, 81
        %v1586 = vpop.permute.xlu0 %1585
        %1595 = vst.msk [vmem:[#allocation2 + $0xc] sm:$0x1] %vm329, %v1572
        %1596 = vst.msk [vmem:[#allocation2 + $0x24] sm:$0x1] %vm329, %v1574
        %1597 = vst.msk [vmem:[#allocation2 + $0x3c] sm:$0x1] %vm329, %v1576
        %1598 = vst.msk [vmem:[#allocation2 + $0x54] sm:$0x1] %vm329, %v1578
        %1599 = vst.msk [vmem:[#allocation2 + $0x6c] sm:$0x1] %vm329, %v1580
        %1600 = vst.msk [vmem:[#allocation2 + $0x84] sm:$0x1] %vm329, %v1582
        %1601 = vst.msk [vmem:[#allocation2 + $0x9c] sm:$0x1] %vm329, %v1584
        %1602 = vst.msk [vmem:[#allocation2 + $0xb4] sm:$0x1] %vm329, %v1586
        %v1603 = vld [vmem:[%s195 + $0x8] sm:$0xff]
        %v1605 = vcombine.high %v1603, %v1603
        %v1607 = vunpack.c.l.s4 1966171168
        %v1608 = vunpack.c.0.s8 %v1607
        %v1609 = vlaneseq
        %v1610 = vshrl.u32 %v1609, 7
        %v1611 = vsub.s32 %v1608, %v1610
        %v1612 = vrot.slane %v1603, %v1611
        %v1614 = vunpack.c.l.s4 1966171168
        %v1615 = vunpack.c.0.s8 %v1614
        %v1616 = vlaneseq
        %v1617 = vshrl.u32 %v1616, 7
        %v1618 = vsub.s32 %v1615, %v1617
        %v1619 = vrot.slane %v1605, %v1618
        %v1620 = vcombine.high %v1612, %v1612
        %v1621 = vcombine.high %v1619, %v1619
        %v1623 = vunpack.c.l.s4 1966171168
        %v1624 = vunpack.c.0.s8 %v1623
        %v1625 = vlaneseq
        %v1626 = vshrl.u32 %v1625, 7
        %v1627 = vsub.s32 %v1624, %v1626
        %v1628 = vrot.slane %v1612, %v1627
        %v1630 = vunpack.c.l.s4 1966171168
        %v1631 = vunpack.c.0.s8 %v1630
        %v1632 = vlaneseq
        %v1633 = vshrl.u32 %v1632, 7
        %v1634 = vsub.s32 %v1631, %v1633
        %v1635 = vrot.slane %v1619, %v1634
        %v1637 = vunpack.c.l.s4 1966171168
        %v1638 = vunpack.c.0.s8 %v1637
        %v1639 = vlaneseq
        %v1640 = vshrl.u32 %v1639, 7
        %v1641 = vsub.s32 %v1638, %v1640
        %v1642 = vrot.slane %v1620, %v1641
        %v1644 = vunpack.c.l.s4 1966171168
        %v1645 = vunpack.c.0.s8 %v1644
        %v1646 = vlaneseq
        %v1647 = vshrl.u32 %v1646, 7
        %v1648 = vsub.s32 %v1645, %v1647
        %v1649 = vrot.slane %v1621, %v1648
        %v1650 = vcombine.high %v1628, %v1628
        %v1651 = vcombine.high %v1635, %v1635
        %v1652 = vcombine.high %v1642, %v1642
        %v1653 = vcombine.high %v1649, %v1649
        %v1654 = vlaneseq
        %v1655 = vshrl.u32 %v1654, 7
        %v1656 = vsub.s32 0, %v1655
        %v1657 = vrot.slane %v1628, %v1656
        %v1658 = vlaneseq
        %v1659 = vshrl.u32 %v1658, 7
        %v1660 = vsub.s32 0, %v1659
        %v1661 = vrot.slane %v1642, %v1660
        %v1662 = vlaneseq
        %v1663 = vshrl.u32 %v1662, 7
        %v1664 = vsub.s32 0, %v1663
        %v1665 = vrot.slane %v1650, %v1664
        %v1666 = vlaneseq
        %v1667 = vshrl.u32 %v1666, 7
        %v1668 = vsub.s32 0, %v1667
        %v1669 = vrot.slane %v1652, %v1668
        %v1670 = vlaneseq
        %v1671 = vshrl.u32 %v1670, 7
        %v1672 = vsub.s32 0, %v1671
        %v1673 = vrot.slane %v1635, %v1672
        %v1674 = vlaneseq
        %v1675 = vshrl.u32 %v1674, 7
        %v1676 = vsub.s32 0, %v1675
        %v1677 = vrot.slane %v1649, %v1676
        %v1678 = vlaneseq
        %v1679 = vshrl.u32 %v1678, 7
        %v1680 = vsub.s32 0, %v1679
        %v1681 = vrot.slane %v1651, %v1680
        %v1682 = vlaneseq
        %v1683 = vshrl.u32 %v1682, 7
        %v1684 = vsub.s32 0, %v1683
        %v1685 = vrot.slane %v1653, %v1684
        %1686 = vrot.lane.b32.xlu0 %v1657, 65
        %v1687 = vpop.permute.xlu0 %1686
        %1688 = vrot.lane.b32.xlu0 %v1661, 65
        %v1689 = vpop.permute.xlu0 %1688
        %1690 = vrot.lane.b32.xlu0 %v1665, 65
        %v1691 = vpop.permute.xlu0 %1690
        %1692 = vrot.lane.b32.xlu0 %v1669, 65
        %v1693 = vpop.permute.xlu0 %1692
        %1694 = vrot.lane.b32.xlu0 %v1673, 65
        %v1695 = vpop.permute.xlu0 %1694
        %1696 = vrot.lane.b32.xlu0 %v1677, 65
        %v1697 = vpop.permute.xlu0 %1696
        %1698 = vrot.lane.b32.xlu0 %v1681, 65
        %v1699 = vpop.permute.xlu0 %1698
        %1700 = vrot.lane.b32.xlu0 %v1685, 65
        %v1701 = vpop.permute.xlu0 %1700
        %1710 = vst.msk [vmem:[#allocation2 + $0xd] sm:$0x1] %vm329, %v1687
        %1711 = vst.msk [vmem:[#allocation2 + $0x25] sm:$0x1] %vm329, %v1689
        %1712 = vst.msk [vmem:[#allocation2 + $0x3d] sm:$0x1] %vm329, %v1691
        %1713 = vst.msk [vmem:[#allocation2 + $0x55] sm:$0x1] %vm329, %v1693
        %1714 = vst.msk [vmem:[#allocation2 + $0x6d] sm:$0x1] %vm329, %v1695
        %1715 = vst.msk [vmem:[#allocation2 + $0x85] sm:$0x1] %vm329, %v1697
        %1716 = vst.msk [vmem:[#allocation2 + $0x9d] sm:$0x1] %vm329, %v1699
        %1717 = vst.msk [vmem:[#allocation2 + $0xb5] sm:$0x1] %vm329, %v1701
        %v1718 = vld [vmem:[%s195 + $0x8] sm:$0xff]
        %v1720 = vcombine.high %v1718, %v1718
        %v1722 = vunpack.c.l.s4 1966171168
        %v1723 = vunpack.c.0.s8 %v1722
        %v1724 = vlaneseq
        %v1725 = vshrl.u32 %v1724, 7
        %v1726 = vsub.s32 %v1723, %v1725
        %v1727 = vrot.slane %v1718, %v1726
        %v1729 = vunpack.c.l.s4 1966171168
        %v1730 = vunpack.c.0.s8 %v1729
        %v1731 = vlaneseq
        %v1732 = vshrl.u32 %v1731, 7
        %v1733 = vsub.s32 %v1730, %v1732
        %v1734 = vrot.slane %v1720, %v1733
        %v1735 = vcombine.high %v1727, %v1727
        %v1736 = vcombine.high %v1734, %v1734
        %v1738 = vunpack.c.l.s4 1966171168
        %v1739 = vunpack.c.0.s8 %v1738
        %v1740 = vlaneseq
        %v1741 = vshrl.u32 %v1740, 7
        %v1742 = vsub.s32 %v1739, %v1741
        %v1743 = vrot.slane %v1727, %v1742
        %v1745 = vunpack.c.l.s4 1966171168
        %v1746 = vunpack.c.0.s8 %v1745
        %v1747 = vlaneseq
        %v1748 = vshrl.u32 %v1747, 7
        %v1749 = vsub.s32 %v1746, %v1748
        %v1750 = vrot.slane %v1734, %v1749
        %v1752 = vunpack.c.l.s4 1966171168
        %v1753 = vunpack.c.0.s8 %v1752
        %v1754 = vlaneseq
        %v1755 = vshrl.u32 %v1754, 7
        %v1756 = vsub.s32 %v1753, %v1755
        %v1757 = vrot.slane %v1735, %v1756
        %v1759 = vunpack.c.l.s4 1966171168
        %v1760 = vunpack.c.0.s8 %v1759
        %v1761 = vlaneseq
        %v1762 = vshrl.u32 %v1761, 7
        %v1763 = vsub.s32 %v1760, %v1762
        %v1764 = vrot.slane %v1736, %v1763
        %v1765 = vcombine.high %v1743, %v1743
        %v1766 = vcombine.high %v1750, %v1750
        %v1767 = vcombine.high %v1757, %v1757
        %v1768 = vcombine.high %v1764, %v1764
        %v1769 = vlaneseq
        %v1770 = vshrl.u32 %v1769, 7
        %v1771 = vsub.s32 0, %v1770
        %v1772 = vrot.slane %v1743, %v1771
        %v1773 = vlaneseq
        %v1774 = vshrl.u32 %v1773, 7
        %v1775 = vsub.s32 0, %v1774
        %v1776 = vrot.slane %v1757, %v1775
        %v1777 = vlaneseq
        %v1778 = vshrl.u32 %v1777, 7
        %v1779 = vsub.s32 0, %v1778
        %v1780 = vrot.slane %v1765, %v1779
        %v1781 = vlaneseq
        %v1782 = vshrl.u32 %v1781, 7
        %v1783 = vsub.s32 0, %v1782
        %v1784 = vrot.slane %v1767, %v1783
        %v1785 = vlaneseq
        %v1786 = vshrl.u32 %v1785, 7
        %v1787 = vsub.s32 0, %v1786
        %v1788 = vrot.slane %v1750, %v1787
        %v1789 = vlaneseq
        %v1790 = vshrl.u32 %v1789, 7
        %v1791 = vsub.s32 0, %v1790
        %v1792 = vrot.slane %v1764, %v1791
        %v1793 = vlaneseq
        %v1794 = vshrl.u32 %v1793, 7
        %v1795 = vsub.s32 0, %v1794
        %v1796 = vrot.slane %v1766, %v1795
        %v1797 = vlaneseq
        %v1798 = vshrl.u32 %v1797, 7
        %v1799 = vsub.s32 0, %v1798
        %v1800 = vrot.slane %v1768, %v1799
        %1801 = vrot.lane.b32.xlu0 %v1772, 49
        %v1802 = vpop.permute.xlu0 %1801
        %1803 = vrot.lane.b32.xlu0 %v1776, 49
        %v1804 = vpop.permute.xlu0 %1803
        %1805 = vrot.lane.b32.xlu0 %v1780, 49
        %v1806 = vpop.permute.xlu0 %1805
        %1807 = vrot.lane.b32.xlu0 %v1784, 49
        %v1808 = vpop.permute.xlu0 %1807
        %1809 = vrot.lane.b32.xlu0 %v1788, 49
        %v1810 = vpop.permute.xlu0 %1809
        %1811 = vrot.lane.b32.xlu0 %v1792, 49
        %v1812 = vpop.permute.xlu0 %1811
        %1813 = vrot.lane.b32.xlu0 %v1796, 49
        %v1814 = vpop.permute.xlu0 %1813
        %1815 = vrot.lane.b32.xlu0 %v1800, 49
        %v1816 = vpop.permute.xlu0 %1815
        %1825 = vst.msk [vmem:[#allocation2 + $0xe] sm:$0x1] %vm329, %v1802
        %1826 = vst.msk [vmem:[#allocation2 + $0x26] sm:$0x1] %vm329, %v1804
        %1827 = vst.msk [vmem:[#allocation2 + $0x3e] sm:$0x1] %vm329, %v1806
        %1828 = vst.msk [vmem:[#allocation2 + $0x56] sm:$0x1] %vm329, %v1808
        %1829 = vst.msk [vmem:[#allocation2 + $0x6e] sm:$0x1] %vm329, %v1810
        %1830 = vst.msk [vmem:[#allocation2 + $0x86] sm:$0x1] %vm329, %v1812
        %1831 = vst.msk [vmem:[#allocation2 + $0x9e] sm:$0x1] %vm329, %v1814
        %1832 = vst.msk [vmem:[#allocation2 + $0xb6] sm:$0x1] %vm329, %v1816
        %v1833 = vld [vmem:[%s195 + $0x8] sm:$0xff]
        %v1835 = vcombine.high %v1833, %v1833
        %v1837 = vunpack.c.l.s4 1966171168
        %v1838 = vunpack.c.0.s8 %v1837
        %v1839 = vlaneseq
        %v1840 = vshrl.u32 %v1839, 7
        %v1841 = vsub.s32 %v1838, %v1840
        %v1842 = vrot.slane %v1833, %v1841
        %v1844 = vunpack.c.l.s4 1966171168
        %v1845 = vunpack.c.0.s8 %v1844
        %v1846 = vlaneseq
        %v1847 = vshrl.u32 %v1846, 7
        %v1848 = vsub.s32 %v1845, %v1847
        %v1849 = vrot.slane %v1835, %v1848
        %v1850 = vcombine.high %v1842, %v1842
        %v1851 = vcombine.high %v1849, %v1849
        %v1853 = vunpack.c.l.s4 1966171168
        %v1854 = vunpack.c.0.s8 %v1853
        %v1855 = vlaneseq
        %v1856 = vshrl.u32 %v1855, 7
        %v1857 = vsub.s32 %v1854, %v1856
        %v1858 = vrot.slane %v1842, %v1857
        %v1860 = vunpack.c.l.s4 1966171168
        %v1861 = vunpack.c.0.s8 %v1860
        %v1862 = vlaneseq
        %v1863 = vshrl.u32 %v1862, 7
        %v1864 = vsub.s32 %v1861, %v1863
        %v1865 = vrot.slane %v1849, %v1864
        %v1867 = vunpack.c.l.s4 1966171168
        %v1868 = vunpack.c.0.s8 %v1867
        %v1869 = vlaneseq
        %v1870 = vshrl.u32 %v1869, 7
        %v1871 = vsub.s32 %v1868, %v1870
        %v1872 = vrot.slane %v1850, %v1871
        %v1874 = vunpack.c.l.s4 1966171168
        %v1875 = vunpack.c.0.s8 %v1874
        %v1876 = vlaneseq
        %v1877 = vshrl.u32 %v1876, 7
        %v1878 = vsub.s32 %v1875, %v1877
        %v1879 = vrot.slane %v1851, %v1878
        %v1880 = vcombine.high %v1858, %v1858
        %v1881 = vcombine.high %v1865, %v1865
        %v1882 = vcombine.high %v1872, %v1872
        %v1883 = vcombine.high %v1879, %v1879
        %v1884 = vlaneseq
        %v1885 = vshrl.u32 %v1884, 7
        %v1886 = vsub.s32 0, %v1885
        %v1887 = vrot.slane %v1858, %v1886
        %v1888 = vlaneseq
        %v1889 = vshrl.u32 %v1888, 7
        %v1890 = vsub.s32 0, %v1889
        %v1891 = vrot.slane %v1872, %v1890
        %v1892 = vlaneseq
        %v1893 = vshrl.u32 %v1892, 7
        %v1894 = vsub.s32 0, %v1893
        %v1895 = vrot.slane %v1880, %v1894
        %v1896 = vlaneseq
        %v1897 = vshrl.u32 %v1896, 7
        %v1898 = vsub.s32 0, %v1897
        %v1899 = vrot.slane %v1882, %v1898
        %v1900 = vlaneseq
        %v1901 = vshrl.u32 %v1900, 7
        %v1902 = vsub.s32 0, %v1901
        %v1903 = vrot.slane %v1865, %v1902
        %v1904 = vlaneseq
        %v1905 = vshrl.u32 %v1904, 7
        %v1906 = vsub.s32 0, %v1905
        %v1907 = vrot.slane %v1879, %v1906
        %v1908 = vlaneseq
        %v1909 = vshrl.u32 %v1908, 7
        %v1910 = vsub.s32 0, %v1909
        %v1911 = vrot.slane %v1881, %v1910
        %v1912 = vlaneseq
        %v1913 = vshrl.u32 %v1912, 7
        %v1914 = vsub.s32 0, %v1913
        %v1915 = vrot.slane %v1883, %v1914
        %1916 = vrot.lane.b32.xlu0 %v1887, 33
        %v1917 = vpop.permute.xlu0 %1916
        %1918 = vrot.lane.b32.xlu0 %v1891, 33
        %v1919 = vpop.permute.xlu0 %1918
        %1920 = vrot.lane.b32.xlu0 %v1895, 33
        %v1921 = vpop.permute.xlu0 %1920
        %1922 = vrot.lane.b32.xlu0 %v1899, 33
        %v1923 = vpop.permute.xlu0 %1922
        %1924 = vrot.lane.b32.xlu0 %v1903, 33
        %v1925 = vpop.permute.xlu0 %1924
        %1926 = vrot.lane.b32.xlu0 %v1907, 33
        %v1927 = vpop.permute.xlu0 %1926
        %1928 = vrot.lane.b32.xlu0 %v1911, 33
        %v1929 = vpop.permute.xlu0 %1928
        %1930 = vrot.lane.b32.xlu0 %v1915, 33
        %v1931 = vpop.permute.xlu0 %1930
        %1940 = vst.msk [vmem:[#allocation2 + $0xf] sm:$0x1] %vm329, %v1917
        %1941 = vst.msk [vmem:[#allocation2 + $0x27] sm:$0x1] %vm329, %v1919
        %1942 = vst.msk [vmem:[#allocation2 + $0x3f] sm:$0x1] %vm329, %v1921
        %1943 = vst.msk [vmem:[#allocation2 + $0x57] sm:$0x1] %vm329, %v1923
        %1944 = vst.msk [vmem:[#allocation2 + $0x6f] sm:$0x1] %vm329, %v1925
        %1945 = vst.msk [vmem:[#allocation2 + $0x87] sm:$0x1] %vm329, %v1927
        %1946 = vst.msk [vmem:[#allocation2 + $0x9f] sm:$0x1] %vm329, %v1929
        %1947 = vst.msk [vmem:[#allocation2 + $0xb7] sm:$0x1] %vm329, %v1931
        %v1948 = vld [vmem:[%s195 + $0x8] sm:$0xff]
        %v1950 = vcombine.high %v1948, %v1948
        %v1952 = vunpack.c.l.s4 1966171168
        %v1953 = vunpack.c.0.s8 %v1952
        %v1954 = vlaneseq
        %v1955 = vshrl.u32 %v1954, 7
        %v1956 = vsub.s32 %v1953, %v1955
        %v1957 = vrot.slane %v1948, %v1956
        %v1959 = vunpack.c.l.s4 1966171168
        %v1960 = vunpack.c.0.s8 %v1959
        %v1961 = vlaneseq
        %v1962 = vshrl.u32 %v1961, 7
        %v1963 = vsub.s32 %v1960, %v1962
        %v1964 = vrot.slane %v1950, %v1963
        %v1965 = vcombine.high %v1957, %v1957
        %v1966 = vcombine.high %v1964, %v1964
        %v1968 = vunpack.c.l.s4 1966171168
        %v1969 = vunpack.c.0.s8 %v1968
        %v1970 = vlaneseq
        %v1971 = vshrl.u32 %v1970, 7
        %v1972 = vsub.s32 %v1969, %v1971
        %v1973 = vrot.slane %v1957, %v1972
        %v1975 = vunpack.c.l.s4 1966171168
        %v1976 = vunpack.c.0.s8 %v1975
        %v1977 = vlaneseq
        %v1978 = vshrl.u32 %v1977, 7
        %v1979 = vsub.s32 %v1976, %v1978
        %v1980 = vrot.slane %v1964, %v1979
        %v1982 = vunpack.c.l.s4 1966171168
        %v1983 = vunpack.c.0.s8 %v1982
        %v1984 = vlaneseq
        %v1985 = vshrl.u32 %v1984, 7
        %v1986 = vsub.s32 %v1983, %v1985
        %v1987 = vrot.slane %v1965, %v1986
        %v1989 = vunpack.c.l.s4 1966171168
        %v1990 = vunpack.c.0.s8 %v1989
        %v1991 = vlaneseq
        %v1992 = vshrl.u32 %v1991, 7
        %v1993 = vsub.s32 %v1990, %v1992
        %v1994 = vrot.slane %v1966, %v1993
        %v1995 = vcombine.high %v1973, %v1973
        %v1996 = vcombine.high %v1980, %v1980
        %v1997 = vcombine.high %v1987, %v1987
        %v1998 = vcombine.high %v1994, %v1994
        %v1999 = vlaneseq
        %v2000 = vshrl.u32 %v1999, 7
        %v2001 = vsub.s32 0, %v2000
        %v2002 = vrot.slane %v1973, %v2001
        %v2003 = vlaneseq
        %v2004 = vshrl.u32 %v2003, 7
        %v2005 = vsub.s32 0, %v2004
        %v2006 = vrot.slane %v1987, %v2005
        %v2007 = vlaneseq
        %v2008 = vshrl.u32 %v2007, 7
        %v2009 = vsub.s32 0, %v2008
        %v2010 = vrot.slane %v1995, %v2009
        %v2011 = vlaneseq
        %v2012 = vshrl.u32 %v2011, 7
        %v2013 = vsub.s32 0, %v2012
        %v2014 = vrot.slane %v1997, %v2013
        %v2015 = vlaneseq
        %v2016 = vshrl.u32 %v2015, 7
        %v2017 = vsub.s32 0, %v2016
        %v2018 = vrot.slane %v1980, %v2017
        %v2019 = vlaneseq
        %v2020 = vshrl.u32 %v2019, 7
        %v2021 = vsub.s32 0, %v2020
        %v2022 = vrot.slane %v1994, %v2021
        %v2023 = vlaneseq
        %v2024 = vshrl.u32 %v2023, 7
        %v2025 = vsub.s32 0, %v2024
        %v2026 = vrot.slane %v1996, %v2025
        %v2027 = vlaneseq
        %v2028 = vshrl.u32 %v2027, 7
        %v2029 = vsub.s32 0, %v2028
        %v2030 = vrot.slane %v1998, %v2029
        %2031 = vrot.lane.b32.xlu0 %v2002, 17
        %v2032 = vpop.permute.xlu0 %2031
        %2033 = vrot.lane.b32.xlu0 %v2006, 17
        %v2034 = vpop.permute.xlu0 %2033
        %2035 = vrot.lane.b32.xlu0 %v2010, 17
        %v2036 = vpop.permute.xlu0 %2035
        %2037 = vrot.lane.b32.xlu0 %v2014, 17
        %v2038 = vpop.permute.xlu0 %2037
        %2039 = vrot.lane.b32.xlu0 %v2018, 17
        %v2040 = vpop.permute.xlu0 %2039
        %2041 = vrot.lane.b32.xlu0 %v2022, 17
        %v2042 = vpop.permute.xlu0 %2041
        %2043 = vrot.lane.b32.xlu0 %v2026, 17
        %v2044 = vpop.permute.xlu0 %2043
        %2045 = vrot.lane.b32.xlu0 %v2030, 17
        %v2046 = vpop.permute.xlu0 %2045
        %2055 = vst.msk [vmem:[#allocation2 + $0x10] sm:$0x1] %vm329, %v2032
        %2056 = vst.msk [vmem:[#allocation2 + $0x28] sm:$0x1] %vm329, %v2034
        %2057 = vst.msk [vmem:[#allocation2 + $0x40] sm:$0x1] %vm329, %v2036
        %2058 = vst.msk [vmem:[#allocation2 + $0x58] sm:$0x1] %vm329, %v2038
        %2059 = vst.msk [vmem:[#allocation2 + $0x70] sm:$0x1] %vm329, %v2040
        %2060 = vst.msk [vmem:[#allocation2 + $0x88] sm:$0x1] %vm329, %v2042
        %2061 = vst.msk [vmem:[#allocation2 + $0xa0] sm:$0x1] %vm329, %v2044
        %2062 = vst.msk [vmem:[#allocation2 + $0xb8] sm:$0x1] %vm329, %v2046
        %v2063 = vld [vmem:[#allocation2] sm:$0xff]
        %v2064 = vld [vmem:[#allocation2 + $0x8] sm:$0xff]
        %v2065 = vld [vmem:[#allocation2 + $0x18] sm:$0xff]
        %v2066 = vld [vmem:[#allocation2 + $0x20] sm:$0xff]
        %v2067 = vld [vmem:[#allocation2 + $0x30] sm:$0xff]
        %v2068 = vld [vmem:[#allocation2 + $0x38] sm:$0xff]
        %v2069 = vld [vmem:[#allocation2 + $0x48] sm:$0xff]
        %v2070 = vld [vmem:[#allocation2 + $0x50] sm:$0xff]
        %v2071 = vld [vmem:[#allocation2 + $0x60] sm:$0xff]
        %v2072 = vld [vmem:[#allocation2 + $0x68] sm:$0xff]
        %v2073 = vld [vmem:[#allocation2 + $0x78] sm:$0xff]
        %v2074 = vld [vmem:[#allocation2 + $0x80] sm:$0xff]
        %v2075 = vld [vmem:[#allocation2 + $0x90] sm:$0xff]
        %v2076 = vld [vmem:[#allocation2 + $0x98] sm:$0xff]
        %v2077 = vld [vmem:[#allocation2 + $0xa8] sm:$0xff]
        %v2078 = vld [vmem:[#allocation2 + $0xb0] sm:$0xff]
        %v2079 = vld [vmem:[%s1] sm:$0x1]
        %v2080 = vld [vmem:[%s1 + $0x1] sm:$0x1]
        %v2081 = vld [vmem:[%s1 + $0x2] sm:$0x1]
        %v2082 = vld [vmem:[%s1 + $0x3] sm:$0x1]
        %v2083 = vld [vmem:[%s1 + $0x4] sm:$0x1]
        %v2084 = vld [vmem:[%s1 + $0x5] sm:$0x1]
        %v2085 = vld [vmem:[%s1 + $0x6] sm:$0x1]
        %v2086 = vld [vmem:[%s1 + $0x7] sm:$0x1]
        %v2095 = vlaneseq
        %v2096 = vshrl.u32 %v2095, 7
        %v2097 = vsub.s32 0, %v2096
        %v2098 = vrot.slane %v2079, %v2097
        %v2099 = vlaneseq
        %v2100 = vshrl.u32 %v2099, 7
        %v2101 = vsub.s32 0, %v2100
        %v2102 = vrot.slane %v2080, %v2101
        %v2103 = vlaneseq
        %v2104 = vshrl.u32 %v2103, 7
        %v2105 = vsub.s32 0, %v2104
        %v2106 = vrot.slane %v2081, %v2105
        %v2107 = vlaneseq
        %v2108 = vshrl.u32 %v2107, 7
        %v2109 = vsub.s32 0, %v2108
        %v2110 = vrot.slane %v2082, %v2109
        %v2111 = vlaneseq
        %v2112 = vshrl.u32 %v2111, 7
        %v2113 = vsub.s32 0, %v2112
        %v2114 = vrot.slane %v2083, %v2113
        %v2115 = vlaneseq
        %v2116 = vshrl.u32 %v2115, 7
        %v2117 = vsub.s32 0, %v2116
        %v2118 = vrot.slane %v2084, %v2117
        %v2119 = vlaneseq
        %v2120 = vshrl.u32 %v2119, 7
        %v2121 = vsub.s32 0, %v2120
        %v2122 = vrot.slane %v2085, %v2121
        %v2123 = vlaneseq
        %v2124 = vshrl.u32 %v2123, 7
        %v2125 = vsub.s32 0, %v2124
        %v2126 = vrot.slane %v2086, %v2125
        %2127 = vset.pattern.permute.xlu0 0
        %2128 = vperm.xlu0 %2127, %v2098
        %v2129 = vpop.permute.xlu0 %2128
        %2131 = vset.pattern.permute.xlu0 0
        %2132 = vperm.xlu0 %2131, %v2102
        %v2133 = vpop.permute.xlu0 %2132
        %2135 = vset.pattern.permute.xlu0 0
        %2136 = vperm.xlu0 %2135, %v2106
        %v2137 = vpop.permute.xlu0 %2136
        %2139 = vset.pattern.permute.xlu0 0
        %2140 = vperm.xlu0 %2139, %v2110
        %v2141 = vpop.permute.xlu0 %2140
        %2143 = vset.pattern.permute.xlu0 0
        %2144 = vperm.xlu0 %2143, %v2114
        %v2145 = vpop.permute.xlu0 %2144
        %2147 = vset.pattern.permute.xlu0 0
        %2148 = vperm.xlu0 %2147, %v2118
        %v2149 = vpop.permute.xlu0 %2148
        %2151 = vset.pattern.permute.xlu0 0
        %2152 = vperm.xlu0 %2151, %v2122
        %v2153 = vpop.permute.xlu0 %2152
        %2155 = vset.pattern.permute.xlu0 0
        %2156 = vperm.xlu0 %2155, %v2126
        %v2157 = vpop.permute.xlu0 %2156
        %v2159 = vmul.f32 %v2063, %v2129
        %v2160 = vmul.f32 %v2064, %v2129
        %v2161 = vmul.f32 %v2065, %v2133
        %v2162 = vmul.f32 %v2066, %v2133
        %v2163 = vmul.f32 %v2067, %v2137
        %v2164 = vmul.f32 %v2068, %v2137
        %v2165 = vmul.f32 %v2069, %v2141
        %v2166 = vmul.f32 %v2070, %v2141
        %v2167 = vmul.f32 %v2071, %v2145
        %v2168 = vmul.f32 %v2072, %v2145
        %v2169 = vmul.f32 %v2073, %v2149
        %v2170 = vmul.f32 %v2074, %v2149
        %v2171 = vmul.f32 %v2075, %v2153
        %v2172 = vmul.f32 %v2076, %v2153
        %v2173 = vmul.f32 %v2077, %v2157
        %v2174 = vmul.f32 %v2078, %v2157
        %v2175 = vadd.f32 %v2159, 0.0
        %v2176 = vadd.f32 %v2160, 0.0
        %v2177 = vadd.f32 %v2161, 0.0
        %v2178 = vadd.f32 %v2162, 0.0
        %v2179 = vadd.f32 %v2163, 0.0
        %v2180 = vadd.f32 %v2164, 0.0
        %v2181 = vadd.f32 %v2165, 0.0
        %v2182 = vadd.f32 %v2166, 0.0
        %v2183 = vadd.f32 %v2167, 0.0
        %v2184 = vadd.f32 %v2168, 0.0
        %v2185 = vadd.f32 %v2169, 0.0
        %v2186 = vadd.f32 %v2170, 0.0
        %v2187 = vadd.f32 %v2171, 0.0
        %v2188 = vadd.f32 %v2172, 0.0
        %v2189 = vadd.f32 %v2173, 0.0
        %v2190 = vadd.f32 %v2174, 0.0
        %s2191 = scalar_lea.vmem %s1, 8
        %v2192 = vld [vmem:[%s2191] sm:$0x1]
        %v2193 = vld [vmem:[%s2191 + $0x1] sm:$0x1]
        %v2194 = vld [vmem:[%s2191 + $0x2] sm:$0x1]
        %v2195 = vld [vmem:[%s2191 + $0x3] sm:$0x1]
        %v2196 = vld [vmem:[%s2191 + $0x4] sm:$0x1]
        %v2197 = vld [vmem:[%s2191 + $0x5] sm:$0x1]
        %v2198 = vld [vmem:[%s2191 + $0x6] sm:$0x1]
        %v2199 = vld [vmem:[%s2191 + $0x7] sm:$0x1]
        %v2208 = vlaneseq
        %v2209 = vshrl.u32 %v2208, 7
        %v2210 = vsub.s32 0, %v2209
        %v2211 = vrot.slane %v2192, %v2210
        %v2212 = vlaneseq
        %v2213 = vshrl.u32 %v2212, 7
        %v2214 = vsub.s32 0, %v2213
        %v2215 = vrot.slane %v2193, %v2214
        %v2216 = vlaneseq
        %v2217 = vshrl.u32 %v2216, 7
        %v2218 = vsub.s32 0, %v2217
        %v2219 = vrot.slane %v2194, %v2218
        %v2220 = vlaneseq
        %v2221 = vshrl.u32 %v2220, 7
        %v2222 = vsub.s32 0, %v2221
        %v2223 = vrot.slane %v2195, %v2222
        %v2224 = vlaneseq
        %v2225 = vshrl.u32 %v2224, 7
        %v2226 = vsub.s32 0, %v2225
        %v2227 = vrot.slane %v2196, %v2226
        %v2228 = vlaneseq
        %v2229 = vshrl.u32 %v2228, 7
        %v2230 = vsub.s32 0, %v2229
        %v2231 = vrot.slane %v2197, %v2230
        %v2232 = vlaneseq
        %v2233 = vshrl.u32 %v2232, 7
        %v2234 = vsub.s32 0, %v2233
        %v2235 = vrot.slane %v2198, %v2234
        %v2236 = vlaneseq
        %v2237 = vshrl.u32 %v2236, 7
        %v2238 = vsub.s32 0, %v2237
        %v2239 = vrot.slane %v2199, %v2238
        %2240 = vset.pattern.permute.xlu0 0
        %2241 = vperm.xlu0 %2240, %v2211
        %v2242 = vpop.permute.xlu0 %2241
        %2244 = vset.pattern.permute.xlu0 0
        %2245 = vperm.xlu0 %2244, %v2215
        %v2246 = vpop.permute.xlu0 %2245
        %2248 = vset.pattern.permute.xlu0 0
        %2249 = vperm.xlu0 %2248, %v2219
        %v2250 = vpop.permute.xlu0 %2249
        %2252 = vset.pattern.permute.xlu0 0
        %2253 = vperm.xlu0 %2252, %v2223
        %v2254 = vpop.permute.xlu0 %2253
        %2256 = vset.pattern.permute.xlu0 0
        %2257 = vperm.xlu0 %2256, %v2227
        %v2258 = vpop.permute.xlu0 %2257
        %2260 = vset.pattern.permute.xlu0 0
        %2261 = vperm.xlu0 %2260, %v2231
        %v2262 = vpop.permute.xlu0 %2261
        %2264 = vset.pattern.permute.xlu0 0
        %2265 = vperm.xlu0 %2264, %v2235
        %v2266 = vpop.permute.xlu0 %2265
        %2268 = vset.pattern.permute.xlu0 0
        %2269 = vperm.xlu0 %2268, %v2239
        %v2270 = vpop.permute.xlu0 %2269
        %v2272 = vmul.f32 %v2063, %v2242
        %v2273 = vmul.f32 %v2064, %v2242
        %v2274 = vmul.f32 %v2065, %v2246
        %v2275 = vmul.f32 %v2066, %v2246
        %v2276 = vmul.f32 %v2067, %v2250
        %v2277 = vmul.f32 %v2068, %v2250
        %v2278 = vmul.f32 %v2069, %v2254
        %v2279 = vmul.f32 %v2070, %v2254
        %v2280 = vmul.f32 %v2071, %v2258
        %v2281 = vmul.f32 %v2072, %v2258
        %v2282 = vmul.f32 %v2073, %v2262
        %v2283 = vmul.f32 %v2074, %v2262
        %v2284 = vmul.f32 %v2075, %v2266
        %v2285 = vmul.f32 %v2076, %v2266
        %v2286 = vmul.f32 %v2077, %v2270
        %v2287 = vmul.f32 %v2078, %v2270
        %2304 = vrot.lane.b32.xlu0 %v2272, 127
        %v2305 = vpop.permute.xlu0 %2304
        %2306 = vrot.lane.b32.xlu0 %v2273, 127
        %v2307 = vpop.permute.xlu0 %2306
        %2308 = vrot.lane.b32.xlu0 %v2274, 127
        %v2309 = vpop.permute.xlu0 %2308
        %2310 = vrot.lane.b32.xlu0 %v2275, 127
        %v2311 = vpop.permute.xlu0 %2310
        %2312 = vrot.lane.b32.xlu0 %v2276, 127
        %v2313 = vpop.permute.xlu0 %2312
        %2314 = vrot.lane.b32.xlu0 %v2277, 127
        %v2315 = vpop.permute.xlu0 %2314
        %2316 = vrot.lane.b32.xlu0 %v2278, 127
        %v2317 = vpop.permute.xlu0 %2316
        %2318 = vrot.lane.b32.xlu0 %v2279, 127
        %v2319 = vpop.permute.xlu0 %2318
        %2320 = vrot.lane.b32.xlu0 %v2280, 127
        %v2321 = vpop.permute.xlu0 %2320
        %2322 = vrot.lane.b32.xlu0 %v2281, 127
        %v2323 = vpop.permute.xlu0 %2322
        %2324 = vrot.lane.b32.xlu0 %v2282, 127
        %v2325 = vpop.permute.xlu0 %2324
        %2326 = vrot.lane.b32.xlu0 %v2283, 127
        %v2327 = vpop.permute.xlu0 %2326
        %2328 = vrot.lane.b32.xlu0 %v2284, 127
        %v2329 = vpop.permute.xlu0 %2328
        %2330 = vrot.lane.b32.xlu0 %v2285, 127
        %v2331 = vpop.permute.xlu0 %2330
        %2332 = vrot.lane.b32.xlu0 %v2286, 127
        %v2333 = vpop.permute.xlu0 %2332
        %2334 = vrot.lane.b32.xlu0 %v2287, 127
        %v2335 = vpop.permute.xlu0 %2334
        %v2352 = vadd.f32 %v2175, %v2305
        %v2353 = vadd.f32 %v2176, %v2307
        %v2354 = vadd.f32 %v2177, %v2309
        %v2355 = vadd.f32 %v2178, %v2311
        %v2356 = vadd.f32 %v2179, %v2313
        %v2357 = vadd.f32 %v2180, %v2315
        %v2358 = vadd.f32 %v2181, %v2317
        %v2359 = vadd.f32 %v2182, %v2319
        %v2360 = vadd.f32 %v2183, %v2321
        %v2361 = vadd.f32 %v2184, %v2323
        %v2362 = vadd.f32 %v2185, %v2325
        %v2363 = vadd.f32 %v2186, %v2327
        %v2364 = vadd.f32 %v2187, %v2329
        %v2365 = vadd.f32 %v2188, %v2331
        %v2366 = vadd.f32 %v2189, %v2333
        %v2367 = vadd.f32 %v2190, %v2335
        %s2368 = scalar_lea.vmem %s1, 16
        %v2369 = vld [vmem:[%s2368] sm:$0x1]
        %v2370 = vld [vmem:[%s2368 + $0x1] sm:$0x1]
        %v2371 = vld [vmem:[%s2368 + $0x2] sm:$0x1]
        %v2372 = vld [vmem:[%s2368 + $0x3] sm:$0x1]
        %v2373 = vld [vmem:[%s2368 + $0x4] sm:$0x1]
        %v2374 = vld [vmem:[%s2368 + $0x5] sm:$0x1]
        %v2375 = vld [vmem:[%s2368 + $0x6] sm:$0x1]
        %v2376 = vld [vmem:[%s2368 + $0x7] sm:$0x1]
        %v2385 = vlaneseq
        %v2386 = vshrl.u32 %v2385, 7
        %v2387 = vsub.s32 0, %v2386
        %v2388 = vrot.slane %v2369, %v2387
        %v2389 = vlaneseq
        %v2390 = vshrl.u32 %v2389, 7
        %v2391 = vsub.s32 0, %v2390
        %v2392 = vrot.slane %v2370, %v2391
        %v2393 = vlaneseq
        %v2394 = vshrl.u32 %v2393, 7
        %v2395 = vsub.s32 0, %v2394
        %v2396 = vrot.slane %v2371, %v2395
        %v2397 = vlaneseq
        %v2398 = vshrl.u32 %v2397, 7
        %v2399 = vsub.s32 0, %v2398
        %v2400 = vrot.slane %v2372, %v2399
        %v2401 = vlaneseq
        %v2402 = vshrl.u32 %v2401, 7
        %v2403 = vsub.s32 0, %v2402
        %v2404 = vrot.slane %v2373, %v2403
        %v2405 = vlaneseq
        %v2406 = vshrl.u32 %v2405, 7
        %v2407 = vsub.s32 0, %v2406
        %v2408 = vrot.slane %v2374, %v2407
        %v2409 = vlaneseq
        %v2410 = vshrl.u32 %v2409, 7
        %v2411 = vsub.s32 0, %v2410
        %v2412 = vrot.slane %v2375, %v2411
        %v2413 = vlaneseq
        %v2414 = vshrl.u32 %v2413, 7
        %v2415 = vsub.s32 0, %v2414
        %v2416 = vrot.slane %v2376, %v2415
        %2417 = vset.pattern.permute.xlu0 0
        %2418 = vperm.xlu0 %2417, %v2388
        %v2419 = vpop.permute.xlu0 %2418
        %2421 = vset.pattern.permute.xlu0 0
        %2422 = vperm.xlu0 %2421, %v2392
        %v2423 = vpop.permute.xlu0 %2422
        %2425 = vset.pattern.permute.xlu0 0
        %2426 = vperm.xlu0 %2425, %v2396
        %v2427 = vpop.permute.xlu0 %2426
        %2429 = vset.pattern.permute.xlu0 0
        %2430 = vperm.xlu0 %2429, %v2400
        %v2431 = vpop.permute.xlu0 %2430
        %2433 = vset.pattern.permute.xlu0 0
        %2434 = vperm.xlu0 %2433, %v2404
        %v2435 = vpop.permute.xlu0 %2434
        %2437 = vset.pattern.permute.xlu0 0
        %2438 = vperm.xlu0 %2437, %v2408
        %v2439 = vpop.permute.xlu0 %2438
        %2441 = vset.pattern.permute.xlu0 0
        %2442 = vperm.xlu0 %2441, %v2412
        %v2443 = vpop.permute.xlu0 %2442
        %2445 = vset.pattern.permute.xlu0 0
        %2446 = vperm.xlu0 %2445, %v2416
        %v2447 = vpop.permute.xlu0 %2446
        %v2449 = vmul.f32 %v2063, %v2419
        %v2450 = vmul.f32 %v2064, %v2419
        %v2451 = vmul.f32 %v2065, %v2423
        %v2452 = vmul.f32 %v2066, %v2423
        %v2453 = vmul.f32 %v2067, %v2427
        %v2454 = vmul.f32 %v2068, %v2427
        %v2455 = vmul.f32 %v2069, %v2431
        %v2456 = vmul.f32 %v2070, %v2431
        %v2457 = vmul.f32 %v2071, %v2435
        %v2458 = vmul.f32 %v2072, %v2435
        %v2459 = vmul.f32 %v2073, %v2439
        %v2460 = vmul.f32 %v2074, %v2439
        %v2461 = vmul.f32 %v2075, %v2443
        %v2462 = vmul.f32 %v2076, %v2443
        %v2463 = vmul.f32 %v2077, %v2447
        %v2464 = vmul.f32 %v2078, %v2447
        %2481 = vrot.lane.b32.xlu0 %v2449, 126
        %v2482 = vpop.permute.xlu0 %2481
        %2483 = vrot.lane.b32.xlu0 %v2450, 126
        %v2484 = vpop.permute.xlu0 %2483
        %2485 = vrot.lane.b32.xlu0 %v2451, 126
        %v2486 = vpop.permute.xlu0 %2485
        %2487 = vrot.lane.b32.xlu0 %v2452, 126
        %v2488 = vpop.permute.xlu0 %2487
        %2489 = vrot.lane.b32.xlu0 %v2453, 126
        %v2490 = vpop.permute.xlu0 %2489
        %2491 = vrot.lane.b32.xlu0 %v2454, 126
        %v2492 = vpop.permute.xlu0 %2491
        %2493 = vrot.lane.b32.xlu0 %v2455, 126
        %v2494 = vpop.permute.xlu0 %2493
        %2495 = vrot.lane.b32.xlu0 %v2456, 126
        %v2496 = vpop.permute.xlu0 %2495
        %2497 = vrot.lane.b32.xlu0 %v2457, 126
        %v2498 = vpop.permute.xlu0 %2497
        %2499 = vrot.lane.b32.xlu0 %v2458, 126
        %v2500 = vpop.permute.xlu0 %2499
        %2501 = vrot.lane.b32.xlu0 %v2459, 126
        %v2502 = vpop.permute.xlu0 %2501
        %2503 = vrot.lane.b32.xlu0 %v2460, 126
        %v2504 = vpop.permute.xlu0 %2503
        %2505 = vrot.lane.b32.xlu0 %v2461, 126
        %v2506 = vpop.permute.xlu0 %2505
        %2507 = vrot.lane.b32.xlu0 %v2462, 126
        %v2508 = vpop.permute.xlu0 %2507
        %2509 = vrot.lane.b32.xlu0 %v2463, 126
        %v2510 = vpop.permute.xlu0 %2509
        %2511 = vrot.lane.b32.xlu0 %v2464, 126
        %v2512 = vpop.permute.xlu0 %2511
        %v2529 = vadd.f32 %v2352, %v2482
        %v2530 = vadd.f32 %v2353, %v2484
        %v2531 = vadd.f32 %v2354, %v2486
        %v2532 = vadd.f32 %v2355, %v2488
        %v2533 = vadd.f32 %v2356, %v2490
        %v2534 = vadd.f32 %v2357, %v2492
        %v2535 = vadd.f32 %v2358, %v2494
        %v2536 = vadd.f32 %v2359, %v2496
        %v2537 = vadd.f32 %v2360, %v2498
        %v2538 = vadd.f32 %v2361, %v2500
        %v2539 = vadd.f32 %v2362, %v2502
        %v2540 = vadd.f32 %v2363, %v2504
        %v2541 = vadd.f32 %v2364, %v2506
        %v2542 = vadd.f32 %v2365, %v2508
        %v2543 = vadd.f32 %v2366, %v2510
        %v2544 = vadd.f32 %v2367, %v2512
        %v2545 = vld [vmem:[#allocation2 + $0x1] sm:$0xff]
        %v2546 = vld [vmem:[#allocation2 + $0x9] sm:$0xff]
        %v2547 = vld [vmem:[#allocation2 + $0x19] sm:$0xff]
        %v2548 = vld [vmem:[#allocation2 + $0x21] sm:$0xff]
        %v2549 = vld [vmem:[#allocation2 + $0x31] sm:$0xff]
        %v2550 = vld [vmem:[#allocation2 + $0x39] sm:$0xff]
        %v2551 = vld [vmem:[#allocation2 + $0x49] sm:$0xff]
        %v2552 = vld [vmem:[#allocation2 + $0x51] sm:$0xff]
        %v2553 = vld [vmem:[#allocation2 + $0x61] sm:$0xff]
        %v2554 = vld [vmem:[#allocation2 + $0x69] sm:$0xff]
        %v2555 = vld [vmem:[#allocation2 + $0x79] sm:$0xff]
        %v2556 = vld [vmem:[#allocation2 + $0x81] sm:$0xff]
        %v2557 = vld [vmem:[#allocation2 + $0x91] sm:$0xff]
        %v2558 = vld [vmem:[#allocation2 + $0x99] sm:$0xff]
        %v2559 = vld [vmem:[#allocation2 + $0xa9] sm:$0xff]
        %v2560 = vld [vmem:[#allocation2 + $0xb1] sm:$0xff]
        %s2561 = scalar_lea.vmem %s1, 24
        %v2562 = vld [vmem:[%s2561] sm:$0x1]
        %v2563 = vld [vmem:[%s2561 + $0x1] sm:$0x1]
        %v2564 = vld [vmem:[%s2561 + $0x2] sm:$0x1]
        %v2565 = vld [vmem:[%s2561 + $0x3] sm:$0x1]
        %v2566 = vld [vmem:[%s2561 + $0x4] sm:$0x1]
        %v2567 = vld [vmem:[%s2561 + $0x5] sm:$0x1]
        %v2568 = vld [vmem:[%s2561 + $0x6] sm:$0x1]
        %v2569 = vld [vmem:[%s2561 + $0x7] sm:$0x1]
        %v2578 = vlaneseq
        %v2579 = vshrl.u32 %v2578, 7
        %v2580 = vsub.s32 0, %v2579
        %v2581 = vrot.slane %v2562, %v2580
        %v2582 = vlaneseq
        %v2583 = vshrl.u32 %v2582, 7
        %v2584 = vsub.s32 0, %v2583
        %v2585 = vrot.slane %v2563, %v2584
        %v2586 = vlaneseq
        %v2587 = vshrl.u32 %v2586, 7
        %v2588 = vsub.s32 0, %v2587
        %v2589 = vrot.slane %v2564, %v2588
        %v2590 = vlaneseq
        %v2591 = vshrl.u32 %v2590, 7
        %v2592 = vsub.s32 0, %v2591
        %v2593 = vrot.slane %v2565, %v2592
        %v2594 = vlaneseq
        %v2595 = vshrl.u32 %v2594, 7
        %v2596 = vsub.s32 0, %v2595
        %v2597 = vrot.slane %v2566, %v2596
        %v2598 = vlaneseq
        %v2599 = vshrl.u32 %v2598, 7
        %v2600 = vsub.s32 0, %v2599
        %v2601 = vrot.slane %v2567, %v2600
        %v2602 = vlaneseq
        %v2603 = vshrl.u32 %v2602, 7
        %v2604 = vsub.s32 0, %v2603
        %v2605 = vrot.slane %v2568, %v2604
        %v2606 = vlaneseq
        %v2607 = vshrl.u32 %v2606, 7
        %v2608 = vsub.s32 0, %v2607
        %v2609 = vrot.slane %v2569, %v2608
        %2610 = vset.pattern.permute.xlu0 0
        %2611 = vperm.xlu0 %2610, %v2581
        %v2612 = vpop.permute.xlu0 %2611
        %2614 = vset.pattern.permute.xlu0 0
        %2615 = vperm.xlu0 %2614, %v2585
        %v2616 = vpop.permute.xlu0 %2615
        %2618 = vset.pattern.permute.xlu0 0
        %2619 = vperm.xlu0 %2618, %v2589
        %v2620 = vpop.permute.xlu0 %2619
        %2622 = vset.pattern.permute.xlu0 0
        %2623 = vperm.xlu0 %2622, %v2593
        %v2624 = vpop.permute.xlu0 %2623
        %2626 = vset.pattern.permute.xlu0 0
        %2627 = vperm.xlu0 %2626, %v2597
        %v2628 = vpop.permute.xlu0 %2627
        %2630 = vset.pattern.permute.xlu0 0
        %2631 = vperm.xlu0 %2630, %v2601
        %v2632 = vpop.permute.xlu0 %2631
        %2634 = vset.pattern.permute.xlu0 0
        %2635 = vperm.xlu0 %2634, %v2605
        %v2636 = vpop.permute.xlu0 %2635
        %2638 = vset.pattern.permute.xlu0 0
        %2639 = vperm.xlu0 %2638, %v2609
        %v2640 = vpop.permute.xlu0 %2639
        %v2642 = vmul.f32 %v2545, %v2612
        %v2643 = vmul.f32 %v2546, %v2612
        %v2644 = vmul.f32 %v2547, %v2616
        %v2645 = vmul.f32 %v2548, %v2616
        %v2646 = vmul.f32 %v2549, %v2620
        %v2647 = vmul.f32 %v2550, %v2620
        %v2648 = vmul.f32 %v2551, %v2624
        %v2649 = vmul.f32 %v2552, %v2624
        %v2650 = vmul.f32 %v2553, %v2628
        %v2651 = vmul.f32 %v2554, %v2628
        %v2652 = vmul.f32 %v2555, %v2632
        %v2653 = vmul.f32 %v2556, %v2632
        %v2654 = vmul.f32 %v2557, %v2636
        %v2655 = vmul.f32 %v2558, %v2636
        %v2656 = vmul.f32 %v2559, %v2640
        %v2657 = vmul.f32 %v2560, %v2640
        %v2658 = vadd.f32 %v2529, %v2642
        %v2659 = vadd.f32 %v2530, %v2643
        %v2660 = vadd.f32 %v2531, %v2644
        %v2661 = vadd.f32 %v2532, %v2645
        %v2662 = vadd.f32 %v2533, %v2646
        %v2663 = vadd.f32 %v2534, %v2647
        %v2664 = vadd.f32 %v2535, %v2648
        %v2665 = vadd.f32 %v2536, %v2649
        %v2666 = vadd.f32 %v2537, %v2650
        %v2667 = vadd.f32 %v2538, %v2651
        %v2668 = vadd.f32 %v2539, %v2652
        %v2669 = vadd.f32 %v2540, %v2653
        %v2670 = vadd.f32 %v2541, %v2654
        %v2671 = vadd.f32 %v2542, %v2655
        %v2672 = vadd.f32 %v2543, %v2656
        %v2673 = vadd.f32 %v2544, %v2657
        %s2674 = scalar_lea.vmem %s1, 32
        %v2675 = vld [vmem:[%s2674] sm:$0x1]
        %v2676 = vld [vmem:[%s2674 + $0x1] sm:$0x1]
        %v2677 = vld [vmem:[%s2674 + $0x2] sm:$0x1]
        %v2678 = vld [vmem:[%s2674 + $0x3] sm:$0x1]
        %v2679 = vld [vmem:[%s2674 + $0x4] sm:$0x1]
        %v2680 = vld [vmem:[%s2674 + $0x5] sm:$0x1]
        %v2681 = vld [vmem:[%s2674 + $0x6] sm:$0x1]
        %v2682 = vld [vmem:[%s2674 + $0x7] sm:$0x1]
        %v2691 = vlaneseq
        %v2692 = vshrl.u32 %v2691, 7
        %v2693 = vsub.s32 0, %v2692
        %v2694 = vrot.slane %v2675, %v2693
        %v2695 = vlaneseq
        %v2696 = vshrl.u32 %v2695, 7
        %v2697 = vsub.s32 0, %v2696
        %v2698 = vrot.slane %v2676, %v2697
        %v2699 = vlaneseq
        %v2700 = vshrl.u32 %v2699, 7
        %v2701 = vsub.s32 0, %v2700
        %v2702 = vrot.slane %v2677, %v2701
        %v2703 = vlaneseq
        %v2704 = vshrl.u32 %v2703, 7
        %v2705 = vsub.s32 0, %v2704
        %v2706 = vrot.slane %v2678, %v2705
        %v2707 = vlaneseq
        %v2708 = vshrl.u32 %v2707, 7
        %v2709 = vsub.s32 0, %v2708
        %v2710 = vrot.slane %v2679, %v2709
        %v2711 = vlaneseq
        %v2712 = vshrl.u32 %v2711, 7
        %v2713 = vsub.s32 0, %v2712
        %v2714 = vrot.slane %v2680, %v2713
        %v2715 = vlaneseq
        %v2716 = vshrl.u32 %v2715, 7
        %v2717 = vsub.s32 0, %v2716
        %v2718 = vrot.slane %v2681, %v2717
        %v2719 = vlaneseq
        %v2720 = vshrl.u32 %v2719, 7
        %v2721 = vsub.s32 0, %v2720
        %v2722 = vrot.slane %v2682, %v2721
        %2723 = vset.pattern.permute.xlu0 0
        %2724 = vperm.xlu0 %2723, %v2694
        %v2725 = vpop.permute.xlu0 %2724
        %2727 = vset.pattern.permute.xlu0 0
        %2728 = vperm.xlu0 %2727, %v2698
        %v2729 = vpop.permute.xlu0 %2728
        %2731 = vset.pattern.permute.xlu0 0
        %2732 = vperm.xlu0 %2731, %v2702
        %v2733 = vpop.permute.xlu0 %2732
        %2735 = vset.pattern.permute.xlu0 0
        %2736 = vperm.xlu0 %2735, %v2706
        %v2737 = vpop.permute.xlu0 %2736
        %2739 = vset.pattern.permute.xlu0 0
        %2740 = vperm.xlu0 %2739, %v2710
        %v2741 = vpop.permute.xlu0 %2740
        %2743 = vset.pattern.permute.xlu0 0
        %2744 = vperm.xlu0 %2743, %v2714
        %v2745 = vpop.permute.xlu0 %2744
        %2747 = vset.pattern.permute.xlu0 0
        %2748 = vperm.xlu0 %2747, %v2718
        %v2749 = vpop.permute.xlu0 %2748
        %2751 = vset.pattern.permute.xlu0 0
        %2752 = vperm.xlu0 %2751, %v2722
        %v2753 = vpop.permute.xlu0 %2752
        %v2755 = vmul.f32 %v2545, %v2725
        %v2756 = vmul.f32 %v2546, %v2725
        %v2757 = vmul.f32 %v2547, %v2729
        %v2758 = vmul.f32 %v2548, %v2729
        %v2759 = vmul.f32 %v2549, %v2733
        %v2760 = vmul.f32 %v2550, %v2733
        %v2761 = vmul.f32 %v2551, %v2737
        %v2762 = vmul.f32 %v2552, %v2737
        %v2763 = vmul.f32 %v2553, %v2741
        %v2764 = vmul.f32 %v2554, %v2741
        %v2765 = vmul.f32 %v2555, %v2745
        %v2766 = vmul.f32 %v2556, %v2745
        %v2767 = vmul.f32 %v2557, %v2749
        %v2768 = vmul.f32 %v2558, %v2749
        %v2769 = vmul.f32 %v2559, %v2753
        %v2770 = vmul.f32 %v2560, %v2753
        %2787 = vrot.lane.b32.xlu0 %v2755, 127
        %v2788 = vpop.permute.xlu0 %2787
        %2789 = vrot.lane.b32.xlu0 %v2756, 127
        %v2790 = vpop.permute.xlu0 %2789
        %2791 = vrot.lane.b32.xlu0 %v2757, 127
        %v2792 = vpop.permute.xlu0 %2791
        %2793 = vrot.lane.b32.xlu0 %v2758, 127
        %v2794 = vpop.permute.xlu0 %2793
        %2795 = vrot.lane.b32.xlu0 %v2759, 127
        %v2796 = vpop.permute.xlu0 %2795
        %2797 = vrot.lane.b32.xlu0 %v2760, 127
        %v2798 = vpop.permute.xlu0 %2797
        %2799 = vrot.lane.b32.xlu0 %v2761, 127
        %v2800 = vpop.permute.xlu0 %2799
        %2801 = vrot.lane.b32.xlu0 %v2762, 127
        %v2802 = vpop.permute.xlu0 %2801
        %2803 = vrot.lane.b32.xlu0 %v2763, 127
        %v2804 = vpop.permute.xlu0 %2803
        %2805 = vrot.lane.b32.xlu0 %v2764, 127
        %v2806 = vpop.permute.xlu0 %2805
        %2807 = vrot.lane.b32.xlu0 %v2765, 127
        %v2808 = vpop.permute.xlu0 %2807
        %2809 = vrot.lane.b32.xlu0 %v2766, 127
        %v2810 = vpop.permute.xlu0 %2809
        %2811 = vrot.lane.b32.xlu0 %v2767, 127
        %v2812 = vpop.permute.xlu0 %2811
        %2813 = vrot.lane.b32.xlu0 %v2768, 127
        %v2814 = vpop.permute.xlu0 %2813
        %2815 = vrot.lane.b32.xlu0 %v2769, 127
        %v2816 = vpop.permute.xlu0 %2815
        %2817 = vrot.lane.b32.xlu0 %v2770, 127
        %v2818 = vpop.permute.xlu0 %2817
        %v2835 = vadd.f32 %v2658, %v2788
        %v2836 = vadd.f32 %v2659, %v2790
        %v2837 = vadd.f32 %v2660, %v2792
        %v2838 = vadd.f32 %v2661, %v2794
        %v2839 = vadd.f32 %v2662, %v2796
        %v2840 = vadd.f32 %v2663, %v2798
        %v2841 = vadd.f32 %v2664, %v2800
        %v2842 = vadd.f32 %v2665, %v2802
        %v2843 = vadd.f32 %v2666, %v2804
        %v2844 = vadd.f32 %v2667, %v2806
        %v2845 = vadd.f32 %v2668, %v2808
        %v2846 = vadd.f32 %v2669, %v2810
        %v2847 = vadd.f32 %v2670, %v2812
        %v2848 = vadd.f32 %v2671, %v2814
        %v2849 = vadd.f32 %v2672, %v2816
        %v2850 = vadd.f32 %v2673, %v2818
        %s2851 = scalar_lea.vmem %s1, 40
        %v2852 = vld [vmem:[%s2851] sm:$0x1]
        %v2853 = vld [vmem:[%s2851 + $0x1] sm:$0x1]
        %v2854 = vld [vmem:[%s2851 + $0x2] sm:$0x1]
        %v2855 = vld [vmem:[%s2851 + $0x3] sm:$0x1]
        %v2856 = vld [vmem:[%s2851 + $0x4] sm:$0x1]
        %v2857 = vld [vmem:[%s2851 + $0x5] sm:$0x1]
        %v2858 = vld [vmem:[%s2851 + $0x6] sm:$0x1]
        %v2859 = vld [vmem:[%s2851 + $0x7] sm:$0x1]
        %v2868 = vlaneseq
        %v2869 = vshrl.u32 %v2868, 7
        %v2870 = vsub.s32 0, %v2869
        %v2871 = vrot.slane %v2852, %v2870
        %v2872 = vlaneseq
        %v2873 = vshrl.u32 %v2872, 7
        %v2874 = vsub.s32 0, %v2873
        %v2875 = vrot.slane %v2853, %v2874
        %v2876 = vlaneseq
        %v2877 = vshrl.u32 %v2876, 7
        %v2878 = vsub.s32 0, %v2877
        %v2879 = vrot.slane %v2854, %v2878
        %v2880 = vlaneseq
        %v2881 = vshrl.u32 %v2880, 7
        %v2882 = vsub.s32 0, %v2881
        %v2883 = vrot.slane %v2855, %v2882
        %v2884 = vlaneseq
        %v2885 = vshrl.u32 %v2884, 7
        %v2886 = vsub.s32 0, %v2885
        %v2887 = vrot.slane %v2856, %v2886
        %v2888 = vlaneseq
        %v2889 = vshrl.u32 %v2888, 7
        %v2890 = vsub.s32 0, %v2889
        %v2891 = vrot.slane %v2857, %v2890
        %v2892 = vlaneseq
        %v2893 = vshrl.u32 %v2892, 7
        %v2894 = vsub.s32 0, %v2893
        %v2895 = vrot.slane %v2858, %v2894
        %v2896 = vlaneseq
        %v2897 = vshrl.u32 %v2896, 7
        %v2898 = vsub.s32 0, %v2897
        %v2899 = vrot.slane %v2859, %v2898
        %2900 = vset.pattern.permute.xlu0 0
        %2901 = vperm.xlu0 %2900, %v2871
        %v2902 = vpop.permute.xlu0 %2901
        %2904 = vset.pattern.permute.xlu0 0
        %2905 = vperm.xlu0 %2904, %v2875
        %v2906 = vpop.permute.xlu0 %2905
        %2908 = vset.pattern.permute.xlu0 0
        %2909 = vperm.xlu0 %2908, %v2879
        %v2910 = vpop.permute.xlu0 %2909
        %2912 = vset.pattern.permute.xlu0 0
        %2913 = vperm.xlu0 %2912, %v2883
        %v2914 = vpop.permute.xlu0 %2913
        %2916 = vset.pattern.permute.xlu0 0
        %2917 = vperm.xlu0 %2916, %v2887
        %v2918 = vpop.permute.xlu0 %2917
        %2920 = vset.pattern.permute.xlu0 0
        %2921 = vperm.xlu0 %2920, %v2891
        %v2922 = vpop.permute.xlu0 %2921
        %2924 = vset.pattern.permute.xlu0 0
        %2925 = vperm.xlu0 %2924, %v2895
        %v2926 = vpop.permute.xlu0 %2925
        %2928 = vset.pattern.permute.xlu0 0
        %2929 = vperm.xlu0 %2928, %v2899
        %v2930 = vpop.permute.xlu0 %2929
        %v2932 = vmul.f32 %v2545, %v2902
        %v2933 = vmul.f32 %v2546, %v2902
        %v2934 = vmul.f32 %v2547, %v2906
        %v2935 = vmul.f32 %v2548, %v2906
        %v2936 = vmul.f32 %v2549, %v2910
        %v2937 = vmul.f32 %v2550, %v2910
        %v2938 = vmul.f32 %v2551, %v2914
        %v2939 = vmul.f32 %v2552, %v2914
        %v2940 = vmul.f32 %v2553, %v2918
        %v2941 = vmul.f32 %v2554, %v2918
        %v2942 = vmul.f32 %v2555, %v2922
        %v2943 = vmul.f32 %v2556, %v2922
        %v2944 = vmul.f32 %v2557, %v2926
        %v2945 = vmul.f32 %v2558, %v2926
        %v2946 = vmul.f32 %v2559, %v2930
        %v2947 = vmul.f32 %v2560, %v2930
        %2964 = vrot.lane.b32.xlu0 %v2932, 126
        %v2965 = vpop.permute.xlu0 %2964
        %2966 = vrot.lane.b32.xlu0 %v2933, 126
        %v2967 = vpop.permute.xlu0 %2966
        %2968 = vrot.lane.b32.xlu0 %v2934, 126
        %v2969 = vpop.permute.xlu0 %2968
        %2970 = vrot.lane.b32.xlu0 %v2935, 126
        %v2971 = vpop.permute.xlu0 %2970
        %2972 = vrot.lane.b32.xlu0 %v2936, 126
        %v2973 = vpop.permute.xlu0 %2972
        %2974 = vrot.lane.b32.xlu0 %v2937, 126
        %v2975 = vpop.permute.xlu0 %2974
        %2976 = vrot.lane.b32.xlu0 %v2938, 126
        %v2977 = vpop.permute.xlu0 %2976
        %2978 = vrot.lane.b32.xlu0 %v2939, 126
        %v2979 = vpop.permute.xlu0 %2978
        %2980 = vrot.lane.b32.xlu0 %v2940, 126
        %v2981 = vpop.permute.xlu0 %2980
        %2982 = vrot.lane.b32.xlu0 %v2941, 126
        %v2983 = vpop.permute.xlu0 %2982
        %2984 = vrot.lane.b32.xlu0 %v2942, 126
        %v2985 = vpop.permute.xlu0 %2984
        %2986 = vrot.lane.b32.xlu0 %v2943, 126
        %v2987 = vpop.permute.xlu0 %2986
        %2988 = vrot.lane.b32.xlu0 %v2944, 126
        %v2989 = vpop.permute.xlu0 %2988
        %2990 = vrot.lane.b32.xlu0 %v2945, 126
        %v2991 = vpop.permute.xlu0 %2990
        %2992 = vrot.lane.b32.xlu0 %v2946, 126
        %v2993 = vpop.permute.xlu0 %2992
        %2994 = vrot.lane.b32.xlu0 %v2947, 126
        %v2995 = vpop.permute.xlu0 %2994
        %v3012 = vadd.f32 %v2835, %v2965
        %v3013 = vadd.f32 %v2836, %v2967
        %v3014 = vadd.f32 %v2837, %v2969
        %v3015 = vadd.f32 %v2838, %v2971
        %v3016 = vadd.f32 %v2839, %v2973
        %v3017 = vadd.f32 %v2840, %v2975
        %v3018 = vadd.f32 %v2841, %v2977
        %v3019 = vadd.f32 %v2842, %v2979
        %v3020 = vadd.f32 %v2843, %v2981
        %v3021 = vadd.f32 %v2844, %v2983
        %v3022 = vadd.f32 %v2845, %v2985
        %v3023 = vadd.f32 %v2846, %v2987
        %v3024 = vadd.f32 %v2847, %v2989
        %v3025 = vadd.f32 %v2848, %v2991
        %v3026 = vadd.f32 %v2849, %v2993
        %v3027 = vadd.f32 %v2850, %v2995
        %v3028 = vld [vmem:[#allocation2 + $0x2] sm:$0xff]
        %v3029 = vld [vmem:[#allocation2 + $0xa] sm:$0xff]
        %v3030 = vld [vmem:[#allocation2 + $0x1a] sm:$0xff]
        %v3031 = vld [vmem:[#allocation2 + $0x22] sm:$0xff]
        %v3032 = vld [vmem:[#allocation2 + $0x32] sm:$0xff]
        %v3033 = vld [vmem:[#allocation2 + $0x3a] sm:$0xff]
        %v3034 = vld [vmem:[#allocation2 + $0x4a] sm:$0xff]
        %v3035 = vld [vmem:[#allocation2 + $0x52] sm:$0xff]
        %v3036 = vld [vmem:[#allocation2 + $0x62] sm:$0xff]
        %v3037 = vld [vmem:[#allocation2 + $0x6a] sm:$0xff]
        %v3038 = vld [vmem:[#allocation2 + $0x7a] sm:$0xff]
        %v3039 = vld [vmem:[#allocation2 + $0x82] sm:$0xff]
        %v3040 = vld [vmem:[#allocation2 + $0x92] sm:$0xff]
        %v3041 = vld [vmem:[#allocation2 + $0x9a] sm:$0xff]
        %v3042 = vld [vmem:[#allocation2 + $0xaa] sm:$0xff]
        %v3043 = vld [vmem:[#allocation2 + $0xb2] sm:$0xff]
        %s3044 = scalar_lea.vmem %s1, 48
        %v3045 = vld [vmem:[%s3044] sm:$0x1]
        %v3046 = vld [vmem:[%s3044 + $0x1] sm:$0x1]
        %v3047 = vld [vmem:[%s3044 + $0x2] sm:$0x1]
        %v3048 = vld [vmem:[%s3044 + $0x3] sm:$0x1]
        %v3049 = vld [vmem:[%s3044 + $0x4] sm:$0x1]
        %v3050 = vld [vmem:[%s3044 + $0x5] sm:$0x1]
        %v3051 = vld [vmem:[%s3044 + $0x6] sm:$0x1]
        %v3052 = vld [vmem:[%s3044 + $0x7] sm:$0x1]
        %v3061 = vlaneseq
        %v3062 = vshrl.u32 %v3061, 7
        %v3063 = vsub.s32 0, %v3062
        %v3064 = vrot.slane %v3045, %v3063
        %v3065 = vlaneseq
        %v3066 = vshrl.u32 %v3065, 7
        %v3067 = vsub.s32 0, %v3066
        %v3068 = vrot.slane %v3046, %v3067
        %v3069 = vlaneseq
        %v3070 = vshrl.u32 %v3069, 7
        %v3071 = vsub.s32 0, %v3070
        %v3072 = vrot.slane %v3047, %v3071
        %v3073 = vlaneseq
        %v3074 = vshrl.u32 %v3073, 7
        %v3075 = vsub.s32 0, %v3074
        %v3076 = vrot.slane %v3048, %v3075
        %v3077 = vlaneseq
        %v3078 = vshrl.u32 %v3077, 7
        %v3079 = vsub.s32 0, %v3078
        %v3080 = vrot.slane %v3049, %v3079
        %v3081 = vlaneseq
        %v3082 = vshrl.u32 %v3081, 7
        %v3083 = vsub.s32 0, %v3082
        %v3084 = vrot.slane %v3050, %v3083
        %v3085 = vlaneseq
        %v3086 = vshrl.u32 %v3085, 7
        %v3087 = vsub.s32 0, %v3086
        %v3088 = vrot.slane %v3051, %v3087
        %v3089 = vlaneseq
        %v3090 = vshrl.u32 %v3089, 7
        %v3091 = vsub.s32 0, %v3090
        %v3092 = vrot.slane %v3052, %v3091
        %3093 = vset.pattern.permute.xlu0 0
        %3094 = vperm.xlu0 %3093, %v3064
        %v3095 = vpop.permute.xlu0 %3094
        %3097 = vset.pattern.permute.xlu0 0
        %3098 = vperm.xlu0 %3097, %v3068
        %v3099 = vpop.permute.xlu0 %3098
        %3101 = vset.pattern.permute.xlu0 0
        %3102 = vperm.xlu0 %3101, %v3072
        %v3103 = vpop.permute.xlu0 %3102
        %3105 = vset.pattern.permute.xlu0 0
        %3106 = vperm.xlu0 %3105, %v3076
        %v3107 = vpop.permute.xlu0 %3106
        %3109 = vset.pattern.permute.xlu0 0
        %3110 = vperm.xlu0 %3109, %v3080
        %v3111 = vpop.permute.xlu0 %3110
        %3113 = vset.pattern.permute.xlu0 0
        %3114 = vperm.xlu0 %3113, %v3084
        %v3115 = vpop.permute.xlu0 %3114
        %3117 = vset.pattern.permute.xlu0 0
        %3118 = vperm.xlu0 %3117, %v3088
        %v3119 = vpop.permute.xlu0 %3118
        %3121 = vset.pattern.permute.xlu0 0
        %3122 = vperm.xlu0 %3121, %v3092
        %v3123 = vpop.permute.xlu0 %3122
        %v3125 = vmul.f32 %v3028, %v3095
        %v3126 = vmul.f32 %v3029, %v3095
        %v3127 = vmul.f32 %v3030, %v3099
        %v3128 = vmul.f32 %v3031, %v3099
        %v3129 = vmul.f32 %v3032, %v3103
        %v3130 = vmul.f32 %v3033, %v3103
        %v3131 = vmul.f32 %v3034, %v3107
        %v3132 = vmul.f32 %v3035, %v3107
        %v3133 = vmul.f32 %v3036, %v3111
        %v3134 = vmul.f32 %v3037, %v3111
        %v3135 = vmul.f32 %v3038, %v3115
        %v3136 = vmul.f32 %v3039, %v3115
        %v3137 = vmul.f32 %v3040, %v3119
        %v3138 = vmul.f32 %v3041, %v3119
        %v3139 = vmul.f32 %v3042, %v3123
        %v3140 = vmul.f32 %v3043, %v3123
        %v3141 = vadd.f32 %v3012, %v3125
        %v3142 = vadd.f32 %v3013, %v3126
        %v3143 = vadd.f32 %v3014, %v3127
        %v3144 = vadd.f32 %v3015, %v3128
        %v3145 = vadd.f32 %v3016, %v3129
        %v3146 = vadd.f32 %v3017, %v3130
        %v3147 = vadd.f32 %v3018, %v3131
        %v3148 = vadd.f32 %v3019, %v3132
        %v3149 = vadd.f32 %v3020, %v3133
        %v3150 = vadd.f32 %v3021, %v3134
        %v3151 = vadd.f32 %v3022, %v3135
        %v3152 = vadd.f32 %v3023, %v3136
        %v3153 = vadd.f32 %v3024, %v3137
        %v3154 = vadd.f32 %v3025, %v3138
        %v3155 = vadd.f32 %v3026, %v3139
        %v3156 = vadd.f32 %v3027, %v3140
        %s3157 = scalar_lea.vmem %s1, 56
        %v3158 = vld [vmem:[%s3157] sm:$0x1]
        %v3159 = vld [vmem:[%s3157 + $0x1] sm:$0x1]
        %v3160 = vld [vmem:[%s3157 + $0x2] sm:$0x1]
        %v3161 = vld [vmem:[%s3157 + $0x3] sm:$0x1]
        %v3162 = vld [vmem:[%s3157 + $0x4] sm:$0x1]
        %v3163 = vld [vmem:[%s3157 + $0x5] sm:$0x1]
        %v3164 = vld [vmem:[%s3157 + $0x6] sm:$0x1]
        %v3165 = vld [vmem:[%s3157 + $0x7] sm:$0x1]
        %v3174 = vlaneseq
        %v3175 = vshrl.u32 %v3174, 7
        %v3176 = vsub.s32 0, %v3175
        %v3177 = vrot.slane %v3158, %v3176
        %v3178 = vlaneseq
        %v3179 = vshrl.u32 %v3178, 7
        %v3180 = vsub.s32 0, %v3179
        %v3181 = vrot.slane %v3159, %v3180
        %v3182 = vlaneseq
        %v3183 = vshrl.u32 %v3182, 7
        %v3184 = vsub.s32 0, %v3183
        %v3185 = vrot.slane %v3160, %v3184
        %v3186 = vlaneseq
        %v3187 = vshrl.u32 %v3186, 7
        %v3188 = vsub.s32 0, %v3187
        %v3189 = vrot.slane %v3161, %v3188
        %v3190 = vlaneseq
        %v3191 = vshrl.u32 %v3190, 7
        %v3192 = vsub.s32 0, %v3191
        %v3193 = vrot.slane %v3162, %v3192
        %v3194 = vlaneseq
        %v3195 = vshrl.u32 %v3194, 7
        %v3196 = vsub.s32 0, %v3195
        %v3197 = vrot.slane %v3163, %v3196
        %v3198 = vlaneseq
        %v3199 = vshrl.u32 %v3198, 7
        %v3200 = vsub.s32 0, %v3199
        %v3201 = vrot.slane %v3164, %v3200
        %v3202 = vlaneseq
        %v3203 = vshrl.u32 %v3202, 7
        %v3204 = vsub.s32 0, %v3203
        %v3205 = vrot.slane %v3165, %v3204
        %3206 = vset.pattern.permute.xlu0 0
        %3207 = vperm.xlu0 %3206, %v3177
        %v3208 = vpop.permute.xlu0 %3207
        %3210 = vset.pattern.permute.xlu0 0
        %3211 = vperm.xlu0 %3210, %v3181
        %v3212 = vpop.permute.xlu0 %3211
        %3214 = vset.pattern.permute.xlu0 0
        %3215 = vperm.xlu0 %3214, %v3185
        %v3216 = vpop.permute.xlu0 %3215
        %3218 = vset.pattern.permute.xlu0 0
        %3219 = vperm.xlu0 %3218, %v3189
        %v3220 = vpop.permute.xlu0 %3219
        %3222 = vset.pattern.permute.xlu0 0
        %3223 = vperm.xlu0 %3222, %v3193
        %v3224 = vpop.permute.xlu0 %3223
        %3226 = vset.pattern.permute.xlu0 0
        %3227 = vperm.xlu0 %3226, %v3197
        %v3228 = vpop.permute.xlu0 %3227
        %3230 = vset.pattern.permute.xlu0 0
        %3231 = vperm.xlu0 %3230, %v3201
        %v3232 = vpop.permute.xlu0 %3231
        %3234 = vset.pattern.permute.xlu0 0
        %3235 = vperm.xlu0 %3234, %v3205
        %v3236 = vpop.permute.xlu0 %3235
        %v3238 = vmul.f32 %v3028, %v3208
        %v3239 = vmul.f32 %v3029, %v3208
        %v3240 = vmul.f32 %v3030, %v3212
        %v3241 = vmul.f32 %v3031, %v3212
        %v3242 = vmul.f32 %v3032, %v3216
        %v3243 = vmul.f32 %v3033, %v3216
        %v3244 = vmul.f32 %v3034, %v3220
        %v3245 = vmul.f32 %v3035, %v3220
        %v3246 = vmul.f32 %v3036, %v3224
        %v3247 = vmul.f32 %v3037, %v3224
        %v3248 = vmul.f32 %v3038, %v3228
        %v3249 = vmul.f32 %v3039, %v3228
        %v3250 = vmul.f32 %v3040, %v3232
        %v3251 = vmul.f32 %v3041, %v3232
        %v3252 = vmul.f32 %v3042, %v3236
        %v3253 = vmul.f32 %v3043, %v3236
        %3270 = vrot.lane.b32.xlu0 %v3238, 127
        %v3271 = vpop.permute.xlu0 %3270
        %3272 = vrot.lane.b32.xlu0 %v3239, 127
        %v3273 = vpop.permute.xlu0 %3272
        %3274 = vrot.lane.b32.xlu0 %v3240, 127
        %v3275 = vpop.permute.xlu0 %3274
        %3276 = vrot.lane.b32.xlu0 %v3241, 127
        %v3277 = vpop.permute.xlu0 %3276
        %3278 = vrot.lane.b32.xlu0 %v3242, 127
        %v3279 = vpop.permute.xlu0 %3278
        %3280 = vrot.lane.b32.xlu0 %v3243, 127
        %v3281 = vpop.permute.xlu0 %3280
        %3282 = vrot.lane.b32.xlu0 %v3244, 127
        %v3283 = vpop.permute.xlu0 %3282
        %3284 = vrot.lane.b32.xlu0 %v3245, 127
        %v3285 = vpop.permute.xlu0 %3284
        %3286 = vrot.lane.b32.xlu0 %v3246, 127
        %v3287 = vpop.permute.xlu0 %3286
        %3288 = vrot.lane.b32.xlu0 %v3247, 127
        %v3289 = vpop.permute.xlu0 %3288
        %3290 = vrot.lane.b32.xlu0 %v3248, 127
        %v3291 = vpop.permute.xlu0 %3290
        %3292 = vrot.lane.b32.xlu0 %v3249, 127
        %v3293 = vpop.permute.xlu0 %3292
        %3294 = vrot.lane.b32.xlu0 %v3250, 127
        %v3295 = vpop.permute.xlu0 %3294
        %3296 = vrot.lane.b32.xlu0 %v3251, 127
        %v3297 = vpop.permute.xlu0 %3296
        %3298 = vrot.lane.b32.xlu0 %v3252, 127
        %v3299 = vpop.permute.xlu0 %3298
        %3300 = vrot.lane.b32.xlu0 %v3253, 127
        %v3301 = vpop.permute.xlu0 %3300
        %v3318 = vadd.f32 %v3141, %v3271
        %v3319 = vadd.f32 %v3142, %v3273
        %v3320 = vadd.f32 %v3143, %v3275
        %v3321 = vadd.f32 %v3144, %v3277
        %v3322 = vadd.f32 %v3145, %v3279
        %v3323 = vadd.f32 %v3146, %v3281
        %v3324 = vadd.f32 %v3147, %v3283
        %v3325 = vadd.f32 %v3148, %v3285
        %v3326 = vadd.f32 %v3149, %v3287
        %v3327 = vadd.f32 %v3150, %v3289
        %v3328 = vadd.f32 %v3151, %v3291
        %v3329 = vadd.f32 %v3152, %v3293
        %v3330 = vadd.f32 %v3153, %v3295
        %v3331 = vadd.f32 %v3154, %v3297
        %v3332 = vadd.f32 %v3155, %v3299
        %v3333 = vadd.f32 %v3156, %v3301
        %s3334 = scalar_lea.vmem %s1, 64
        %v3335 = vld [vmem:[%s3334] sm:$0x1]
        %v3336 = vld [vmem:[%s3334 + $0x1] sm:$0x1]
        %v3337 = vld [vmem:[%s3334 + $0x2] sm:$0x1]
        %v3338 = vld [vmem:[%s3334 + $0x3] sm:$0x1]
        %v3339 = vld [vmem:[%s3334 + $0x4] sm:$0x1]
        %v3340 = vld [vmem:[%s3334 + $0x5] sm:$0x1]
        %v3341 = vld [vmem:[%s3334 + $0x6] sm:$0x1]
        %v3342 = vld [vmem:[%s3334 + $0x7] sm:$0x1]
        %v3351 = vlaneseq
        %v3352 = vshrl.u32 %v3351, 7
        %v3353 = vsub.s32 0, %v3352
        %v3354 = vrot.slane %v3335, %v3353
        %v3355 = vlaneseq
        %v3356 = vshrl.u32 %v3355, 7
        %v3357 = vsub.s32 0, %v3356
        %v3358 = vrot.slane %v3336, %v3357
        %v3359 = vlaneseq
        %v3360 = vshrl.u32 %v3359, 7
        %v3361 = vsub.s32 0, %v3360
        %v3362 = vrot.slane %v3337, %v3361
        %v3363 = vlaneseq
        %v3364 = vshrl.u32 %v3363, 7
        %v3365 = vsub.s32 0, %v3364
        %v3366 = vrot.slane %v3338, %v3365
        %v3367 = vlaneseq
        %v3368 = vshrl.u32 %v3367, 7
        %v3369 = vsub.s32 0, %v3368
        %v3370 = vrot.slane %v3339, %v3369
        %v3371 = vlaneseq
        %v3372 = vshrl.u32 %v3371, 7
        %v3373 = vsub.s32 0, %v3372
        %v3374 = vrot.slane %v3340, %v3373
        %v3375 = vlaneseq
        %v3376 = vshrl.u32 %v3375, 7
        %v3377 = vsub.s32 0, %v3376
        %v3378 = vrot.slane %v3341, %v3377
        %v3379 = vlaneseq
        %v3380 = vshrl.u32 %v3379, 7
        %v3381 = vsub.s32 0, %v3380
        %v3382 = vrot.slane %v3342, %v3381
        %3383 = vset.pattern.permute.xlu0 0
        %3384 = vperm.xlu0 %3383, %v3354
        %v3385 = vpop.permute.xlu0 %3384
        %3387 = vset.pattern.permute.xlu0 0
        %3388 = vperm.xlu0 %3387, %v3358
        %v3389 = vpop.permute.xlu0 %3388
        %3391 = vset.pattern.permute.xlu0 0
        %3392 = vperm.xlu0 %3391, %v3362
        %v3393 = vpop.permute.xlu0 %3392
        %3395 = vset.pattern.permute.xlu0 0
        %3396 = vperm.xlu0 %3395, %v3366
        %v3397 = vpop.permute.xlu0 %3396
        %3399 = vset.pattern.permute.xlu0 0
        %3400 = vperm.xlu0 %3399, %v3370
        %v3401 = vpop.permute.xlu0 %3400
        %3403 = vset.pattern.permute.xlu0 0
        %3404 = vperm.xlu0 %3403, %v3374
        %v3405 = vpop.permute.xlu0 %3404
        %3407 = vset.pattern.permute.xlu0 0
        %3408 = vperm.xlu0 %3407, %v3378
        %v3409 = vpop.permute.xlu0 %3408
        %3411 = vset.pattern.permute.xlu0 0
        %3412 = vperm.xlu0 %3411, %v3382
        %v3413 = vpop.permute.xlu0 %3412
        %v3415 = vmul.f32 %v3028, %v3385
        %v3416 = vmul.f32 %v3029, %v3385
        %v3417 = vmul.f32 %v3030, %v3389
        %v3418 = vmul.f32 %v3031, %v3389
        %v3419 = vmul.f32 %v3032, %v3393
        %v3420 = vmul.f32 %v3033, %v3393
        %v3421 = vmul.f32 %v3034, %v3397
        %v3422 = vmul.f32 %v3035, %v3397
        %v3423 = vmul.f32 %v3036, %v3401
        %v3424 = vmul.f32 %v3037, %v3401
        %v3425 = vmul.f32 %v3038, %v3405
        %v3426 = vmul.f32 %v3039, %v3405
        %v3427 = vmul.f32 %v3040, %v3409
        %v3428 = vmul.f32 %v3041, %v3409
        %v3429 = vmul.f32 %v3042, %v3413
        %v3430 = vmul.f32 %v3043, %v3413
        %3447 = vrot.lane.b32.xlu0 %v3415, 126
        %v3448 = vpop.permute.xlu0 %3447
        %3449 = vrot.lane.b32.xlu0 %v3416, 126
        %v3450 = vpop.permute.xlu0 %3449
        %3451 = vrot.lane.b32.xlu0 %v3417, 126
        %v3452 = vpop.permute.xlu0 %3451
        %3453 = vrot.lane.b32.xlu0 %v3418, 126
        %v3454 = vpop.permute.xlu0 %3453
        %3455 = vrot.lane.b32.xlu0 %v3419, 126
        %v3456 = vpop.permute.xlu0 %3455
        %3457 = vrot.lane.b32.xlu0 %v3420, 126
        %v3458 = vpop.permute.xlu0 %3457
        %3459 = vrot.lane.b32.xlu0 %v3421, 126
        %v3460 = vpop.permute.xlu0 %3459
        %3461 = vrot.lane.b32.xlu0 %v3422, 126
        %v3462 = vpop.permute.xlu0 %3461
        %3463 = vrot.lane.b32.xlu0 %v3423, 126
        %v3464 = vpop.permute.xlu0 %3463
        %3465 = vrot.lane.b32.xlu0 %v3424, 126
        %v3466 = vpop.permute.xlu0 %3465
        %3467 = vrot.lane.b32.xlu0 %v3425, 126
        %v3468 = vpop.permute.xlu0 %3467
        %3469 = vrot.lane.b32.xlu0 %v3426, 126
        %v3470 = vpop.permute.xlu0 %3469
        %3471 = vrot.lane.b32.xlu0 %v3427, 126
        %v3472 = vpop.permute.xlu0 %3471
        %3473 = vrot.lane.b32.xlu0 %v3428, 126
        %v3474 = vpop.permute.xlu0 %3473
        %3475 = vrot.lane.b32.xlu0 %v3429, 126
        %v3476 = vpop.permute.xlu0 %3475
        %3477 = vrot.lane.b32.xlu0 %v3430, 126
        %v3478 = vpop.permute.xlu0 %3477
        %v3495 = vadd.f32 %v3318, %v3448
        %v3496 = vadd.f32 %v3319, %v3450
        %v3497 = vadd.f32 %v3320, %v3452
        %v3498 = vadd.f32 %v3321, %v3454
        %v3499 = vadd.f32 %v3322, %v3456
        %v3500 = vadd.f32 %v3323, %v3458
        %v3501 = vadd.f32 %v3324, %v3460
        %v3502 = vadd.f32 %v3325, %v3462
        %v3503 = vadd.f32 %v3326, %v3464
        %v3504 = vadd.f32 %v3327, %v3466
        %v3505 = vadd.f32 %v3328, %v3468
        %v3506 = vadd.f32 %v3329, %v3470
        %v3507 = vadd.f32 %v3330, %v3472
        %v3508 = vadd.f32 %v3331, %v3474
        %v3509 = vadd.f32 %v3332, %v3476
        %v3510 = vadd.f32 %v3333, %v3478
        %v3519 = vrot.slane %v3497, 7
        %vm3520 = vcmask 1041409
        %v3521 = vsel %vm3520, %v3519, %v3495
        %v3522 = vrot.slane %v3499, 6
        %vm3523 = vcmask 1042434
        %v3524 = vsel %vm3523, %v3522, %v3521
        %v3525 = vrot.slane %v3501, 5
        %vm3526 = vcmask 1043459
        %v3527 = vsel %vm3526, %v3525, %v3524
        %v3528 = vrot.slane %v3503, 4
        %vm3529 = vcmask 1044484
        %v3530 = vsel %vm3529, %v3528, %v3527
        %v3531 = vrot.slane %v3505, 3
        %vm3532 = vcmask 1045509
        %v3533 = vsel %vm3532, %v3531, %v3530
        %v3534 = vrot.slane %v3507, 2
        %vm3535 = vcmask 1046534
        %v3536 = vsel %vm3535, %v3534, %v3533
        %v3537 = vrot.slane %v3509, 1
        %vm3538 = vcmask 1047559
        %v3539 = vsel %vm3538, %v3537, %v3536
        %vm3541 = vcmask 130048
        %3542 = vst.msk [vmem:[#allocation3] sm:$0xff] %vm3541, %v3539
        %v3543 = vrot.slane %v3495, 1
        %v3544 = vsel %vm3520, %v3497, %v3543
        %v3545 = vrot.slane %v3499, 7
        %v3546 = vsel %vm3523, %v3545, %v3544
        %v3547 = vrot.slane %v3501, 6
        %v3548 = vsel %vm3526, %v3547, %v3546
        %v3549 = vrot.slane %v3503, 5
        %v3550 = vsel %vm3529, %v3549, %v3548
        %v3551 = vrot.slane %v3505, 4
        %v3552 = vsel %vm3532, %v3551, %v3550
        %v3553 = vrot.slane %v3507, 3
        %v3554 = vsel %vm3535, %v3553, %v3552
        %v3555 = vrot.slane %v3509, 2
        %v3556 = vsel %vm3538, %v3555, %v3554
        %3557 = vrot.lane.b32.xlu0 %v3556, 16
        %v3558 = vpop.permute.xlu0 %3557
        %vm3560 = vcmask 261248
        %3561 = vst.msk [vmem:[#allocation3] sm:$0xff] %vm3560, %v3558
        %v3562 = vrot.slane %v3495, 2
        %v3563 = vrot.slane %v3497, 1
        %v3564 = vsel %vm3520, %v3563, %v3562
        %v3565 = vsel %vm3523, %v3499, %v3564
        %v3566 = vrot.slane %v3501, 7
        %v3567 = vsel %vm3526, %v3566, %v3565
        %v3568 = vrot.slane %v3503, 6
        %v3569 = vsel %vm3529, %v3568, %v3567
        %v3570 = vrot.slane %v3505, 5
        %v3571 = vsel %vm3532, %v3570, %v3569
        %v3572 = vrot.slane %v3507, 4
        %v3573 = vsel %vm3535, %v3572, %v3571
        %v3574 = vrot.slane %v3509, 3
        %v3575 = vsel %vm3538, %v3574, %v3573
        %3576 = vrot.lane.b32.xlu0 %v3575, 32
        %v3577 = vpop.permute.xlu0 %3576
        %vm3579 = vcmask 392448
        %3580 = vst.msk [vmem:[#allocation3] sm:$0xff] %vm3579, %v3577
        %v3581 = vrot.slane %v3495, 3
        %v3582 = vrot.slane %v3497, 2
        %v3583 = vsel %vm3520, %v3582, %v3581
        %v3584 = vrot.slane %v3499, 1
        %v3585 = vsel %vm3523, %v3584, %v3583
        %v3586 = vsel %vm3526, %v3501, %v3585
        %v3587 = vrot.slane %v3503, 7
        %v3588 = vsel %vm3529, %v3587, %v3586
        %v3589 = vrot.slane %v3505, 6
        %v3590 = vsel %vm3532, %v3589, %v3588
        %v3591 = vrot.slane %v3507, 5
        %v3592 = vsel %vm3535, %v3591, %v3590
        %v3593 = vrot.slane %v3509, 4
        %v3594 = vsel %vm3538, %v3593, %v3592
        %3595 = vrot.lane.b32.xlu0 %v3594, 48
        %v3596 = vpop.permute.xlu0 %3595
        %vm3598 = vcmask 523648
        %3599 = vst.msk [vmem:[#allocation3] sm:$0xff] %vm3598, %v3596
        %v3600 = vrot.slane %v3495, 4
        %v3601 = vrot.slane %v3497, 3
        %v3602 = vsel %vm3520, %v3601, %v3600
        %v3603 = vrot.slane %v3499, 2
        %v3604 = vsel %vm3523, %v3603, %v3602
        %v3605 = vrot.slane %v3501, 1
        %v3606 = vsel %vm3526, %v3605, %v3604
        %v3607 = vsel %vm3529, %v3503, %v3606
        %v3608 = vrot.slane %v3505, 7
        %v3609 = vsel %vm3532, %v3608, %v3607
        %v3610 = vrot.slane %v3507, 6
        %v3611 = vsel %vm3535, %v3610, %v3609
        %v3612 = vrot.slane %v3509, 5
        %v3613 = vsel %vm3538, %v3612, %v3611
        %3614 = vrot.lane.b32.xlu0 %v3613, 64
        %v3615 = vpop.permute.xlu0 %3614
        %vm3617 = vcmask 654848
        %3618 = vst.msk [vmem:[#allocation3] sm:$0xff] %vm3617, %v3615
        %v3619 = vrot.slane %v3495, 5
        %v3620 = vrot.slane %v3497, 4
        %v3621 = vsel %vm3520, %v3620, %v3619
        %v3622 = vrot.slane %v3499, 3
        %v3623 = vsel %vm3523, %v3622, %v3621
        %v3624 = vrot.slane %v3501, 2
        %v3625 = vsel %vm3526, %v3624, %v3623
        %v3626 = vrot.slane %v3503, 1
        %v3627 = vsel %vm3529, %v3626, %v3625
        %v3628 = vsel %vm3532, %v3505, %v3627
        %v3629 = vrot.slane %v3507, 7
        %v3630 = vsel %vm3535, %v3629, %v3628
        %v3631 = vrot.slane %v3509, 6
        %v3632 = vsel %vm3538, %v3631, %v3630
        %3633 = vrot.lane.b32.xlu0 %v3632, 80
        %v3634 = vpop.permute.xlu0 %3633
        %vm3636 = vcmask 786048
        %3637 = vst.msk [vmem:[#allocation3] sm:$0xff] %vm3636, %v3634
        %v3638 = vrot.slane %v3495, 6
        %v3639 = vrot.slane %v3497, 5
        %v3640 = vsel %vm3520, %v3639, %v3638
        %v3641 = vrot.slane %v3499, 4
        %v3642 = vsel %vm3523, %v3641, %v3640
        %v3643 = vrot.slane %v3501, 3
        %v3644 = vsel %vm3526, %v3643, %v3642
        %v3645 = vrot.slane %v3503, 2
        %v3646 = vsel %vm3529, %v3645, %v3644
        %v3647 = vrot.slane %v3505, 1
        %v3648 = vsel %vm3532, %v3647, %v3646
        %v3649 = vsel %vm3535, %v3507, %v3648
        %v3650 = vrot.slane %v3509, 7
        %v3651 = vsel %vm3538, %v3650, %v3649
        %3652 = vrot.lane.b32.xlu0 %v3651, 96
        %v3653 = vpop.permute.xlu0 %3652
        %vm3655 = vcmask 917248
        %3656 = vst.msk [vmem:[#allocation3] sm:$0xff] %vm3655, %v3653
        %v3657 = vrot.slane %v3495, 7
        %v3658 = vrot.slane %v3497, 6
        %v3659 = vsel %vm3520, %v3658, %v3657
        %v3660 = vrot.slane %v3499, 5
        %v3661 = vsel %vm3523, %v3660, %v3659
        %v3662 = vrot.slane %v3501, 4
        %v3663 = vsel %vm3526, %v3662, %v3661
        %v3664 = vrot.slane %v3503, 3
        %v3665 = vsel %vm3529, %v3664, %v3663
        %v3666 = vrot.slane %v3505, 2
        %v3667 = vsel %vm3532, %v3666, %v3665
        %v3668 = vrot.slane %v3507, 1
        %v3669 = vsel %vm3535, %v3668, %v3667
        %v3670 = vsel %vm3538, %v3509, %v3669
        %3671 = vrot.lane.b32.xlu0 %v3670, 112
        %v3672 = vpop.permute.xlu0 %3671
        %vm3674 = vcmask 1048448
        %3675 = vst.msk [vmem:[#allocation3] sm:$0xff] %vm3674, %v3672
        %v3684 = vrot.slane %v3498, 7
        %v3685 = vsel %vm3520, %v3684, %v3496
        %v3686 = vrot.slane %v3500, 6
        %v3687 = vsel %vm3523, %v3686, %v3685
        %v3688 = vrot.slane %v3502, 5
        %v3689 = vsel %vm3526, %v3688, %v3687
        %v3690 = vrot.slane %v3504, 4
        %v3691 = vsel %vm3529, %v3690, %v3689
        %v3692 = vrot.slane %v3506, 3
        %v3693 = vsel %vm3532, %v3692, %v3691
        %v3694 = vrot.slane %v3508, 2
        %v3695 = vsel %vm3535, %v3694, %v3693
        %v3696 = vrot.slane %v3510, 1
        %v3697 = vsel %vm3538, %v3696, %v3695
        %3699 = vst.msk [vmem:[#allocation3 + $0x8] sm:$0xff] %vm3541, %v3697
        %v3700 = vrot.slane %v3496, 1
        %v3701 = vsel %vm3520, %v3498, %v3700
        %v3702 = vrot.slane %v3500, 7
        %v3703 = vsel %vm3523, %v3702, %v3701
        %v3704 = vrot.slane %v3502, 6
        %v3705 = vsel %vm3526, %v3704, %v3703
        %v3706 = vrot.slane %v3504, 5
        %v3707 = vsel %vm3529, %v3706, %v3705
        %v3708 = vrot.slane %v3506, 4
        %v3709 = vsel %vm3532, %v3708, %v3707
        %v3710 = vrot.slane %v3508, 3
        %v3711 = vsel %vm3535, %v3710, %v3709
        %v3712 = vrot.slane %v3510, 2
        %v3713 = vsel %vm3538, %v3712, %v3711
        %3714 = vrot.lane.b32.xlu0 %v3713, 16
        %v3715 = vpop.permute.xlu0 %3714
        %3717 = vst.msk [vmem:[#allocation3 + $0x8] sm:$0xff] %vm3560, %v3715
        %v3718 = vrot.slane %v3496, 2
        %v3719 = vrot.slane %v3498, 1
        %v3720 = vsel %vm3520, %v3719, %v3718
        %v3721 = vsel %vm3523, %v3500, %v3720
        %v3722 = vrot.slane %v3502, 7
        %v3723 = vsel %vm3526, %v3722, %v3721
        %v3724 = vrot.slane %v3504, 6
        %v3725 = vsel %vm3529, %v3724, %v3723
        %v3726 = vrot.slane %v3506, 5
        %v3727 = vsel %vm3532, %v3726, %v3725
        %v3728 = vrot.slane %v3508, 4
        %v3729 = vsel %vm3535, %v3728, %v3727
        %v3730 = vrot.slane %v3510, 3
        %v3731 = vsel %vm3538, %v3730, %v3729
        %3732 = vrot.lane.b32.xlu0 %v3731, 32
        %v3733 = vpop.permute.xlu0 %3732
        %3735 = vst.msk [vmem:[#allocation3 + $0x8] sm:$0xff] %vm3579, %v3733
        %v3736 = vrot.slane %v3496, 3
        %v3737 = vrot.slane %v3498, 2
        %v3738 = vsel %vm3520, %v3737, %v3736
        %v3739 = vrot.slane %v3500, 1
        %v3740 = vsel %vm3523, %v3739, %v3738
        %v3741 = vsel %vm3526, %v3502, %v3740
        %v3742 = vrot.slane %v3504, 7
        %v3743 = vsel %vm3529, %v3742, %v3741
        %v3744 = vrot.slane %v3506, 6
        %v3745 = vsel %vm3532, %v3744, %v3743
        %v3746 = vrot.slane %v3508, 5
        %v3747 = vsel %vm3535, %v3746, %v3745
        %v3748 = vrot.slane %v3510, 4
        %v3749 = vsel %vm3538, %v3748, %v3747
        %3750 = vrot.lane.b32.xlu0 %v3749, 48
        %v3751 = vpop.permute.xlu0 %3750
        %3753 = vst.msk [vmem:[#allocation3 + $0x8] sm:$0xff] %vm3598, %v3751
        %v3754 = vrot.slane %v3496, 4
        %v3755 = vrot.slane %v3498, 3
        %v3756 = vsel %vm3520, %v3755, %v3754
        %v3757 = vrot.slane %v3500, 2
        %v3758 = vsel %vm3523, %v3757, %v3756
        %v3759 = vrot.slane %v3502, 1
        %v3760 = vsel %vm3526, %v3759, %v3758
        %v3761 = vsel %vm3529, %v3504, %v3760
        %v3762 = vrot.slane %v3506, 7
        %v3763 = vsel %vm3532, %v3762, %v3761
        %v3764 = vrot.slane %v3508, 6
        %v3765 = vsel %vm3535, %v3764, %v3763
        %v3766 = vrot.slane %v3510, 5
        %v3767 = vsel %vm3538, %v3766, %v3765
        %3768 = vrot.lane.b32.xlu0 %v3767, 64
        %v3769 = vpop.permute.xlu0 %3768
        %3771 = vst.msk [vmem:[#allocation3 + $0x8] sm:$0xff] %vm3617, %v3769
        %v3772 = vrot.slane %v3496, 5
        %v3773 = vrot.slane %v3498, 4
        %v3774 = vsel %vm3520, %v3773, %v3772
        %v3775 = vrot.slane %v3500, 3
        %v3776 = vsel %vm3523, %v3775, %v3774
        %v3777 = vrot.slane %v3502, 2
        %v3778 = vsel %vm3526, %v3777, %v3776
        %v3779 = vrot.slane %v3504, 1
        %v3780 = vsel %vm3529, %v3779, %v3778
        %v3781 = vsel %vm3532, %v3506, %v3780
        %v3782 = vrot.slane %v3508, 7
        %v3783 = vsel %vm3535, %v3782, %v3781
        %v3784 = vrot.slane %v3510, 6
        %v3785 = vsel %vm3538, %v3784, %v3783
        %3786 = vrot.lane.b32.xlu0 %v3785, 80
        %v3787 = vpop.permute.xlu0 %3786
        %3789 = vst.msk [vmem:[#allocation3 + $0x8] sm:$0xff] %vm3636, %v3787
        %v3790 = vrot.slane %v3496, 6
        %v3791 = vrot.slane %v3498, 5
        %v3792 = vsel %vm3520, %v3791, %v3790
        %v3793 = vrot.slane %v3500, 4
        %v3794 = vsel %vm3523, %v3793, %v3792
        %v3795 = vrot.slane %v3502, 3
        %v3796 = vsel %vm3526, %v3795, %v3794
        %v3797 = vrot.slane %v3504, 2
        %v3798 = vsel %vm3529, %v3797, %v3796
        %v3799 = vrot.slane %v3506, 1
        %v3800 = vsel %vm3532, %v3799, %v3798
        %v3801 = vsel %vm3535, %v3508, %v3800
        %v3802 = vrot.slane %v3510, 7
        %v3803 = vsel %vm3538, %v3802, %v3801
        %3804 = vrot.lane.b32.xlu0 %v3803, 96
        %v3805 = vpop.permute.xlu0 %3804
        %3807 = vst.msk [vmem:[#allocation3 + $0x8] sm:$0xff] %vm3655, %v3805
        %v3808 = vrot.slane %v3496, 7
        %v3809 = vrot.slane %v3498, 6
        %v3810 = vsel %vm3520, %v3809, %v3808
        %v3811 = vrot.slane %v3500, 5
        %v3812 = vsel %vm3523, %v3811, %v3810
        %v3813 = vrot.slane %v3502, 4
        %v3814 = vsel %vm3526, %v3813, %v3812
        %v3815 = vrot.slane %v3504, 3
        %v3816 = vsel %vm3529, %v3815, %v3814
        %v3817 = vrot.slane %v3506, 2
        %v3818 = vsel %vm3532, %v3817, %v3816
        %v3819 = vrot.slane %v3508, 1
        %v3820 = vsel %vm3535, %v3819, %v3818
        %v3821 = vsel %vm3538, %v3510, %v3820
        %3822 = vrot.lane.b32.xlu0 %v3821, 112
        %v3823 = vpop.permute.xlu0 %3822
        %3825 = vst.msk [vmem:[#allocation3 + $0x8] sm:$0xff] %vm3674, %v3823
        %v3826 = vld [vmem:[#allocation3] sm:$0xff]
        %v3827 = vld [vmem:[#allocation3 + $0x8] sm:$0xff]
        %v3828 = vld [vmem:[%s2] sm:$0xff]
        %v3829 = vld [vmem:[%s2 + $0x8] sm:$0xff]
        %v3830 = vld [vmem:[%s2 + $0x10] sm:$0xff]
        %v3831 = vld [vmem:[%s2 + $0x18] sm:$0xff]
        %v3832 = vld [vmem:[%s2 + $0x20] sm:$0xff]
        %v3833 = vld [vmem:[%s2 + $0x28] sm:$0xff]
        %v3834 = vld [vmem:[%s2 + $0x30] sm:$0xff]
        %v3835 = vld [vmem:[%s2 + $0x38] sm:$0xff]
        %3837 = vset.pattern.permute.xlu0 0
        %3838 = vperm.xlu0 %3837, %v3828
        %v3839 = vpop.permute.xlu0 %3838
        %3842 = vset.pattern.permute.xlu0 0
        %3843 = vperm.xlu0 %3842, %v3829
        %v3844 = vpop.permute.xlu0 %3843
        %3847 = vset.pattern.permute.xlu0 0
        %3848 = vperm.xlu0 %3847, %v3830
        %v3849 = vpop.permute.xlu0 %3848
        %3852 = vset.pattern.permute.xlu0 0
        %3853 = vperm.xlu0 %3852, %v3831
        %v3854 = vpop.permute.xlu0 %3853
        %3857 = vset.pattern.permute.xlu0 0
        %3858 = vperm.xlu0 %3857, %v3832
        %v3859 = vpop.permute.xlu0 %3858
        %3862 = vset.pattern.permute.xlu0 0
        %3863 = vperm.xlu0 %3862, %v3833
        %v3864 = vpop.permute.xlu0 %3863
        %3867 = vset.pattern.permute.xlu0 0
        %3868 = vperm.xlu0 %3867, %v3834
        %v3869 = vpop.permute.xlu0 %3868
        %3872 = vset.pattern.permute.xlu0 0
        %3873 = vperm.xlu0 %3872, %v3835
        %v3874 = vpop.permute.xlu0 %3873
        %v3876 = vmul.f32 %v3839, %v3826
        %v3877 = vmul.f32 %v3839, %v3827
        %v3878 = vmul.f32 %v3844, %v3826
        %v3879 = vmul.f32 %v3844, %v3827
        %v3880 = vmul.f32 %v3849, %v3826
        %v3881 = vmul.f32 %v3849, %v3827
        %v3882 = vmul.f32 %v3854, %v3826
        %v3883 = vmul.f32 %v3854, %v3827
        %v3884 = vmul.f32 %v3859, %v3826
        %v3885 = vmul.f32 %v3859, %v3827
        %v3886 = vmul.f32 %v3864, %v3826
        %v3887 = vmul.f32 %v3864, %v3827
        %v3888 = vmul.f32 %v3869, %v3826
        %v3889 = vmul.f32 %v3869, %v3827
        %v3890 = vmul.f32 %v3874, %v3826
        %v3891 = vmul.f32 %v3874, %v3827
        %v3892 = vrot.slane %v3876, 4
        %v3893 = vadd.f32 %v3876, %v3892
        %v3894 = vrot.slane %v3893, 2
        %v3895 = vadd.f32 %v3893, %v3894
        %v3896 = vrot.slane %v3895, 1
        %v3897 = vadd.f32 %v3895, %v3896
        %v3898 = vrot.slane %v3877, 4
        %v3899 = vadd.f32 %v3877, %v3898
        %v3900 = vrot.slane %v3899, 2
        %v3901 = vadd.f32 %v3899, %v3900
        %v3902 = vrot.slane %v3901, 1
        %v3903 = vadd.f32 %v3901, %v3902
        %v3904 = vrot.slane %v3878, 4
        %v3905 = vadd.f32 %v3878, %v3904
        %v3906 = vrot.slane %v3905, 2
        %v3907 = vadd.f32 %v3905, %v3906
        %v3908 = vrot.slane %v3907, 1
        %v3909 = vadd.f32 %v3907, %v3908
        %v3910 = vrot.slane %v3879, 4
        %v3911 = vadd.f32 %v3879, %v3910
        %v3912 = vrot.slane %v3911, 2
        %v3913 = vadd.f32 %v3911, %v3912
        %v3914 = vrot.slane %v3913, 1
        %v3915 = vadd.f32 %v3913, %v3914
        %v3916 = vrot.slane %v3880, 4
        %v3917 = vadd.f32 %v3880, %v3916
        %v3918 = vrot.slane %v3917, 2
        %v3919 = vadd.f32 %v3917, %v3918
        %v3920 = vrot.slane %v3919, 1
        %v3921 = vadd.f32 %v3919, %v3920
        %v3922 = vrot.slane %v3881, 4
        %v3923 = vadd.f32 %v3881, %v3922
        %v3924 = vrot.slane %v3923, 2
        %v3925 = vadd.f32 %v3923, %v3924
        %v3926 = vrot.slane %v3925, 1
        %v3927 = vadd.f32 %v3925, %v3926
        %v3928 = vrot.slane %v3882, 4
        %v3929 = vadd.f32 %v3882, %v3928
        %v3930 = vrot.slane %v3929, 2
        %v3931 = vadd.f32 %v3929, %v3930
        %v3932 = vrot.slane %v3931, 1
        %v3933 = vadd.f32 %v3931, %v3932
        %v3934 = vrot.slane %v3883, 4
        %v3935 = vadd.f32 %v3883, %v3934
        %v3936 = vrot.slane %v3935, 2
        %v3937 = vadd.f32 %v3935, %v3936
        %v3938 = vrot.slane %v3937, 1
        %v3939 = vadd.f32 %v3937, %v3938
        %v3940 = vrot.slane %v3884, 4
        %v3941 = vadd.f32 %v3884, %v3940
        %v3942 = vrot.slane %v3941, 2
        %v3943 = vadd.f32 %v3941, %v3942
        %v3944 = vrot.slane %v3943, 1
        %v3945 = vadd.f32 %v3943, %v3944
        %v3946 = vrot.slane %v3885, 4
        %v3947 = vadd.f32 %v3885, %v3946
        %v3948 = vrot.slane %v3947, 2
        %v3949 = vadd.f32 %v3947, %v3948
        %v3950 = vrot.slane %v3949, 1
        %v3951 = vadd.f32 %v3949, %v3950
        %v3952 = vrot.slane %v3886, 4
        %v3953 = vadd.f32 %v3886, %v3952
        %v3954 = vrot.slane %v3953, 2
        %v3955 = vadd.f32 %v3953, %v3954
        %v3956 = vrot.slane %v3955, 1
        %v3957 = vadd.f32 %v3955, %v3956
        %v3958 = vrot.slane %v3887, 4
        %v3959 = vadd.f32 %v3887, %v3958
        %v3960 = vrot.slane %v3959, 2
        %v3961 = vadd.f32 %v3959, %v3960
        %v3962 = vrot.slane %v3961, 1
        %v3963 = vadd.f32 %v3961, %v3962
        %v3964 = vrot.slane %v3888, 4
        %v3965 = vadd.f32 %v3888, %v3964
        %v3966 = vrot.slane %v3965, 2
        %v3967 = vadd.f32 %v3965, %v3966
        %v3968 = vrot.slane %v3967, 1
        %v3969 = vadd.f32 %v3967, %v3968
        %v3970 = vrot.slane %v3889, 4
        %v3971 = vadd.f32 %v3889, %v3970
        %v3972 = vrot.slane %v3971, 2
        %v3973 = vadd.f32 %v3971, %v3972
        %v3974 = vrot.slane %v3973, 1
        %v3975 = vadd.f32 %v3973, %v3974
        %v3976 = vrot.slane %v3890, 4
        %v3977 = vadd.f32 %v3890, %v3976
        %v3978 = vrot.slane %v3977, 2
        %v3979 = vadd.f32 %v3977, %v3978
        %v3980 = vrot.slane %v3979, 1
        %v3981 = vadd.f32 %v3979, %v3980
        %v3982 = vrot.slane %v3891, 4
        %v3983 = vadd.f32 %v3891, %v3982
        %v3984 = vrot.slane %v3983, 2
        %v3985 = vadd.f32 %v3983, %v3984
        %v3986 = vrot.slane %v3985, 1
        %v3987 = vadd.f32 %v3985, %v3986
        %v3988 = vld [vmem:[%s3] sm:$0xff]
        %3990 = vset.pattern.permute.xlu0 0
        %3991 = vperm.xlu0 %3990, %v3988
        %v3992 = vpop.permute.xlu0 %3991
        %v3993 = vrot.slane %v3992, 1
        %v3994 = vrot.slane %v3992, 2
        %v3995 = vrot.slane %v3992, 3
        %v3996 = vrot.slane %v3992, 4
        %v3997 = vrot.slane %v3992, 5
        %v3998 = vrot.slane %v3992, 6
        %v3999 = vrot.slane %v3992, 7
        %v4008 = vadd.f32 %v3897, %v3992
        %v4009 = vadd.f32 %v3903, %v3992
        %v4010 = vadd.f32 %v3909, %v3993
        %v4011 = vadd.f32 %v3915, %v3993
        %v4012 = vadd.f32 %v3921, %v3994
        %v4013 = vadd.f32 %v3927, %v3994
        %v4014 = vadd.f32 %v3933, %v3995
        %v4015 = vadd.f32 %v3939, %v3995
        %v4016 = vadd.f32 %v3945, %v3996
        %v4017 = vadd.f32 %v3951, %v3996
        %v4018 = vadd.f32 %v3957, %v3997
        %v4019 = vadd.f32 %v3963, %v3997
        %v4020 = vadd.f32 %v3969, %v3998
        %v4021 = vadd.f32 %v3975, %v3998
        %v4022 = vadd.f32 %v3981, %v3999
        %v4023 = vadd.f32 %v3987, %v3999
        %v4024 = vmax.f32 %v4008, 0.0
        %v4025 = vmax.f32 %v4009, 0.0
        %v4026 = vmax.f32 %v4010, 0.0
        %v4027 = vmax.f32 %v4011, 0.0
        %v4028 = vmax.f32 %v4012, 0.0
        %v4029 = vmax.f32 %v4013, 0.0
        %v4030 = vmax.f32 %v4014, 0.0
        %v4031 = vmax.f32 %v4015, 0.0
        %v4032 = vmax.f32 %v4016, 0.0
        %v4033 = vmax.f32 %v4017, 0.0
        %v4034 = vmax.f32 %v4018, 0.0
        %v4035 = vmax.f32 %v4019, 0.0
        %v4036 = vmax.f32 %v4020, 0.0
        %v4037 = vmax.f32 %v4021, 0.0
        %v4038 = vmax.f32 %v4022, 0.0
        %v4039 = vmax.f32 %v4023, 0.0
        %v4056 = vrot.slane %v4026, 7
        %v4057 = vsel %vm3520, %v4056, %v4024
        %v4058 = vrot.slane %v4028, 6
        %v4059 = vsel %vm3523, %v4058, %v4057
        %v4060 = vrot.slane %v4030, 5
        %v4061 = vsel %vm3526, %v4060, %v4059
        %v4062 = vrot.slane %v4032, 4
        %v4063 = vsel %vm3529, %v4062, %v4061
        %v4064 = vrot.slane %v4034, 3
        %v4065 = vsel %vm3532, %v4064, %v4063
        %v4066 = vrot.slane %v4036, 2
        %v4067 = vsel %vm3535, %v4066, %v4065
        %v4068 = vrot.slane %v4038, 1
        %v4069 = vsel %vm3538, %v4068, %v4067
        %v4070 = vrot.slane %v4027, 7
        %v4071 = vsel %vm3520, %v4070, %v4025
        %v4072 = vrot.slane %v4029, 6
        %v4073 = vsel %vm3523, %v4072, %v4071
        %v4074 = vrot.slane %v4031, 5
        %v4075 = vsel %vm3526, %v4074, %v4073
        %v4076 = vrot.slane %v4033, 4
        %v4077 = vsel %vm3529, %v4076, %v4075
        %v4078 = vrot.slane %v4035, 3
        %v4079 = vsel %vm3532, %v4078, %v4077
        %v4080 = vrot.slane %v4037, 2
        %v4081 = vsel %vm3535, %v4080, %v4079
        %v4082 = vrot.slane %v4039, 1
        %v4083 = vsel %vm3538, %v4082, %v4081
        %4086 = vst [vmem:[%s190] sm:$0xff] %v4069
        %4087 = vst [vmem:[%s190 + $0x8] sm:$0xff] %v4083
        %s4088 = sand.u32 %s115, 1
        %s4089 = scalar_lea.sflag [#allocation5], %s4088
        %s4090 = sand.u32 %s115, 1
        %s4091 = smul.addr %s4090, 16
        %s4092 = scalar_lea.vmem [#allocation4], %s4091
        // Predicated region
        $region37: #{tpu_custom_call.1} parent=35 // pred_check
          %p4093 = pneg %p125
        $region38: #{tpu_custom_call.1} parent=35 // pred_check_branch
          %4095 = sbr.rel (%p4093) target = $region40
        $region39: #{tpu_custom_call.1} parent=35 // pred_region
          %s4097 = ssub.s32 256, 256
          %4098 = vsyncadd %s4089, %s4097
          %s4099 = smul.addr %s18, 2
          %s4100 = smul.addr %s4099, 128
          %s4101 = scalar_lea.hbm %s4, %s4100
          %s4103 = sshll.u32 %s4092, 4
          %s4104 = int_to_ptr.vmem [resolvable:$true] %s4103
          %4106 = dma.vmem_to_hbm [thread:$0]  %s4104, 256, %s4101, %s4089
        $region40: #{tpu_custom_call.1} parent=35 // pred_fallthru
          _
      $region36: #{tpu_custom_call.1} parent=5 // pred_fallthru
        _
      %p4107 = scmp.le.s32.totalorder 2, %s13
      // Predicated region
      $region41: #{tpu_custom_call.1} parent=5 // pred_check
        %p4108 = pneg %p4107
      $region42: #{tpu_custom_call.1} parent=5 // pred_check_branch
        %4110 = sbr.rel (%p4108) target = $region44
      $region43: #{tpu_custom_call.1} parent=5 // pred_region
        %s4111 = ssub.s32 %s13, 2
        // Predicated region
        $region45: #{tpu_custom_call.1} parent=43 // pred_check
          %p4112 = pneg %p131
        $region46: #{tpu_custom_call.1} parent=43 // pred_check_branch
          %4114 = sbr.rel (%p4112) target = $region48
        $region47: #{tpu_custom_call.1} parent=43 // pred_region
          %s4115 = sand.u32 %s116, 1
          %s4116 = scalar_lea.sflag [#allocation5], %s4115
          %s4117 = sand.u32 %s116, 1
          %s4118 = smul.addr %s4117, 16
          %s4119 = scalar_lea.vmem [#allocation4], %s4118
          %4120 = dma.done %s4116, 256
        $region48: #{tpu_custom_call.1} parent=43 // pred_fallthru
          _
      $region44: #{tpu_custom_call.1} parent=5 // pred_fallthru
        _
    $region6: #{tpu_custom_call.1} parent=1 // loop_footer
      %s17 = sadd.s32 1, %s13
    $region7: #{tpu_custom_call.1} parent=1 // loop_footer_branch
      %12 = sbr.rel target = $region3
    $region8: #{tpu_custom_call.1} parent=1 // loop_exit
      _
    %4121 = vsyncpa [#allocation5], 1
    %s4122 = scalar_lea.sflag [#allocation5], 1
    %4123 = vsyncpa %s4122, 1

</llo_original>
